<compile_context>
chip_gen: v6e
topology: v6e:2x2x1
jax: 0.10.0
libtpu: 0.0.40
codegen_flags: <defaults>
</compile_context>

<pallas_src>
from functools import partial

import jax
import jax.numpy as jnp
import numpy as np
from jax.experimental import pallas as pl
from jax.experimental.pallas import tpu as pltpu


def _round_up(x: int, m: int) -> int:
    return (x + m - 1) // m * m


def _default_elementwise_dtype():
    """bf16 bias/GELU on v6e/v7x (bf16 VALU/EUP); f32 on v5e and older."""
    try:
        kind = jax.devices()[0].device_kind.lower()
    except Exception:
        return jnp.float32
    if any(v in kind for v in ("v2", "v3", "v4", "v5")):
        return jnp.float32
    return jnp.bfloat16


def _gelu_tanh(h):
    # GELU, tanh approximation, computed in h.dtype (tanh uses the EUP slot).
    # TODO(synk): torch.nn.GELU() defaults to the exact erf formulation; the
    # tanh approximation (max abs deviation ~3e-3) is used because erf has no
    # guaranteed Mosaic lowering.
    c = 0.7978845608028654  # sqrt(2/pi)
    return 0.5 * h * (1.0 + jnp.tanh(c * (h + 0.044715 * (h * h * h))))


def _pick_tile_m(n_rows: int, max_tile: int = 1024) -> int:
    """Row tile: big steps for large N, right-sized (16-grain) for small N,
    grid length >= 2 so both v7x TensorCores get work, >= 8 steps when each
    step still has >= 256 rows so per-core DMA/compute overlap exists."""
    if n_rows >= 8 * 256:
        steps = max(8, pl.cdiv(n_rows, max_tile))
    else:
        steps = 2
    tm = _round_up(pl.cdiv(n_rows, steps), 16)
    return max(16, min(tm, max_tile))


# ----------------------------------------------------------------------------
# Pallas kernel: one (tm, Cin) token tile per grid step, fully fused MLP.
# ----------------------------------------------------------------------------
def _mlp_kernel(x_ref, w1_ref, b1_ref, w2_ref, b2_ref, out_ref, *, ew_dtype):
    # x arrives f32 straight from HBM; cast to bf16 in VMEM for the MXU.
    x = x_ref[...].astype(jnp.bfloat16)
    # fc1 on the MXU: bf16 operands, f32 accumulation.
    h = jnp.dot(x, w1_ref[...], preferred_element_type=jnp.float32)
    # Bias + GELU in ew_dtype (bf16 on v6e/v7x, f32 on v5e).
    h = h.astype(ew_dtype) + b1_ref[...]
    h = _gelu_tanh(h)
    # fc2 on the MXU: bf16 operands, f32 accumulation; fc2 bias added in f32.
    o = jnp.dot(h.astype(jnp.bfloat16), w2_ref[...],
                preferred_element_type=jnp.float32)
    out_ref[...] = (o + b2_ref[...]).astype(out_ref.dtype)
    # dropout(p=0.0) -> identity (eval mode), nothing to do.


def mlp_pallas(data, params, *, max_tile_m=1024, out_dtype=jnp.float32,
               elementwise_dtype=None):
    """data: (N, Cin) f32 -> (N, Cout) out_dtype, fused fc1+GELU+fc2 on TPU.

    Set out_dtype=jnp.bfloat16 if the downstream consumer accepts it — halves
    the output HBM write (largest remaining stream in the mem-bound regime).
    """
    N, Cin = data.shape
    w1, b1 = params['w1'], params['b1']
    w2, b2 = params['w2'], params['b2']
    Ch = w1.shape[1]
    Cout = w2.shape[1]

    ew_dtype = (_default_elementwise_dtype()
                if elementwise_dtype is None else elementwise_dtype)
    tm = _pick_tile_m(N, max_tile_m)
    grid = (pl.cdiv(N, tm),)

    # Pre-cast weights/biases once (tiny arrays); x itself is NOT touched in
    # the wrapper — no extra HBM pass over the token stream.
    w1b = w1.astype(jnp.bfloat16)
    w2b = w2.astype(jnp.bfloat16)
    b1e = b1.reshape(1, -1).astype(ew_dtype)
    b2f = b2.reshape(1, -1).astype(jnp.float32)

    kernel = partial(_mlp_kernel, ew_dtype=ew_dtype)

    def run(single_buffer_weights: bool):
        if single_buffer_weights:
            def wspec(shape):
                return pl.BlockSpec(shape, lambda i: (0, 0),
                                    pipeline_mode=pl.Buffered(1))
        else:
            def wspec(shape):
                return pl.BlockSpec(shape, lambda i: (0, 0))

        return pl.pallas_call(
            kernel,
            out_shape=jax.ShapeDtypeStruct((N, Cout), out_dtype),
            grid=grid,
            in_specs=[
                pl.BlockSpec((tm, Cin), lambda i: (i, 0)),   # x tile (streamed, f32)
                wspec((Cin, Ch)),                            # W1 (resident)
                wspec((1, Ch)),                              # b1
                wspec((Ch, Cout)),                           # W2 (resident)
                wspec((1, Cout)),                            # b2
            ],
            out_specs=pl.BlockSpec((tm, Cout), lambda i: (i, 0)),
            compiler_params=pltpu.CompilerParams(
                dimension_semantics=("parallel",),           # megacore on v7x
                vmem_limit_bytes=32 * 1024 * 1024),
        )(data, w1b, b1e, w2b, b2f)

    try:
        return jax.block_until_ready(run(True))
    except Exception:
        # TODO(synk): fallback for jax builds that reject pl.Buffered(1) on
        # constant-index weight blocks (cost: one extra small weight buffer).
        return run(False)


# ----------------------------------------------------------------------------
# Pure-JAX reference mirroring the exact kernel precision recipe
# (bf16 MXU operands, f32 accumulation, ew_dtype bias/GELU, f32 fc2 bias).
# ----------------------------------------------------------------------------
def mlp_ref(data, params, *, elementwise_dtype=None):
    ew_dtype = (_default_elementwise_dtype()
                if elementwise_dtype is None else elementwise_dtype)
    w1b = params['w1'].astype(jnp.bfloat16)
    w2b = params['w2'].astype(jnp.bfloat16)
    h = jnp.dot(data.astype(jnp.bfloat16), w1b,
                preferred_element_type=jnp.float32)
    h = h.astype(ew_dtype) + params['b1'].astype(ew_dtype)
    h = _gelu_tanh(h)
    o = jnp.dot(h.astype(jnp.bfloat16), w2b,
                preferred_element_type=jnp.float32)
    return o + params['b2'].astype(jnp.float32)


# ----------------------------------------------------------------------------
if __name__ == "__main__":
    # Small, deterministic config (token-major MLP, as used inside OctFormer).
    N = 300            # number of octree-node tokens (ragged: not a tile multiple)
    Cin = 128          # in_features
    Chid = 512         # hidden_features (4x)
    Cout = 128         # out_features

    key = jax.random.PRNGKey(0)
    kx, kw1, kb1, kw2, kb2 = jax.random.split(key, 5)

    data = jax.random.normal(kx, (N, Cin), jnp.float32)
    params = {
        'w1': 0.05 * jax.random.normal(kw1, (Cin, Chid), jnp.float32),
        'b1': 0.05 * jax.random.normal(kb1, (Chid,), jnp.float32),
        'w2': 0.05 * jax.random.normal(kw2, (Chid, Cout), jnp.float32),
        'b2': 0.05 * jax.random.normal(kb2, (Cout,), jnp.float32),
    }

    out = jax.block_until_ready(mlp_pallas(data, params))
    ref = jax.block_until_ready(mlp_ref(data, params))

    assert out.shape == (N, Cout)
    np.testing.assert_allclose(np.asarray(out), np.asarray(ref),
                               rtol=2e-2, atol=2e-2)
    print("KERNEL_OK")
</pallas_src>

<mosaic_0001>
module attributes {stable_mosaic.version = 11 : i64} {
  func.func @_mlp_kernel(%arg0: i32, %arg1: memref<160x128xf32, #tpu.memory_space<vmem>>, %arg2: memref<128x512xbf16, #tpu.memory_space<vmem>>, %arg3: memref<1x512xbf16, #tpu.memory_space<vmem>>, %arg4: memref<512x128xbf16, #tpu.memory_space<vmem>>, %arg5: memref<1x128xf32, #tpu.memory_space<vmem>>, %arg6: memref<160x128xf32, #tpu.memory_space<vmem>>) attributes {dimension_semantics = [#tpu.dimension_semantics<parallel>], iteration_bounds = array<i64: 2>, scalar_prefetch = 0 : i64, scratch_operands = 0 : i64, tpu.core_type = #tpu.core_type<tc>, window_params = [{transform_indices = @transform_0, window_bounds = array<i64: 160, 128>}, {pipeline_mode = #tpu.pipeline_mode<synchronous>, transform_indices = @transform_1, window_bounds = array<i64: 128, 512>}, {pipeline_mode = #tpu.pipeline_mode<synchronous>, transform_indices = @transform_2, window_bounds = array<i64: 1, 512>}, {pipeline_mode = #tpu.pipeline_mode<synchronous>, transform_indices = @transform_3, window_bounds = array<i64: 512, 128>}, {pipeline_mode = #tpu.pipeline_mode<synchronous>, transform_indices = @transform_4, window_bounds = array<i64: 1, 128>}, {transform_indices = @transform_5, window_bounds = array<i64: 160, 128>}]} {
    %c0 = arith.constant 0 : index
    %c0_0 = arith.constant 0 : index
    %0 = vector.load %arg1[%c0, %c0_0] : memref<160x128xf32, #tpu.memory_space<vmem>>, vector<160x128xf32>
    %1 = arith.truncf %0 : vector<160x128xf32> to vector<160x128xbf16>
    %c0_1 = arith.constant 0 : index
    %c0_2 = arith.constant 0 : index
    %2 = vector.load %arg2[%c0_1, %c0_2] : memref<128x512xbf16, #tpu.memory_space<vmem>>, vector<128x512xbf16>
    %cst = arith.constant dense<0.000000e+00> : vector<160x512xf32>
    %3 = tpu.matmul %1, %2, %cst {dimension_numbers = #tpu.dot_dimension_numbers<[1], [0], [0], [1], [0, 0, 1, 1], [], []>} : vector<160x128xbf16>, vector<128x512xbf16>, vector<160x512xf32> -> vector<160x512xf32>
    %4 = arith.truncf %3 : vector<160x512xf32> to vector<160x512xbf16>
    %c0_3 = arith.constant 0 : index
    %c0_4 = arith.constant 0 : index
    %5 = vector.load %arg3[%c0_3, %c0_4] : memref<1x512xbf16, #tpu.memory_space<vmem>>, vector<1x512xbf16>
    %6 = vector.broadcast %5 : vector<1x512xbf16> to vector<160x512xbf16>
    %7 = arith.addf %4, %6 : vector<160x512xbf16>
    %cst_5 = arith.constant 5.000000e-01 : bf16
    %8 = vector.broadcast %cst_5 : bf16 to vector<160x512xbf16>
    %9 = arith.mulf %8, %7 : vector<160x512xbf16>
    %10 = arith.mulf %7, %7 : vector<160x512xbf16>
    %11 = arith.mulf %10, %7 : vector<160x512xbf16>
    %cst_6 = arith.constant 4.467770e-02 : bf16
    %12 = vector.broadcast %cst_6 : bf16 to vector<160x512xbf16>
    %13 = arith.mulf %12, %11 : vector<160x512xbf16>
    %14 = arith.addf %7, %13 : vector<160x512xbf16>
    %cst_7 = arith.constant 7.968750e-01 : bf16
    %15 = vector.broadcast %cst_7 : bf16 to vector<160x512xbf16>
    %16 = arith.mulf %15, %14 : vector<160x512xbf16>
    %17 = math.tanh %16 : vector<160x512xbf16>
    %cst_8 = arith.constant 1.000000e+00 : bf16
    %18 = vector.broadcast %cst_8 : bf16 to vector<160x512xbf16>
    %19 = arith.addf %18, %17 : vector<160x512xbf16>
    %20 = arith.mulf %9, %19 : vector<160x512xbf16>
    %c0_9 = arith.constant 0 : index
    %c0_10 = arith.constant 0 : index
    %21 = vector.load %arg4[%c0_9, %c0_10] : memref<512x128xbf16, #tpu.memory_space<vmem>>, vector<512x128xbf16>
    %cst_11 = arith.constant dense<0.000000e+00> : vector<160x128xf32>
    %22 = tpu.matmul %20, %21, %cst_11 {dimension_numbers = #tpu.dot_dimension_numbers<[1], [0], [0], [1], [0, 0, 1, 1], [], []>} : vector<160x512xbf16>, vector<512x128xbf16>, vector<160x128xf32> -> vector<160x128xf32>
    %c0_12 = arith.constant 0 : index
    %c0_13 = arith.constant 0 : index
    %23 = vector.load %arg5[%c0_12, %c0_13] : memref<1x128xf32, #tpu.memory_space<vmem>>, vector<1x128xf32>
    %24 = vector.broadcast %23 : vector<1x128xf32> to vector<160x128xf32>
    %25 = arith.addf %22, %24 : vector<160x128xf32>
    %c0_14 = arith.constant 0 : index
    %c0_15 = arith.constant 0 : index
    %26 = vector.load %arg6[%c0_14, %c0_15] : memref<160x128xf32, #tpu.memory_space<vmem>>, vector<160x128xf32>
    tpu.vector_store %arg6[%c0_14, %c0_15], %25 {strides = array<i32>} : memref<160x128xf32, #tpu.memory_space<vmem>>, vector<160x128xf32>,
    return
  }
  func.func @transform_0(%arg0: i32) -> (i32, i32) {
    %c0_i32 = arith.constant 0 : i32
    %c0_i32_0 = arith.constant 0 : i32
    return %arg0, %c0_i32 : i32, i32
  }
  func.func @transform_1(%arg0: i32) -> (i32, i32) {
    %c0_i32 = arith.constant 0 : i32
    %c0_i32_0 = arith.constant 0 : i32
    %c0_i32_1 = arith.constant 0 : i32
    return %c0_i32, %c0_i32_0 : i32, i32
  }
  func.func @transform_2(%arg0: i32) -> (i32, i32) {
    %c0_i32 = arith.constant 0 : i32
    %c0_i32_0 = arith.constant 0 : i32
    %c0_i32_1 = arith.constant 0 : i32
    return %c0_i32, %c0_i32_0 : i32, i32
  }
  func.func @transform_3(%arg0: i32) -> (i32, i32) {
    %c0_i32 = arith.constant 0 : i32
    %c0_i32_0 = arith.constant 0 : i32
    %c0_i32_1 = arith.constant 0 : i32
    return %c0_i32, %c0_i32_0 : i32, i32
  }
  func.func @transform_4(%arg0: i32) -> (i32, i32) {
    %c0_i32 = arith.constant 0 : i32
    %c0_i32_0 = arith.constant 0 : i32
    %c0_i32_1 = arith.constant 0 : i32
    return %c0_i32, %c0_i32_0 : i32, i32
  }
  func.func @transform_5(%arg0: i32) -> (i32, i32) {
    %c0_i32 = arith.constant 0 : i32
    %c0_i32_0 = arith.constant 0 : i32
    return %arg0, %c0_i32 : i32, i32
  }
}

module attributes {stable_mosaic.version = 11 : i64} {
  func.func @_mlp_kernel(%arg0: i32, %arg1: memref<160x128xf32, #tpu.memory_space<vmem>>, %arg2: memref<128x512xbf16, #tpu.memory_space<vmem>>, %arg3: memref<1x512xbf16, #tpu.memory_space<vmem>>, %arg4: memref<512x128xbf16, #tpu.memory_space<vmem>>, %arg5: memref<1x128xf32, #tpu.memory_space<vmem>>, %arg6: memref<160x128xf32, #tpu.memory_space<vmem>>) attributes {dimension_semantics = [#tpu.dimension_semantics<parallel>], iteration_bounds = array<i64: 2>, scalar_prefetch = 0 : i64, scratch_operands = 0 : i64, tpu.core_type = #tpu.core_type<tc>, window_params = [{transform_indices = @transform_0, window_bounds = array<i64: 160, 128>}, {pipeline_mode = #tpu.pipeline_mode<synchronous>, transform_indices = @transform_1, window_bounds = array<i64: 128, 512>}, {pipeline_mode = #tpu.pipeline_mode<synchronous>, transform_indices = @transform_2, window_bounds = array<i64: 1, 512>}, {pipeline_mode = #tpu.pipeline_mode<synchronous>, transform_indices = @transform_3, window_bounds = array<i64: 512, 128>}, {pipeline_mode = #tpu.pipeline_mode<synchronous>, transform_indices = @transform_4, window_bounds = array<i64: 1, 128>}, {transform_indices = @transform_5, window_bounds = array<i64: 160, 128>}]} {
    %c0 = arith.constant 0 : index
    %c0_0 = arith.constant 0 : index
    %0 = vector.load %arg1[%c0, %c0_0] : memref<160x128xf32, #tpu.memory_space<vmem>>, vector<160x128xf32>
    %1 = arith.truncf %0 : vector<160x128xf32> to vector<160x128xbf16>
    %c0_1 = arith.constant 0 : index
    %c0_2 = arith.constant 0 : index
    %2 = vector.load %arg2[%c0_1, %c0_2] : memref<128x512xbf16, #tpu.memory_space<vmem>>, vector<128x512xbf16>
    %cst = arith.constant dense<0.000000e+00> : vector<160x512xf32>
    %3 = tpu.matmul %1, %2, %cst {dimension_numbers = #tpu.dot_dimension_numbers<[1], [0], [0], [1], [0, 0, 1, 1], [], []>} : vector<160x128xbf16>, vector<128x512xbf16>, vector<160x512xf32> -> vector<160x512xf32>
    %4 = arith.truncf %3 : vector<160x512xf32> to vector<160x512xbf16>
    %c0_3 = arith.constant 0 : index
    %c0_4 = arith.constant 0 : index
    %5 = vector.load %arg3[%c0_3, %c0_4] : memref<1x512xbf16, #tpu.memory_space<vmem>>, vector<1x512xbf16>
    %6 = vector.broadcast %5 : vector<1x512xbf16> to vector<160x512xbf16>
    %7 = arith.addf %4, %6 : vector<160x512xbf16>
    %cst_5 = arith.constant 5.000000e-01 : bf16
    %8 = vector.broadcast %cst_5 : bf16 to vector<160x512xbf16>
    %9 = arith.mulf %8, %7 : vector<160x512xbf16>
    %10 = arith.mulf %7, %7 : vector<160x512xbf16>
    %11 = arith.mulf %10, %7 : vector<160x512xbf16>
    %cst_6 = arith.constant 4.467770e-02 : bf16
    %12 = vector.broadcast %cst_6 : bf16 to vector<160x512xbf16>
    %13 = arith.mulf %12, %11 : vector<160x512xbf16>
    %14 = arith.addf %7, %13 : vector<160x512xbf16>
    %cst_7 = arith.constant 7.968750e-01 : bf16
    %15 = vector.broadcast %cst_7 : bf16 to vector<160x512xbf16>
    %16 = arith.mulf %15, %14 : vector<160x512xbf16>
    %17 = math.tanh %16 : vector<160x512xbf16>
    %cst_8 = arith.constant 1.000000e+00 : bf16
    %18 = vector.broadcast %cst_8 : bf16 to vector<160x512xbf16>
    %19 = arith.addf %18, %17 : vector<160x512xbf16>
    %20 = arith.mulf %9, %19 : vector<160x512xbf16>
    %c0_9 = arith.constant 0 : index
    %c0_10 = arith.constant 0 : index
    %21 = vector.load %arg4[%c0_9, %c0_10] : memref<512x128xbf16, #tpu.memory_space<vmem>>, vector<512x128xbf16>
    %cst_11 = arith.constant dense<0.000000e+00> : vector<160x128xf32>
    %22 = tpu.matmul %20, %21, %cst_11 {dimension_numbers = #tpu.dot_dimension_numbers<[1], [0], [0], [1], [0, 0, 1, 1], [], []>} : vector<160x512xbf16>, vector<512x128xbf16>, vector<160x128xf32> -> vector<160x128xf32>
    %c0_12 = arith.constant 0 : index
    %c0_13 = arith.constant 0 : index
    %23 = vector.load %arg5[%c0_12, %c0_13] : memref<1x128xf32, #tpu.memory_space<vmem>>, vector<1x128xf32>
    %24 = vector.broadcast %23 : vector<1x128xf32> to vector<160x128xf32>
    %25 = arith.addf %22, %24 : vector<160x128xf32>
    %c0_14 = arith.constant 0 : index
    %c0_15 = arith.constant 0 : index
    %26 = vector.load %arg6[%c0_14, %c0_15] : memref<160x128xf32, #tpu.memory_space<vmem>>, vector<160x128xf32>
    tpu.vector_store %arg6[%c0_14, %c0_15], %25 {strides = array<i32>} : memref<160x128xf32, #tpu.memory_space<vmem>>, vector<160x128xf32>,
    return
  }
  func.func @transform_0(%arg0: i32) -> (i32, i32) {
    %c0_i32 = arith.constant 0 : i32
    %c0_i32_0 = arith.constant 0 : i32
    return %arg0, %c0_i32 : i32, i32
  }
  func.func @transform_1(%arg0: i32) -> (i32, i32) {
    %c0_i32 = arith.constant 0 : i32
    %c0_i32_0 = arith.constant 0 : i32
    %c0_i32_1 = arith.constant 0 : i32
    return %c0_i32, %c0_i32_0 : i32, i32
  }
  func.func @transform_2(%arg0: i32) -> (i32, i32) {
    %c0_i32 = arith.constant 0 : i32
    %c0_i32_0 = arith.constant 0 : i32
    %c0_i32_1 = arith.constant 0 : i32
    return %c0_i32, %c0_i32_0 : i32, i32
  }
  func.func @transform_3(%arg0: i32) -> (i32, i32) {
    %c0_i32 = arith.constant 0 : i32
    %c0_i32_0 = arith.constant 0 : i32
    %c0_i32_1 = arith.constant 0 : i32
    return %c0_i32, %c0_i32_0 : i32, i32
  }
  func.func @transform_4(%arg0: i32) -> (i32, i32) {
    %c0_i32 = arith.constant 0 : i32
    %c0_i32_0 = arith.constant 0 : i32
    %c0_i32_1 = arith.constant 0 : i32
    return %c0_i32, %c0_i32_0 : i32, i32
  }
  func.func @transform_5(%arg0: i32) -> (i32, i32) {
    %c0_i32 = arith.constant 0 : i32
    %c0_i32_0 = arith.constant 0 : i32
    return %arg0, %c0_i32 : i32, i32
  }
}

</mosaic_0001>

<llo_original>
// kernel: tpu_custom_call.1
$region0: #{tpu_custom_call.1}
  #allocation0 [shape = 'u32[]', space=smem, size = 0x4, offset = 0x4, fixed_abs, tag = 'smem constant byte address 0x4 - core index']
  #allocation1 [shape = 'u32[144,128]{1,0:T(1,128)}', space=vmem, size = 0x12000, scoped, tag = 'internal scratch']
  %s0 = inlined_call_operand.hbm [shape: f32[300,128], index: 0, kind: input, shape index: {}]
  %s1 = inlined_call_operand.hbm [shape: bf16[128,512], index: 1, kind: input, shape index: {}]
  %s2 = inlined_call_operand.hbm [shape: bf16[1,512], index: 2, kind: input, shape index: {}]
  %s3 = inlined_call_operand.hbm [shape: bf16[512,128], index: 3, kind: input, shape index: {}]
  %s4 = inlined_call_operand.vmem [shape: f32[1,128], index: 4, kind: input, shape index: {}]
  %s5 = inlined_call_operand.hbm [shape: f32[300,128], index: 5, kind: output, shape index: {}]
  %s6 = sld [smem:[#allocation0]]
  $region69: #{tpu_custom_call.1} parent=0
    _
  %s8 = ssub.s32 1, %s6
  %s9 = scalar_select 0, %s8, %s6
  $region1: #{tpu_custom_call.1} parent=0
    #allocation2 [shape = 'u8[163840]{0}', space=vmem, size = 0x28000, scoped, tag = 'input window, operand 0']
    #allocation3 [shape = 's32[2]{0}', space=sflag, size = 0x8, scoped, tag = 'scoped memory for tpu_custom_call.1']
    #allocation4 [shape = 's32[2]{0}', space=sflag, size = 0x8, scoped, tag = 'scoped memory for tpu_custom_call.1']
    #allocation5 [shape = 'u8[131072]{0}', space=vmem, size = 0x20000, scoped, tag = 'input window, operand 1, single buffered']
    #allocation6 [shape = 's32[1]{0}', space=sflag, size = 0x4, scoped, tag = 'scoped memory for tpu_custom_call.1']
    #allocation7 [shape = 'u8[2048]{0}', space=vmem, size = 0x800, scoped, tag = 'input window, operand 2, single buffered']
    #allocation8 [shape = 'u8[131072]{0}', space=vmem, size = 0x20000, scoped, tag = 'input window, operand 3, single buffered']
    #allocation9 [shape = 's32[1]{0}', space=sflag, size = 0x4, scoped, tag = 'scoped memory for tpu_custom_call.1']
    #allocation10 [shape = 'u8[163840]{0}', space=vmem, size = 0x28000, scoped, tag = 'output window, operand 0']
    %10 = vsyncpa [#allocation3], 0
    %s11 = scalar_lea.sflag [#allocation3], 1
    %12 = vsyncpa %s11, 0
    %13 = vsyncpa [#allocation6], 0
    %14 = vsyncpa [#allocation9], 0
    %15 = vsyncpa [#allocation4], 0
    %s16 = scalar_lea.sflag [#allocation4], 1
    %17 = vsyncpa %s16, 0
    loop: start=0, step=1, limit=4
    $region2: #{tpu_custom_call.1} parent=1 // loop_pre_header
      _
    $region3: #{tpu_custom_call.1} parent=1 // loop_header
      %s19 = sphi 0, %s23
      %p20 = scmp.ge.s32.totalorder %s19, 4
      %s29 = sphi 0, %s31
      %s32 = sphi 0, %s29
      %s33 = sphi 0, %s32
      %s49 = sphi 0, %s33
      %s53 = sphi 0, %s53
      %s55 = sphi 0, %s53
      %s56 = sphi 0, %s55
      %s70 = sphi 0, %s56
      %s74 = sphi 0, %s74
      %s76 = sphi 0, %s74
      %s77 = sphi 0, %s76
      %s91 = sphi 0, %s77
      %s95 = sphi 0, %s95
      %s97 = sphi 0, %s95
      %s98 = sphi 0, %s97
      %s112 = sphi 0, %s98
      %s116 = sphi 0, %s116
      %s118 = sphi 0, %s116
      %s119 = sphi 0, %s118
      %s133 = sphi 0, %s119
      %s139 = sphi 0, %s141
      %s142 = sphi 0, %s139
      %s143 = sphi 0, %s142
      %s159 = sphi 0, %s143
    $region4: #{tpu_custom_call.1} parent=1 // loop_header_branch
      %22 = sbr.rel (%p20) target = $region8
    $region5: #{tpu_custom_call.1} parent=1 // loop_body
      %s24 = ssub.s32 %s19, 1
      %s25 = ssub.s32 %s19, 2
      %s26 = sadd.s32 %s19, 1
      %s27 = ssub.s32 %s19, %s26
      %p28 = scmp.eq.s32.totalorder %s27, 0
      %s30 = sadd.s32 %s29, 1
      %s31 = scalar_select %p28, %s29, %s30
      %p34 = pneg %p28
      %p35 = scmp.eq.s32.totalorder %s19, 1
      %p36 = por %p34, %p35
      %p37 = scmp.ne.s32.totalorder %s29, %s32
      %p38 = scmp.eq.s32.totalorder %s19, 0
      %p39 = por %p37, %p38
      %p40 = scmp.ne.s32.totalorder %s29, %s32
      %p41 = scmp.eq.s32.totalorder %s24, 1
      %p42 = por %p40, %p41
      %p43 = scmp.ne.s32.totalorder %s32, %s33
      %p44 = scmp.eq.s32.totalorder %s24, 0
      %p45 = por %p43, %p44
      %p46 = scmp.ne.s32.totalorder %s32, %s33
      %p47 = scmp.eq.s32.totalorder %s25, 1
      %p48 = por %p46, %p47
      %p50 = scmp.ne.s32.totalorder %s33, %s49
      %p51 = scmp.eq.s32.totalorder %s25, 0
      %p52 = por %p50, %p51
      %s54 = sadd.s32 %s53, 1
      %p57 = scmp.eq.s32.totalorder %s19, 1
      %p58 = scmp.ne.s32.totalorder %s53, %s55
      %p59 = scmp.eq.s32.totalorder %s19, 0
      %p60 = por %p58, %p59
      %p61 = scmp.ne.s32.totalorder %s53, %s55
      %p62 = scmp.eq.s32.totalorder %s24, 1
      %p63 = por %p61, %p62
      %p64 = scmp.ne.s32.totalorder %s55, %s56
      %p65 = scmp.eq.s32.totalorder %s24, 0
      %p66 = por %p64, %p65
      %p67 = scmp.ne.s32.totalorder %s55, %s56
      %p68 = scmp.eq.s32.totalorder %s25, 1
      %p69 = por %p67, %p68
      %p71 = scmp.ne.s32.totalorder %s56, %s70
      %p72 = scmp.eq.s32.totalorder %s25, 0
      %p73 = por %p71, %p72
      %s75 = sadd.s32 %s74, 1
      %p78 = scmp.eq.s32.totalorder %s19, 1
      %p79 = scmp.ne.s32.totalorder %s74, %s76
      %p80 = scmp.eq.s32.totalorder %s19, 0
      %p81 = por %p79, %p80
      %p82 = scmp.ne.s32.totalorder %s74, %s76
      %p83 = scmp.eq.s32.totalorder %s24, 1
      %p84 = por %p82, %p83
      %p85 = scmp.ne.s32.totalorder %s76, %s77
      %p86 = scmp.eq.s32.totalorder %s24, 0
      %p87 = por %p85, %p86
      %p88 = scmp.ne.s32.totalorder %s76, %s77
      %p89 = scmp.eq.s32.totalorder %s25, 1
      %p90 = por %p88, %p89
      %p92 = scmp.ne.s32.totalorder %s77, %s91
      %p93 = scmp.eq.s32.totalorder %s25, 0
      %p94 = por %p92, %p93
      %s96 = sadd.s32 %s95, 1
      %p99 = scmp.eq.s32.totalorder %s19, 1
      %p100 = scmp.ne.s32.totalorder %s95, %s97
      %p101 = scmp.eq.s32.totalorder %s19, 0
      %p102 = por %p100, %p101
      %p103 = scmp.ne.s32.totalorder %s95, %s97
      %p104 = scmp.eq.s32.totalorder %s24, 1
      %p105 = por %p103, %p104
      %p106 = scmp.ne.s32.totalorder %s97, %s98
      %p107 = scmp.eq.s32.totalorder %s24, 0
      %p108 = por %p106, %p107
      %p109 = scmp.ne.s32.totalorder %s97, %s98
      %p110 = scmp.eq.s32.totalorder %s25, 1
      %p111 = por %p109, %p110
      %p113 = scmp.ne.s32.totalorder %s98, %s112
      %p114 = scmp.eq.s32.totalorder %s25, 0
      %p115 = por %p113, %p114
      %s117 = sadd.s32 %s116, 1
      %p120 = scmp.eq.s32.totalorder %s19, 1
      %p121 = scmp.ne.s32.totalorder %s116, %s118
      %p122 = scmp.eq.s32.totalorder %s19, 0
      %p123 = por %p121, %p122
      %p124 = scmp.ne.s32.totalorder %s116, %s118
      %p125 = scmp.eq.s32.totalorder %s24, 1
      %p126 = por %p124, %p125
      %p127 = scmp.ne.s32.totalorder %s118, %s119
      %p128 = scmp.eq.s32.totalorder %s24, 0
      %p129 = por %p127, %p128
      %p130 = scmp.ne.s32.totalorder %s118, %s119
      %p131 = scmp.eq.s32.totalorder %s25, 1
      %p132 = por %p130, %p131
      %p134 = scmp.ne.s32.totalorder %s119, %s133
      %p135 = scmp.eq.s32.totalorder %s25, 0
      %p136 = por %p134, %p135
      %s137 = ssub.s32 %s19, %s26
      %p138 = scmp.eq.s32.totalorder %s137, 0
      %s140 = sadd.s32 %s139, 1
      %s141 = scalar_select %p138, %s139, %s140
      %p144 = pneg %p138
      %p145 = scmp.eq.s32.totalorder %s19, 1
      %p146 = por %p144, %p145
      %p147 = scmp.ne.s32.totalorder %s139, %s142
      %p148 = scmp.eq.s32.totalorder %s19, 0
      %p149 = por %p147, %p148
      %p150 = scmp.ne.s32.totalorder %s139, %s142
      %p151 = scmp.eq.s32.totalorder %s24, 1
      %p152 = por %p150, %p151
      %p153 = scmp.ne.s32.totalorder %s142, %s143
      %p154 = scmp.eq.s32.totalorder %s24, 0
      %p155 = por %p153, %p154
      %p156 = scmp.ne.s32.totalorder %s142, %s143
      %p157 = scmp.eq.s32.totalorder %s25, 1
      %p158 = por %p156, %p157
      %p160 = scmp.ne.s32.totalorder %s143, %s159
      %p161 = scmp.eq.s32.totalorder %s25, 0
      %p162 = por %p160, %p161
      %p163 = scmp.le.s32.totalorder 1, %s19
      %p164 = scmp.lt.s32.totalorder %s19, 3
      %p165 = pnand %p163, %p164
      %p166 = pneg %p165
      // Predicated region
      $region9: #{tpu_custom_call.1} parent=5 // pred_check
        _
      $region10: #{tpu_custom_call.1} parent=5 // pred_check_branch
        %168 = sbr.rel (%p165) target = $region12
      $region11: #{tpu_custom_call.1} parent=5 // pred_region
        %s169 = ssub.s32 %s19, 1
        // Predicated region
        $region13: #{tpu_custom_call.1} parent=11 // pred_check
          %p170 = pneg %p66
        $region14: #{tpu_custom_call.1} parent=11 // pred_check_branch
          %172 = sbr.rel (%p170) target = $region16
        $region15: #{tpu_custom_call.1} parent=11 // pred_region
          %s174 = ssub.s32 4096, 4096
          %175 = vsyncadd [#allocation6], %s174
          %s176 = sshll.u32 [#allocation5], 4
          %s177 = int_to_ptr.vmem [resolvable:$true] %s176
          %182 = dma.hbm_to_vmem [thread:$0]  %s1, 4096, %s177, [#allocation6], 256, 256, 16
        $region16: #{tpu_custom_call.1} parent=11 // pred_fallthru
          _
        // Predicated region
        $region17: #{tpu_custom_call.1} parent=11 // pred_check
          %p183 = pneg %p87
        $region18: #{tpu_custom_call.1} parent=11 // pred_check_branch
          %185 = sbr.rel (%p183) target = $region20
        $region19: #{tpu_custom_call.1} parent=11 // pred_region
          %s187 = ssub.s32 64, 64
          %188 = vsyncadd [#allocation6], %s187
          %s190 = sshll.u32 [#allocation7], 4
          %s191 = int_to_ptr.vmem [resolvable:$true] %s190
          %193 = dma.hbm_to_vmem [thread:$0]  %s2, 64, %s191, [#allocation6]
        $region20: #{tpu_custom_call.1} parent=11 // pred_fallthru
          _
        // Predicated region
        $region21: #{tpu_custom_call.1} parent=11 // pred_check
          %p194 = pneg %p108
        $region22: #{tpu_custom_call.1} parent=11 // pred_check_branch
          %196 = sbr.rel (%p194) target = $region24
        $region23: #{tpu_custom_call.1} parent=11 // pred_region
          %s198 = ssub.s32 4096, 4096
          %199 = vsyncadd [#allocation9], %s198
          %s200 = sshll.u32 [#allocation8], 4
          %s201 = int_to_ptr.vmem [resolvable:$true] %s200
          %206 = dma.hbm_to_vmem [thread:$0]  %s3, 4096, %s201, [#allocation9], 64, 64, 4
        $region24: #{tpu_custom_call.1} parent=11 // pred_fallthru
          _
        // Predicated region
        $region25: #{tpu_custom_call.1} parent=11 // pred_check
          %p207 = pneg %p129
        $region26: #{tpu_custom_call.1} parent=11 // pred_check_branch
          %209 = sbr.rel (%p207) target = $region28
        $region27: #{tpu_custom_call.1} parent=11 // pred_region
          _
        $region28: #{tpu_custom_call.1} parent=11 // pred_fallthru
          _
      $region12: #{tpu_custom_call.1} parent=5 // pred_fallthru
        _
      %p210 = scmp.lt.s32.totalorder %s19, 2
      // Predicated region
      $region29: #{tpu_custom_call.1} parent=5 // pred_check
        %p211 = pneg %p210
      $region30: #{tpu_custom_call.1} parent=5 // pred_check_branch
        %213 = sbr.rel (%p211) target = $region32
      $region31: #{tpu_custom_call.1} parent=5 // pred_region
        // Predicated region
        $region33: #{tpu_custom_call.1} parent=31 // pred_check
          %p214 = pneg %p39
        $region34: #{tpu_custom_call.1} parent=31 // pred_check_branch
          %216 = sbr.rel (%p214) target = $region36
        $region35: #{tpu_custom_call.1} parent=31 // pred_region
          %s217 = sand.u32 %s29, 1
          %s218 = scalar_lea.sflag [#allocation3], %s217
          %s219 = sand.u32 %s29, 1
          %s220 = smul.addr %s219, 160
          %s221 = scalar_lea.vmem [#allocation2], %s220
          %s222 = smul.u32 20, %s19
          %s223 = ssub.s32 38, %s222
          %p224 = scmp.lt.s32.totalorder %s223, 20
          %s225 = scalar_select %p224, %s223, 20
          %s226 = smul.u32 128, %s225
          %s228 = ssub.s32 2560, %s226
          %229 = vsyncadd %s218, %s228
          %p230 = scmp.ne.s32.totalorder 0, %s226
          %s231 = smul.addr %s222, 128
          %s232 = scalar_lea.hbm %s0, %s231
          %s233 = smul.u32 8, %s225
          %s234 = sshll.u32 %s221, 4
          %s235 = int_to_ptr.vmem [resolvable:$true] %s234
          %s236 = sshll.u32 %s233, 4
          %240 = dma.hbm_to_vmem [thread:$0]  (%p230), %s232, %s236, %s235, %s218, 128, 128, 8
        $region36: #{tpu_custom_call.1} parent=31 // pred_fallthru
          _
      $region32: #{tpu_custom_call.1} parent=5 // pred_fallthru
        _
      %p241 = scmp.le.s32.totalorder 1, %s19
      %p242 = scmp.lt.s32.totalorder %s19, 3
      %p243 = pnand %p241, %p242
      %p244 = pneg %p243
      // Predicated region
      $region37: #{tpu_custom_call.1} parent=5 // pred_check
        _
      $region38: #{tpu_custom_call.1} parent=5 // pred_check_branch
        %246 = sbr.rel (%p243) target = $region40
      $region39: #{tpu_custom_call.1} parent=5 // pred_region
        %s247 = ssub.s32 %s19, 1
        %s248 = sand.u32 %s32, 1
        %s249 = scalar_lea.sflag [#allocation3], %s248
        %s250 = sand.u32 %s32, 1
        %s251 = smul.addr %s250, 160
        %s252 = scalar_lea.vmem [#allocation2], %s251
        // Predicated region
        $region41: #{tpu_custom_call.1} parent=39 // pred_check
          %p253 = pneg %p45
        $region42: #{tpu_custom_call.1} parent=39 // pred_check_branch
          %255 = sbr.rel (%p253) target = $region44
        $region43: #{tpu_custom_call.1} parent=39 // pred_region
          %256 = dma.done %s249, 2560
        $region44: #{tpu_custom_call.1} parent=39 // pred_fallthru
          _
        // Predicated region
        $region45: #{tpu_custom_call.1} parent=39 // pred_check
          %p257 = pneg %p66
        $region46: #{tpu_custom_call.1} parent=39 // pred_check_branch
          %259 = sbr.rel (%p257) target = $region48
        $region47: #{tpu_custom_call.1} parent=39 // pred_region
          %260 = dma.done [#allocation6], 4096
        $region48: #{tpu_custom_call.1} parent=39 // pred_fallthru
          _
        // Predicated region
        $region49: #{tpu_custom_call.1} parent=39 // pred_check
          %p261 = pneg %p87
        $region50: #{tpu_custom_call.1} parent=39 // pred_check_branch
          %263 = sbr.rel (%p261) target = $region52
        $region51: #{tpu_custom_call.1} parent=39 // pred_region
          %264 = dma.done [#allocation6], 64
        $region52: #{tpu_custom_call.1} parent=39 // pred_fallthru
          _
        // Predicated region
        $region53: #{tpu_custom_call.1} parent=39 // pred_check
          %p265 = pneg %p108
        $region54: #{tpu_custom_call.1} parent=39 // pred_check_branch
          %267 = sbr.rel (%p265) target = $region56
        $region55: #{tpu_custom_call.1} parent=39 // pred_region
          %268 = dma.done [#allocation9], 4096
        $region56: #{tpu_custom_call.1} parent=39 // pred_fallthru
          _
        %s269 = sand.u32 %s32, 1
        %s270 = scalar_lea.sflag [#allocation3], %s269
        %s271 = sand.u32 %s32, 1
        %s272 = smul.addr %s271, 160
        %s273 = scalar_lea.vmem [#allocation2], %s272
        %p274 = pneg %p45
        %p275 = pneg %p42
        %p276 = pneg %p66
        %p277 = pneg %p63
        %p278 = pneg %p87
        %p279 = pneg %p84
        %p280 = pneg %p108
        %p281 = pneg %p105
        %p282 = pneg %p129
        %p283 = pneg %p126
        %p284 = pneg %p155
        %p285 = pneg %p152
        %s286 = sand.u32 %s142, 1
        %s287 = scalar_lea.sflag [#allocation4], %s286
        %s288 = sand.u32 %s142, 1
        %s289 = smul.addr %s288, 160
        %s290 = scalar_lea.vmem [#allocation10], %s289
        %s291 = smul.u32 20, %s24
        %s292 = ssub.s32 38, %s291
        %p293 = scmp.lt.s32.totalorder %s292, 20
        %s294 = scalar_select %p293, %s292, 20
        %s295 = smul.u32 128, %s294
        %s296 = smul.u32 20, %s24
        %s297 = ssub.s32 38, %s296
        %p298 = scmp.lt.s32.totalorder %s297, 20
        %s299 = scalar_select %p298, %s297, 20
        %s300 = smul.u32 128, %s299
        %v306 = vld [vmem:[%s252] sm:$0xff]
        %v307 = vld [vmem:[%s252 + $0x8] sm:$0xff]
        %v308 = vld [vmem:[%s252 + $0x10] sm:$0xff]
        %v309 = vld [vmem:[%s252 + $0x18] sm:$0xff]
        %v310 = vld [vmem:[%s252 + $0x20] sm:$0xff]
        %v311 = vld [vmem:[%s252 + $0x28] sm:$0xff]
        %v312 = vld [vmem:[%s252 + $0x30] sm:$0xff]
        %v313 = vld [vmem:[%s252 + $0x38] sm:$0xff]
        %v314 = vld [vmem:[%s252 + $0x40] sm:$0xff]
        %v315 = vld [vmem:[%s252 + $0x48] sm:$0xff]
        %v316 = vld [vmem:[%s252 + $0x50] sm:$0xff]
        %v317 = vld [vmem:[%s252 + $0x58] sm:$0xff]
        %v318 = vld [vmem:[%s252 + $0x60] sm:$0xff]
        %v319 = vld [vmem:[%s252 + $0x68] sm:$0xff]
        %v320 = vld [vmem:[%s252 + $0x70] sm:$0xff]
        %v321 = vld [vmem:[%s252 + $0x78] sm:$0xff]
        %v322 = vld [vmem:[%s252 + $0x80] sm:$0xff]
        %v323 = vld [vmem:[%s252 + $0x88] sm:$0xff]
        %v324 = vld [vmem:[%s252 + $0x90] sm:$0xff]
        %v325 = vld [vmem:[%s252 + $0x98] sm:$0xff]
        %v326 = vpack.c.bf16 %v307, %v306
        %v327 = vpack.c.bf16 %v309, %v308
        %v328 = vpack.c.bf16 %v311, %v310
        %v329 = vpack.c.bf16 %v313, %v312
        %v330 = vpack.c.bf16 %v315, %v314
        %v331 = vpack.c.bf16 %v317, %v316
        %v332 = vpack.c.bf16 %v319, %v318
        %v333 = vpack.c.bf16 %v321, %v320
        %v334 = vpack.c.bf16 %v323, %v322
        %v335 = vpack.c.bf16 %v325, %v324
        %v336 = vld [vmem:[#allocation5] sm:$0xff]
        %v337 = vld [vmem:[#allocation5 + $0x8] sm:$0xff]
        %v338 = vld [vmem:[#allocation5 + $0x10] sm:$0xff]
        %v339 = vld [vmem:[#allocation5 + $0x18] sm:$0xff]
        %v340 = vld [vmem:[#allocation5 + $0x20] sm:$0xff]
        %v341 = vld [vmem:[#allocation5 + $0x28] sm:$0xff]
        %v342 = vld [vmem:[#allocation5 + $0x30] sm:$0xff]
        %v343 = vld [vmem:[#allocation5 + $0x38] sm:$0xff]
        %v344 = vld [vmem:[#allocation5 + $0x40] sm:$0xff]
        %v345 = vld [vmem:[#allocation5 + $0x48] sm:$0xff]
        %v346 = vld [vmem:[#allocation5 + $0x50] sm:$0xff]
        %v347 = vld [vmem:[#allocation5 + $0x58] sm:$0xff]
        %v348 = vld [vmem:[#allocation5 + $0x60] sm:$0xff]
        %v349 = vld [vmem:[#allocation5 + $0x68] sm:$0xff]
        %v350 = vld [vmem:[#allocation5 + $0x70] sm:$0xff]
        %v351 = vld [vmem:[#allocation5 + $0x78] sm:$0xff]
        %v352 = vld [vmem:[#allocation5 + $0x80] sm:$0xff]
        %v353 = vld [vmem:[#allocation5 + $0x88] sm:$0xff]
        %v354 = vld [vmem:[#allocation5 + $0x90] sm:$0xff]
        %v355 = vld [vmem:[#allocation5 + $0x98] sm:$0xff]
        %v356 = vld [vmem:[#allocation5 + $0xa0] sm:$0xff]
        %v357 = vld [vmem:[#allocation5 + $0xa8] sm:$0xff]
        %v358 = vld [vmem:[#allocation5 + $0xb0] sm:$0xff]
        %v359 = vld [vmem:[#allocation5 + $0xb8] sm:$0xff]
        %v360 = vld [vmem:[#allocation5 + $0xc0] sm:$0xff]
        %v361 = vld [vmem:[#allocation5 + $0xc8] sm:$0xff]
        %v362 = vld [vmem:[#allocation5 + $0xd0] sm:$0xff]
        %v363 = vld [vmem:[#allocation5 + $0xd8] sm:$0xff]
        %v364 = vld [vmem:[#allocation5 + $0xe0] sm:$0xff]
        %v365 = vld [vmem:[#allocation5 + $0xe8] sm:$0xff]
        %v366 = vld [vmem:[#allocation5 + $0xf0] sm:$0xff]
        %v367 = vld [vmem:[#allocation5 + $0xf8] sm:$0xff]
        %v400 = vunpack.c.l.b16 %v336
        %v401 = vunpack.c.h.b16 %v336
        %v402 = vunpack.c.l.b16 %v337
        %v403 = vunpack.c.h.b16 %v337
        %v404 = vunpack.c.l.b16 %v338
        %v405 = vunpack.c.h.b16 %v338
        %v406 = vunpack.c.l.b16 %v339
        %v407 = vunpack.c.h.b16 %v339
        %v408 = vunpack.c.l.b16 %v340
        %v409 = vunpack.c.h.b16 %v340
        %v410 = vunpack.c.l.b16 %v341
        %v411 = vunpack.c.h.b16 %v341
        %v412 = vunpack.c.l.b16 %v342
        %v413 = vunpack.c.h.b16 %v342
        %v414 = vunpack.c.l.b16 %v343
        %v415 = vunpack.c.h.b16 %v343
        %v416 = vunpack.c.l.b16 %v344
        %v417 = vunpack.c.h.b16 %v344
        %v418 = vunpack.c.l.b16 %v345
        %v419 = vunpack.c.h.b16 %v345
        %v420 = vunpack.c.l.b16 %v346
        %v421 = vunpack.c.h.b16 %v346
        %v422 = vunpack.c.l.b16 %v347
        %v423 = vunpack.c.h.b16 %v347
        %v424 = vunpack.c.l.b16 %v348
        %v425 = vunpack.c.h.b16 %v348
        %v426 = vunpack.c.l.b16 %v349
        %v427 = vunpack.c.h.b16 %v349
        %v428 = vunpack.c.l.b16 %v350
        %v429 = vunpack.c.h.b16 %v350
        %v430 = vunpack.c.l.b16 %v351
        %v431 = vunpack.c.h.b16 %v351
        %v432 = vunpack.c.l.b16 %v352
        %v433 = vunpack.c.h.b16 %v352
        %v434 = vunpack.c.l.b16 %v353
        %v435 = vunpack.c.h.b16 %v353
        %v436 = vunpack.c.l.b16 %v354
        %v437 = vunpack.c.h.b16 %v354
        %v438 = vunpack.c.l.b16 %v355
        %v439 = vunpack.c.h.b16 %v355
        %v440 = vunpack.c.l.b16 %v356
        %v441 = vunpack.c.h.b16 %v356
        %v442 = vunpack.c.l.b16 %v357
        %v443 = vunpack.c.h.b16 %v357
        %v444 = vunpack.c.l.b16 %v358
        %v445 = vunpack.c.h.b16 %v358
        %v446 = vunpack.c.l.b16 %v359
        %v447 = vunpack.c.h.b16 %v359
        %v448 = vunpack.c.l.b16 %v360
        %v449 = vunpack.c.h.b16 %v360
        %v450 = vunpack.c.l.b16 %v361
        %v451 = vunpack.c.h.b16 %v361
        %v452 = vunpack.c.l.b16 %v362
        %v453 = vunpack.c.h.b16 %v362
        %v454 = vunpack.c.l.b16 %v363
        %v455 = vunpack.c.h.b16 %v363
        %v456 = vunpack.c.l.b16 %v364
        %v457 = vunpack.c.h.b16 %v364
        %v458 = vunpack.c.l.b16 %v365
        %v459 = vunpack.c.h.b16 %v365
        %v460 = vunpack.c.l.b16 %v366
        %v461 = vunpack.c.h.b16 %v366
        %v462 = vunpack.c.l.b16 %v367
        %v463 = vunpack.c.h.b16 %v367
        %v464 = vpack.c.b16 %v404, %v400
        %v465 = vpack.c.b16 %v405, %v401
        %v466 = vpack.c.b16 %v406, %v402
        %v467 = vpack.c.b16 %v407, %v403
        %v468 = vpack.c.b16 %v412, %v408
        %v469 = vpack.c.b16 %v413, %v409
        %v470 = vpack.c.b16 %v414, %v410
        %v471 = vpack.c.b16 %v415, %v411
        %v472 = vpack.c.b16 %v420, %v416
        %v473 = vpack.c.b16 %v421, %v417
        %v474 = vpack.c.b16 %v422, %v418
        %v475 = vpack.c.b16 %v423, %v419
        %v476 = vpack.c.b16 %v428, %v424
        %v477 = vpack.c.b16 %v429, %v425
        %v478 = vpack.c.b16 %v430, %v426
        %v479 = vpack.c.b16 %v431, %v427
        %v480 = vpack.c.b16 %v436, %v432
        %v481 = vpack.c.b16 %v437, %v433
        %v482 = vpack.c.b16 %v438, %v434
        %v483 = vpack.c.b16 %v439, %v435
        %v484 = vpack.c.b16 %v444, %v440
        %v485 = vpack.c.b16 %v445, %v441
        %v486 = vpack.c.b16 %v446, %v442
        %v487 = vpack.c.b16 %v447, %v443
        %v488 = vpack.c.b16 %v452, %v448
        %v489 = vpack.c.b16 %v453, %v449
        %v490 = vpack.c.b16 %v454, %v450
        %v491 = vpack.c.b16 %v455, %v451
        %v492 = vpack.c.b16 %v460, %v456
        %v493 = vpack.c.b16 %v461, %v457
        %v494 = vpack.c.b16 %v462, %v458
        %v495 = vpack.c.b16 %v463, %v459
        %528 = vmatprep.subr.bf16.mxu0 %v493
        %529 = vmatpush1.bf16.msra.mxu0 %v492
        %530 = vmatprep.subr.bf16.mxu0 %v489
        %531 = vmatpush1.bf16.msra.mxu0 %v488
        %532 = vmatprep.subr.bf16.mxu0 %v485
        %533 = vmatpush1.bf16.msra.mxu0 %v484
        %534 = vmatprep.subr.bf16.mxu0 %v481
        %535 = vmatpush1.bf16.msra.mxu0 %v480
        %536 = vmatprep.subr.bf16.mxu0 %v477
        %537 = vmatpush1.bf16.msra.mxu0 %v476
        %538 = vmatprep.subr.bf16.mxu0 %v473
        %539 = vmatpush1.bf16.msra.mxu0 %v472
        %540 = vmatprep.subr.bf16.mxu0 %v469
        %541 = vmatpush1.bf16.msra.mxu0 %v468
        %542 = vmatprep.subr.bf16.mxu0 %v465
        %543 = vmatpush1.bf16.msra.mxu0 %v464
        %544 = vmatprep.subr.bf16.mxu0 0
        %545 = vmatpush2.bf16.msra.mxu0 0
        %546 = vmatprep.subr.bf16.mxu0 0
        %547 = vmatpush2.bf16.msra.mxu0 0
        %548 = vmatprep.subr.bf16.mxu0 0
        %549 = vmatpush2.bf16.msra.mxu0 0
        %550 = vmatprep.subr.bf16.mxu0 0
        %551 = vmatpush2.bf16.msra.mxu0 0
        %552 = vmatprep.subr.bf16.mxu0 0
        %553 = vmatpush2.bf16.msra.mxu0 0
        %554 = vmatprep.subr.bf16.mxu0 0
        %555 = vmatpush2.bf16.msra.mxu0 0
        %556 = vmatprep.subr.bf16.mxu0 0
        %557 = vmatpush2.bf16.msra.mxu0 0
        %558 = vmatprep.subr.bf16.mxu0 0
        %559 = vmatpush2.bf16.msra.mxu0 0
        %560 = vmatprep.mubr.bf16.mxu0 0
        %561 = vmatmul.mubr.bf16.gmra.mxu0 %v326
        %v562 = vpop.f32.mrf.mxu0
        %v563 = vadd.f32 0.0, %v562
        %v564 = vpop.f32.mrf.mxu0
        %v565 = vadd.f32 0.0, %v564
        %v566 = vpop.f32.mrf.mxu0
        %v567 = vadd.f32 0.0, %v566
        %v568 = vpop.f32.mrf.mxu0
        %v569 = vadd.f32 0.0, %v568
        %570 = vmatprep.mubr.bf16.mxu0 0
        %571 = vmatmul.mubr.bf16.gmra.mxu0 %v327
        %v572 = vpop.f32.mrf.mxu0
        %v573 = vadd.f32 0.0, %v572
        %v574 = vpop.f32.mrf.mxu0
        %v575 = vadd.f32 0.0, %v574
        %v576 = vpop.f32.mrf.mxu0
        %v577 = vadd.f32 0.0, %v576
        %v578 = vpop.f32.mrf.mxu0
        %v579 = vadd.f32 0.0, %v578
        %580 = vmatprep.mubr.bf16.mxu0 0
        %581 = vmatmul.mubr.bf16.gmra.mxu0 %v328
        %v582 = vpop.f32.mrf.mxu0
        %v583 = vadd.f32 0.0, %v582
        %v584 = vpop.f32.mrf.mxu0
        %v585 = vadd.f32 0.0, %v584
        %v586 = vpop.f32.mrf.mxu0
        %v587 = vadd.f32 0.0, %v586
        %v588 = vpop.f32.mrf.mxu0
        %v589 = vadd.f32 0.0, %v588
        %590 = vmatprep.mubr.bf16.mxu0 0
        %591 = vmatmul.mubr.bf16.gmra.mxu0 %v329
        %v592 = vpop.f32.mrf.mxu0
        %v593 = vadd.f32 0.0, %v592
        %v594 = vpop.f32.mrf.mxu0
        %v595 = vadd.f32 0.0, %v594
        %v596 = vpop.f32.mrf.mxu0
        %v597 = vadd.f32 0.0, %v596
        %v598 = vpop.f32.mrf.mxu0
        %v599 = vadd.f32 0.0, %v598
        %600 = vmatprep.mubr.bf16.mxu0 0
        %601 = vmatmul.mubr.bf16.gmra.mxu0 %v330
        %v602 = vpop.f32.mrf.mxu0
        %v603 = vadd.f32 0.0, %v602
        %v604 = vpop.f32.mrf.mxu0
        %v605 = vadd.f32 0.0, %v604
        %v606 = vpop.f32.mrf.mxu0
        %v607 = vadd.f32 0.0, %v606
        %v608 = vpop.f32.mrf.mxu0
        %v609 = vadd.f32 0.0, %v608
        %610 = vmatprep.mubr.bf16.mxu0 0
        %611 = vmatmul.mubr.bf16.gmra.mxu0 %v331
        %v612 = vpop.f32.mrf.mxu0
        %v613 = vadd.f32 0.0, %v612
        %v614 = vpop.f32.mrf.mxu0
        %v615 = vadd.f32 0.0, %v614
        %v616 = vpop.f32.mrf.mxu0
        %v617 = vadd.f32 0.0, %v616
        %v618 = vpop.f32.mrf.mxu0
        %v619 = vadd.f32 0.0, %v618
        %620 = vmatprep.mubr.bf16.mxu0 0
        %621 = vmatmul.mubr.bf16.gmra.mxu0 %v332
        %v622 = vpop.f32.mrf.mxu0
        %v623 = vadd.f32 0.0, %v622
        %v624 = vpop.f32.mrf.mxu0
        %v625 = vadd.f32 0.0, %v624
        %v626 = vpop.f32.mrf.mxu0
        %v627 = vadd.f32 0.0, %v626
        %v628 = vpop.f32.mrf.mxu0
        %v629 = vadd.f32 0.0, %v628
        %630 = vmatprep.mubr.bf16.mxu0 0
        %631 = vmatmul.mubr.bf16.gmra.mxu0 %v333
        %v632 = vpop.f32.mrf.mxu0
        %v633 = vadd.f32 0.0, %v632
        %v634 = vpop.f32.mrf.mxu0
        %v635 = vadd.f32 0.0, %v634
        %v636 = vpop.f32.mrf.mxu0
        %v637 = vadd.f32 0.0, %v636
        %v638 = vpop.f32.mrf.mxu0
        %v639 = vadd.f32 0.0, %v638
        %640 = vmatprep.mubr.bf16.mxu0 0
        %641 = vmatmul.mubr.bf16.gmra.mxu0 %v334
        %v642 = vpop.f32.mrf.mxu0
        %v643 = vadd.f32 0.0, %v642
        %v644 = vpop.f32.mrf.mxu0
        %v645 = vadd.f32 0.0, %v644
        %v646 = vpop.f32.mrf.mxu0
        %v647 = vadd.f32 0.0, %v646
        %v648 = vpop.f32.mrf.mxu0
        %v649 = vadd.f32 0.0, %v648
        %650 = vmatprep.mubr.bf16.mxu0 0
        %651 = vmatmul.mubr.bf16.gmra.mxu0 %v335
        %v652 = vpop.f32.mrf.mxu0
        %v653 = vadd.f32 0.0, %v652
        %v654 = vpop.f32.mrf.mxu0
        %v655 = vadd.f32 0.0, %v654
        %v656 = vpop.f32.mrf.mxu0
        %v657 = vadd.f32 0.0, %v656
        %v658 = vpop.f32.mrf.mxu0
        %v659 = vadd.f32 0.0, %v658
        %660 = vdwg.mxu0
        %661 = vmatprep.subr.bf16.mxu0 %v495
        %662 = vmatpush1.bf16.msra.mxu0 %v494
        %663 = vmatprep.subr.bf16.mxu0 %v491
        %664 = vmatpush1.bf16.msra.mxu0 %v490
        %665 = vmatprep.subr.bf16.mxu0 %v487
        %666 = vmatpush1.bf16.msra.mxu0 %v486
        %667 = vmatprep.subr.bf16.mxu0 %v483
        %668 = vmatpush1.bf16.msra.mxu0 %v482
        %669 = vmatprep.subr.bf16.mxu0 %v479
        %670 = vmatpush1.bf16.msra.mxu0 %v478
        %671 = vmatprep.subr.bf16.mxu0 %v475
        %672 = vmatpush1.bf16.msra.mxu0 %v474
        %673 = vmatprep.subr.bf16.mxu0 %v471
        %674 = vmatpush1.bf16.msra.mxu0 %v470
        %675 = vmatprep.subr.bf16.mxu0 %v467
        %676 = vmatpush1.bf16.msra.mxu0 %v466
        %677 = vmatprep.subr.bf16.mxu0 0
        %678 = vmatpush2.bf16.msra.mxu0 0
        %679 = vmatprep.subr.bf16.mxu0 0
        %680 = vmatpush2.bf16.msra.mxu0 0
        %681 = vmatprep.subr.bf16.mxu0 0
        %682 = vmatpush2.bf16.msra.mxu0 0
        %683 = vmatprep.subr.bf16.mxu0 0
        %684 = vmatpush2.bf16.msra.mxu0 0
        %685 = vmatprep.subr.bf16.mxu0 0
        %686 = vmatpush2.bf16.msra.mxu0 0
        %687 = vmatprep.subr.bf16.mxu0 0
        %688 = vmatpush2.bf16.msra.mxu0 0
        %689 = vmatprep.subr.bf16.mxu0 0
        %690 = vmatpush2.bf16.msra.mxu0 0
        %691 = vmatprep.subr.bf16.mxu0 0
        %692 = vmatpush2.bf16.msra.mxu0 0
        %693 = vmatprep.mubr.bf16.mxu0 0
        %694 = vmatmul.mubr.bf16.gmra.mxu0 %v326
        %v695 = vpop.f32.mrf.mxu0
        %v696 = vadd.f32 0.0, %v695
        %v697 = vpop.f32.mrf.mxu0
        %v698 = vadd.f32 0.0, %v697
        %v699 = vpop.f32.mrf.mxu0
        %v700 = vadd.f32 0.0, %v699
        %v701 = vpop.f32.mrf.mxu0
        %v702 = vadd.f32 0.0, %v701
        %703 = vmatprep.mubr.bf16.mxu0 0
        %704 = vmatmul.mubr.bf16.gmra.mxu0 %v327
        %v705 = vpop.f32.mrf.mxu0
        %v706 = vadd.f32 0.0, %v705
        %v707 = vpop.f32.mrf.mxu0
        %v708 = vadd.f32 0.0, %v707
        %v709 = vpop.f32.mrf.mxu0
        %v710 = vadd.f32 0.0, %v709
        %v711 = vpop.f32.mrf.mxu0
        %v712 = vadd.f32 0.0, %v711
        %713 = vmatprep.mubr.bf16.mxu0 0
        %714 = vmatmul.mubr.bf16.gmra.mxu0 %v328
        %v715 = vpop.f32.mrf.mxu0
        %v716 = vadd.f32 0.0, %v715
        %v717 = vpop.f32.mrf.mxu0
        %v718 = vadd.f32 0.0, %v717
        %v719 = vpop.f32.mrf.mxu0
        %v720 = vadd.f32 0.0, %v719
        %v721 = vpop.f32.mrf.mxu0
        %v722 = vadd.f32 0.0, %v721
        %723 = vmatprep.mubr.bf16.mxu0 0
        %724 = vmatmul.mubr.bf16.gmra.mxu0 %v329
        %v725 = vpop.f32.mrf.mxu0
        %v726 = vadd.f32 0.0, %v725
        %v727 = vpop.f32.mrf.mxu0
        %v728 = vadd.f32 0.0, %v727
        %v729 = vpop.f32.mrf.mxu0
        %v730 = vadd.f32 0.0, %v729
        %v731 = vpop.f32.mrf.mxu0
        %v732 = vadd.f32 0.0, %v731
        %733 = vmatprep.mubr.bf16.mxu0 0
        %734 = vmatmul.mubr.bf16.gmra.mxu0 %v330
        %v735 = vpop.f32.mrf.mxu0
        %v736 = vadd.f32 0.0, %v735
        %v737 = vpop.f32.mrf.mxu0
        %v738 = vadd.f32 0.0, %v737
        %v739 = vpop.f32.mrf.mxu0
        %v740 = vadd.f32 0.0, %v739
        %v741 = vpop.f32.mrf.mxu0
        %v742 = vadd.f32 0.0, %v741
        %743 = vmatprep.mubr.bf16.mxu0 0
        %744 = vmatmul.mubr.bf16.gmra.mxu0 %v331
        %v745 = vpop.f32.mrf.mxu0
        %v746 = vadd.f32 0.0, %v745
        %v747 = vpop.f32.mrf.mxu0
        %v748 = vadd.f32 0.0, %v747
        %v749 = vpop.f32.mrf.mxu0
        %v750 = vadd.f32 0.0, %v749
        %v751 = vpop.f32.mrf.mxu0
        %v752 = vadd.f32 0.0, %v751
        %753 = vmatprep.mubr.bf16.mxu0 0
        %754 = vmatmul.mubr.bf16.gmra.mxu0 %v332
        %v755 = vpop.f32.mrf.mxu0
        %v756 = vadd.f32 0.0, %v755
        %v757 = vpop.f32.mrf.mxu0
        %v758 = vadd.f32 0.0, %v757
        %v759 = vpop.f32.mrf.mxu0
        %v760 = vadd.f32 0.0, %v759
        %v761 = vpop.f32.mrf.mxu0
        %v762 = vadd.f32 0.0, %v761
        %763 = vmatprep.mubr.bf16.mxu0 0
        %764 = vmatmul.mubr.bf16.gmra.mxu0 %v333
        %v765 = vpop.f32.mrf.mxu0
        %v766 = vadd.f32 0.0, %v765
        %v767 = vpop.f32.mrf.mxu0
        %v768 = vadd.f32 0.0, %v767
        %v769 = vpop.f32.mrf.mxu0
        %v770 = vadd.f32 0.0, %v769
        %v771 = vpop.f32.mrf.mxu0
        %v772 = vadd.f32 0.0, %v771
        %773 = vmatprep.mubr.bf16.mxu0 0
        %774 = vmatmul.mubr.bf16.gmra.mxu0 %v334
        %v775 = vpop.f32.mrf.mxu0
        %v776 = vadd.f32 0.0, %v775
        %v777 = vpop.f32.mrf.mxu0
        %v778 = vadd.f32 0.0, %v777
        %v779 = vpop.f32.mrf.mxu0
        %v780 = vadd.f32 0.0, %v779
        %v781 = vpop.f32.mrf.mxu0
        %v782 = vadd.f32 0.0, %v781
        %783 = vmatprep.mubr.bf16.mxu0 0
        %784 = vmatmul.mubr.bf16.gmra.mxu0 %v335
        %v785 = vpop.f32.mrf.mxu0
        %v786 = vadd.f32 0.0, %v785
        %v787 = vpop.f32.mrf.mxu0
        %v788 = vadd.f32 0.0, %v787
        %v789 = vpop.f32.mrf.mxu0
        %v790 = vadd.f32 0.0, %v789
        %v791 = vpop.f32.mrf.mxu0
        %v792 = vadd.f32 0.0, %v791
        %793 = vdwg.mxu0
        %v794 = vpack.c.bf16 %v567, %v563
        %v795 = vpack.c.bf16 %v569, %v565
        %v796 = vpack.c.bf16 %v700, %v696
        %v797 = vpack.c.bf16 %v702, %v698
        %v798 = vpack.c.bf16 %v577, %v573
        %v799 = vpack.c.bf16 %v579, %v575
        %v800 = vpack.c.bf16 %v710, %v706
        %v801 = vpack.c.bf16 %v712, %v708
        %v802 = vpack.c.bf16 %v587, %v583
        %v803 = vpack.c.bf16 %v589, %v585
        %v804 = vpack.c.bf16 %v720, %v716
        %v805 = vpack.c.bf16 %v722, %v718
        %v806 = vpack.c.bf16 %v597, %v593
        %v807 = vpack.c.bf16 %v599, %v595
        %v808 = vpack.c.bf16 %v730, %v726
        %v809 = vpack.c.bf16 %v732, %v728
        %v810 = vpack.c.bf16 %v607, %v603
        %v811 = vpack.c.bf16 %v609, %v605
        %v812 = vpack.c.bf16 %v740, %v736
        %v813 = vpack.c.bf16 %v742, %v738
        %v814 = vpack.c.bf16 %v617, %v613
        %v815 = vpack.c.bf16 %v619, %v615
        %v816 = vpack.c.bf16 %v750, %v746
        %v817 = vpack.c.bf16 %v752, %v748
        %v818 = vpack.c.bf16 %v627, %v623
        %v819 = vpack.c.bf16 %v629, %v625
        %v820 = vpack.c.bf16 %v760, %v756
        %v821 = vpack.c.bf16 %v762, %v758
        %v822 = vpack.c.bf16 %v637, %v633
        %v823 = vpack.c.bf16 %v639, %v635
        %v824 = vpack.c.bf16 %v770, %v766
        %v825 = vpack.c.bf16 %v772, %v768
        %v826 = vpack.c.bf16 %v647, %v643
        %v827 = vpack.c.bf16 %v649, %v645
        %v828 = vpack.c.bf16 %v780, %v776
        %v829 = vpack.c.bf16 %v782, %v778
        %v830 = vpack.c.bf16 %v657, %v653
        %v831 = vpack.c.bf16 %v659, %v655
        %v832 = vpack.c.bf16 %v790, %v786
        %v833 = vpack.c.bf16 %v792, %v788
        %v834 = vld [vmem:[#allocation7] sm:$0xf]
        %v837 = vunpack.c.l.s4 1966171168
        %v838 = vunpack.c.0.s8 %v837
        %v839 = vlaneseq
        %v840 = vshrl.u32 %v839, 7
        %v841 = vsub.s32 %v838, %v840
        %v842 = vrot.slane %v834, %v841
        %v843 = vcombine.high %v842, %v842
        %v845 = vunpack.c.l.s4 1966171168
        %v846 = vunpack.c.0.s8 %v845
        %v847 = vlaneseq
        %v848 = vshrl.u32 %v847, 7
        %v849 = vsub.s32 %v846, %v848
        %v850 = vrot.slane %v842, %v849
        %v852 = vunpack.c.l.s4 1966171168
        %v853 = vunpack.c.0.s8 %v852
        %v854 = vlaneseq
        %v855 = vshrl.u32 %v854, 7
        %v856 = vsub.s32 %v853, %v855
        %v857 = vrot.slane %v843, %v856
        %v858 = vcombine.high %v850, %v850
        %v859 = vcombine.high %v857, %v857
        %v861 = vpack.i.b16 %v850, %v850
        %v863 = vlaneseq
        %v864 = vshrl.u32 %v863, 7
        %v865 = vsub.s32 0, %v864
        %v866 = vrot.slane %v861, %v865
        %v868 = vpack.i.b16 %v857, %v857
        %v870 = vlaneseq
        %v871 = vshrl.u32 %v870, 7
        %v872 = vsub.s32 0, %v871
        %v873 = vrot.slane %v868, %v872
        %v875 = vpack.i.b16 %v858, %v858
        %v877 = vlaneseq
        %v878 = vshrl.u32 %v877, 7
        %v879 = vsub.s32 0, %v878
        %v880 = vrot.slane %v875, %v879
        %v882 = vpack.i.b16 %v859, %v859
        %v884 = vlaneseq
        %v885 = vshrl.u32 %v884, 7
        %v886 = vsub.s32 0, %v885
        %v887 = vrot.slane %v882, %v886
        %v888 = vadd.bf16 %v794, %v866
        %v889 = vadd.bf16 %v795, %v873
        %v890 = vadd.bf16 %v796, %v880
        %v891 = vadd.bf16 %v797, %v887
        %v892 = vadd.bf16 %v798, %v866
        %v893 = vadd.bf16 %v799, %v873
        %v894 = vadd.bf16 %v800, %v880
        %v895 = vadd.bf16 %v801, %v887
        %v896 = vadd.bf16 %v802, %v866
        %v897 = vadd.bf16 %v803, %v873
        %v898 = vadd.bf16 %v804, %v880
        %v899 = vadd.bf16 %v805, %v887
        %v900 = vadd.bf16 %v806, %v866
        %v901 = vadd.bf16 %v807, %v873
        %v902 = vadd.bf16 %v808, %v880
        %v903 = vadd.bf16 %v809, %v887
        %v904 = vadd.bf16 %v810, %v866
        %v905 = vadd.bf16 %v811, %v873
        %v906 = vadd.bf16 %v812, %v880
        %v907 = vadd.bf16 %v813, %v887
        %v908 = vadd.bf16 %v814, %v866
        %v909 = vadd.bf16 %v815, %v873
        %v910 = vadd.bf16 %v816, %v880
        %v911 = vadd.bf16 %v817, %v887
        %v912 = vadd.bf16 %v818, %v866
        %v913 = vadd.bf16 %v819, %v873
        %v914 = vadd.bf16 %v820, %v880
        %v915 = vadd.bf16 %v821, %v887
        %v916 = vadd.bf16 %v822, %v866
        %v917 = vadd.bf16 %v823, %v873
        %v918 = vadd.bf16 %v824, %v880
        %v919 = vadd.bf16 %v825, %v887
        %v920 = vadd.bf16 %v826, %v866
        %v921 = vadd.bf16 %v827, %v873
        %v922 = vadd.bf16 %v828, %v880
        %v923 = vadd.bf16 %v829, %v887
        %v924 = vadd.bf16 %v830, %v866
        %v925 = vadd.bf16 %v831, %v873
        %v926 = vadd.bf16 %v832, %v880
        %v927 = vadd.bf16 %v833, %v887
        %v928 = vmul.bf16 %v888, 1056980736
        %v929 = vmul.bf16 %v889, 1056980736
        %v930 = vmul.bf16 %v890, 1056980736
        %v931 = vmul.bf16 %v891, 1056980736
        %v932 = vmul.bf16 %v892, 1056980736
        %v933 = vmul.bf16 %v893, 1056980736
        %v934 = vmul.bf16 %v894, 1056980736
        %v935 = vmul.bf16 %v895, 1056980736
        %v936 = vmul.bf16 %v896, 1056980736
        %v937 = vmul.bf16 %v897, 1056980736
        %v938 = vmul.bf16 %v898, 1056980736
        %v939 = vmul.bf16 %v899, 1056980736
        %v940 = vmul.bf16 %v900, 1056980736
        %v941 = vmul.bf16 %v901, 1056980736
        %v942 = vmul.bf16 %v902, 1056980736
        %v943 = vmul.bf16 %v903, 1056980736
        %v944 = vmul.bf16 %v904, 1056980736
        %v945 = vmul.bf16 %v905, 1056980736
        %v946 = vmul.bf16 %v906, 1056980736
        %v947 = vmul.bf16 %v907, 1056980736
        %v948 = vmul.bf16 %v908, 1056980736
        %v949 = vmul.bf16 %v909, 1056980736
        %v950 = vmul.bf16 %v910, 1056980736
        %v951 = vmul.bf16 %v911, 1056980736
        %v952 = vmul.bf16 %v912, 1056980736
        %v953 = vmul.bf16 %v913, 1056980736
        %v954 = vmul.bf16 %v914, 1056980736
        %v955 = vmul.bf16 %v915, 1056980736
        %v956 = vmul.bf16 %v916, 1056980736
        %v957 = vmul.bf16 %v917, 1056980736
        %v958 = vmul.bf16 %v918, 1056980736
        %v959 = vmul.bf16 %v919, 1056980736
        %v960 = vmul.bf16 %v920, 1056980736
        %v961 = vmul.bf16 %v921, 1056980736
        %v962 = vmul.bf16 %v922, 1056980736
        %v963 = vmul.bf16 %v923, 1056980736
        %v964 = vmul.bf16 %v924, 1056980736
        %v965 = vmul.bf16 %v925, 1056980736
        %v966 = vmul.bf16 %v926, 1056980736
        %v967 = vmul.bf16 %v927, 1056980736
        %v968 = vmul.bf16 %v888, %v888
        %v969 = vmul.bf16 %v889, %v889
        %v970 = vmul.bf16 %v890, %v890
        %v971 = vmul.bf16 %v891, %v891
        %v972 = vmul.bf16 %v892, %v892
        %v973 = vmul.bf16 %v893, %v893
        %v974 = vmul.bf16 %v894, %v894
        %v975 = vmul.bf16 %v895, %v895
        %v976 = vmul.bf16 %v896, %v896
        %v977 = vmul.bf16 %v897, %v897
        %v978 = vmul.bf16 %v898, %v898
        %v979 = vmul.bf16 %v899, %v899
        %v980 = vmul.bf16 %v900, %v900
        %v981 = vmul.bf16 %v901, %v901
        %v982 = vmul.bf16 %v902, %v902
        %v983 = vmul.bf16 %v903, %v903
        %v984 = vmul.bf16 %v904, %v904
        %v985 = vmul.bf16 %v905, %v905
        %v986 = vmul.bf16 %v906, %v906
        %v987 = vmul.bf16 %v907, %v907
        %v988 = vmul.bf16 %v908, %v908
        %v989 = vmul.bf16 %v909, %v909
        %v990 = vmul.bf16 %v910, %v910
        %v991 = vmul.bf16 %v911, %v911
        %v992 = vmul.bf16 %v912, %v912
        %v993 = vmul.bf16 %v913, %v913
        %v994 = vmul.bf16 %v914, %v914
        %v995 = vmul.bf16 %v915, %v915
        %v996 = vmul.bf16 %v916, %v916
        %v997 = vmul.bf16 %v917, %v917
        %v998 = vmul.bf16 %v918, %v918
        %v999 = vmul.bf16 %v919, %v919
        %v1000 = vmul.bf16 %v920, %v920
        %v1001 = vmul.bf16 %v921, %v921
        %v1002 = vmul.bf16 %v922, %v922
        %v1003 = vmul.bf16 %v923, %v923
        %v1004 = vmul.bf16 %v924, %v924
        %v1005 = vmul.bf16 %v925, %v925
        %v1006 = vmul.bf16 %v926, %v926
        %v1007 = vmul.bf16 %v927, %v927
        %v1008 = vmul.bf16 %v968, %v888
        %v1009 = vmul.bf16 %v969, %v889
        %v1010 = vmul.bf16 %v970, %v890
        %v1011 = vmul.bf16 %v971, %v891
        %v1012 = vmul.bf16 %v972, %v892
        %v1013 = vmul.bf16 %v973, %v893
        %v1014 = vmul.bf16 %v974, %v894
        %v1015 = vmul.bf16 %v975, %v895
        %v1016 = vmul.bf16 %v976, %v896
        %v1017 = vmul.bf16 %v977, %v897
        %v1018 = vmul.bf16 %v978, %v898
        %v1019 = vmul.bf16 %v979, %v899
        %v1020 = vmul.bf16 %v980, %v900
        %v1021 = vmul.bf16 %v981, %v901
        %v1022 = vmul.bf16 %v982, %v902
        %v1023 = vmul.bf16 %v983, %v903
        %v1024 = vmul.bf16 %v984, %v904
        %v1025 = vmul.bf16 %v985, %v905
        %v1026 = vmul.bf16 %v986, %v906
        %v1027 = vmul.bf16 %v987, %v907
        %v1028 = vmul.bf16 %v988, %v908
        %v1029 = vmul.bf16 %v989, %v909
        %v1030 = vmul.bf16 %v990, %v910
        %v1031 = vmul.bf16 %v991, %v911
        %v1032 = vmul.bf16 %v992, %v912
        %v1033 = vmul.bf16 %v993, %v913
        %v1034 = vmul.bf16 %v994, %v914
        %v1035 = vmul.bf16 %v995, %v915
        %v1036 = vmul.bf16 %v996, %v916
        %v1037 = vmul.bf16 %v997, %v917
        %v1038 = vmul.bf16 %v998, %v918
        %v1039 = vmul.bf16 %v999, %v919
        %v1040 = vmul.bf16 %v1000, %v920
        %v1041 = vmul.bf16 %v1001, %v921
        %v1042 = vmul.bf16 %v1002, %v922
        %v1043 = vmul.bf16 %v1003, %v923
        %v1044 = vmul.bf16 %v1004, %v924
        %v1045 = vmul.bf16 %v1005, %v925
        %v1046 = vmul.bf16 %v1006, %v926
        %v1047 = vmul.bf16 %v1007, %v927
        %v1048 = vmul.bf16 %v1008, 1027030327
        %v1049 = vmul.bf16 %v1009, 1027030327
        %v1050 = vmul.bf16 %v1010, 1027030327
        %v1051 = vmul.bf16 %v1011, 1027030327
        %v1052 = vmul.bf16 %v1012, 1027030327
        %v1053 = vmul.bf16 %v1013, 1027030327
        %v1054 = vmul.bf16 %v1014, 1027030327
        %v1055 = vmul.bf16 %v1015, 1027030327
        %v1056 = vmul.bf16 %v1016, 1027030327
        %v1057 = vmul.bf16 %v1017, 1027030327
        %v1058 = vmul.bf16 %v1018, 1027030327
        %v1059 = vmul.bf16 %v1019, 1027030327
        %v1060 = vmul.bf16 %v1020, 1027030327
        %v1061 = vmul.bf16 %v1021, 1027030327
        %v1062 = vmul.bf16 %v1022, 1027030327
        %v1063 = vmul.bf16 %v1023, 1027030327
        %v1064 = vmul.bf16 %v1024, 1027030327
        %v1065 = vmul.bf16 %v1025, 1027030327
        %v1066 = vmul.bf16 %v1026, 1027030327
        %v1067 = vmul.bf16 %v1027, 1027030327
        %v1068 = vmul.bf16 %v1028, 1027030327
        %v1069 = vmul.bf16 %v1029, 1027030327
        %v1070 = vmul.bf16 %v1030, 1027030327
        %v1071 = vmul.bf16 %v1031, 1027030327
        %v1072 = vmul.bf16 %v1032, 1027030327
        %v1073 = vmul.bf16 %v1033, 1027030327
        %v1074 = vmul.bf16 %v1034, 1027030327
        %v1075 = vmul.bf16 %v1035, 1027030327
        %v1076 = vmul.bf16 %v1036, 1027030327
        %v1077 = vmul.bf16 %v1037, 1027030327
        %v1078 = vmul.bf16 %v1038, 1027030327
        %v1079 = vmul.bf16 %v1039, 1027030327
        %v1080 = vmul.bf16 %v1040, 1027030327
        %v1081 = vmul.bf16 %v1041, 1027030327
        %v1082 = vmul.bf16 %v1042, 1027030327
        %v1083 = vmul.bf16 %v1043, 1027030327
        %v1084 = vmul.bf16 %v1044, 1027030327
        %v1085 = vmul.bf16 %v1045, 1027030327
        %v1086 = vmul.bf16 %v1046, 1027030327
        %v1087 = vmul.bf16 %v1047, 1027030327
        %v1088 = vadd.bf16 %v888, %v1048
        %v1089 = vadd.bf16 %v889, %v1049
        %v1090 = vadd.bf16 %v890, %v1050
        %v1091 = vadd.bf16 %v891, %v1051
        %v1092 = vadd.bf16 %v892, %v1052
        %v1093 = vadd.bf16 %v893, %v1053
        %v1094 = vadd.bf16 %v894, %v1054
        %v1095 = vadd.bf16 %v895, %v1055
        %v1096 = vadd.bf16 %v896, %v1056
        %v1097 = vadd.bf16 %v897, %v1057
        %v1098 = vadd.bf16 %v898, %v1058
        %v1099 = vadd.bf16 %v899, %v1059
        %v1100 = vadd.bf16 %v900, %v1060
        %v1101 = vadd.bf16 %v901, %v1061
        %v1102 = vadd.bf16 %v902, %v1062
        %v1103 = vadd.bf16 %v903, %v1063
        %v1104 = vadd.bf16 %v904, %v1064
        %v1105 = vadd.bf16 %v905, %v1065
        %v1106 = vadd.bf16 %v906, %v1066
        %v1107 = vadd.bf16 %v907, %v1067
        %v1108 = vadd.bf16 %v908, %v1068
        %v1109 = vadd.bf16 %v909, %v1069
        %v1110 = vadd.bf16 %v910, %v1070
        %v1111 = vadd.bf16 %v911, %v1071
        %v1112 = vadd.bf16 %v912, %v1072
        %v1113 = vadd.bf16 %v913, %v1073
        %v1114 = vadd.bf16 %v914, %v1074
        %v1115 = vadd.bf16 %v915, %v1075
        %v1116 = vadd.bf16 %v916, %v1076
        %v1117 = vadd.bf16 %v917, %v1077
        %v1118 = vadd.bf16 %v918, %v1078
        %v1119 = vadd.bf16 %v919, %v1079
        %v1120 = vadd.bf16 %v920, %v1080
        %v1121 = vadd.bf16 %v921, %v1081
        %v1122 = vadd.bf16 %v922, %v1082
        %v1123 = vadd.bf16 %v923, %v1083
        %v1124 = vadd.bf16 %v924, %v1084
        %v1125 = vadd.bf16 %v925, %v1085
        %v1126 = vadd.bf16 %v926, %v1086
        %v1127 = vadd.bf16 %v927, %v1087
        %v1128 = vmul.bf16 %v1088, 1061961548
        %v1129 = vmul.bf16 %v1089, 1061961548
        %v1130 = vmul.bf16 %v1090, 1061961548
        %v1131 = vmul.bf16 %v1091, 1061961548
        %v1132 = vmul.bf16 %v1092, 1061961548
        %v1133 = vmul.bf16 %v1093, 1061961548
        %v1134 = vmul.bf16 %v1094, 1061961548
        %v1135 = vmul.bf16 %v1095, 1061961548
        %v1136 = vmul.bf16 %v1096, 1061961548
        %v1137 = vmul.bf16 %v1097, 1061961548
        %v1138 = vmul.bf16 %v1098, 1061961548
        %v1139 = vmul.bf16 %v1099, 1061961548
        %v1140 = vmul.bf16 %v1100, 1061961548
        %v1141 = vmul.bf16 %v1101, 1061961548
        %v1142 = vmul.bf16 %v1102, 1061961548
        %v1143 = vmul.bf16 %v1103, 1061961548
        %v1144 = vmul.bf16 %v1104, 1061961548
        %v1145 = vmul.bf16 %v1105, 1061961548
        %v1146 = vmul.bf16 %v1106, 1061961548
        %v1147 = vmul.bf16 %v1107, 1061961548
        %v1148 = vmul.bf16 %v1108, 1061961548
        %v1149 = vmul.bf16 %v1109, 1061961548
        %v1150 = vmul.bf16 %v1110, 1061961548
        %v1151 = vmul.bf16 %v1111, 1061961548
        %v1152 = vmul.bf16 %v1112, 1061961548
        %v1153 = vmul.bf16 %v1113, 1061961548
        %v1154 = vmul.bf16 %v1114, 1061961548
        %v1155 = vmul.bf16 %v1115, 1061961548
        %v1156 = vmul.bf16 %v1116, 1061961548
        %v1157 = vmul.bf16 %v1117, 1061961548
        %v1158 = vmul.bf16 %v1118, 1061961548
        %v1159 = vmul.bf16 %v1119, 1061961548
        %v1160 = vmul.bf16 %v1120, 1061961548
        %v1161 = vmul.bf16 %v1121, 1061961548
        %v1162 = vmul.bf16 %v1122, 1061961548
        %v1163 = vmul.bf16 %v1123, 1061961548
        %v1164 = vmul.bf16 %v1124, 1061961548
        %v1165 = vmul.bf16 %v1125, 1061961548
        %v1166 = vmul.bf16 %v1126, 1061961548
        %v1167 = vmul.bf16 %v1127, 1061961548
        %v1168 = vtanh.bf16.pop %v1128
        %v1169 = vtanh.bf16.pop %v1129
        %v1170 = vtanh.bf16.pop %v1130
        %v1171 = vtanh.bf16.pop %v1131
        %v1172 = vtanh.bf16.pop %v1132
        %v1173 = vtanh.bf16.pop %v1133
        %v1174 = vtanh.bf16.pop %v1134
        %v1175 = vtanh.bf16.pop %v1135
        %v1176 = vtanh.bf16.pop %v1136
        %v1177 = vtanh.bf16.pop %v1137
        %v1178 = vtanh.bf16.pop %v1138
        %v1179 = vtanh.bf16.pop %v1139
        %v1180 = vtanh.bf16.pop %v1140
        %v1181 = vtanh.bf16.pop %v1141
        %v1182 = vtanh.bf16.pop %v1142
        %v1183 = vtanh.bf16.pop %v1143
        %v1184 = vtanh.bf16.pop %v1144
        %v1185 = vtanh.bf16.pop %v1145
        %v1186 = vtanh.bf16.pop %v1146
        %v1187 = vtanh.bf16.pop %v1147
        %v1188 = vtanh.bf16.pop %v1148
        %v1189 = vtanh.bf16.pop %v1149
        %v1190 = vtanh.bf16.pop %v1150
        %v1191 = vtanh.bf16.pop %v1151
        %v1192 = vtanh.bf16.pop %v1152
        %v1193 = vtanh.bf16.pop %v1153
        %v1194 = vtanh.bf16.pop %v1154
        %v1195 = vtanh.bf16.pop %v1155
        %v1196 = vtanh.bf16.pop %v1156
        %v1197 = vtanh.bf16.pop %v1157
        %v1198 = vtanh.bf16.pop %v1158
        %v1199 = vtanh.bf16.pop %v1159
        %v1200 = vtanh.bf16.pop %v1160
        %v1201 = vtanh.bf16.pop %v1161
        %v1202 = vtanh.bf16.pop %v1162
        %v1203 = vtanh.bf16.pop %v1163
        %v1204 = vtanh.bf16.pop %v1164
        %v1205 = vtanh.bf16.pop %v1165
        %v1206 = vtanh.bf16.pop %v1166
        %v1207 = vtanh.bf16.pop %v1167
        %v1208 = vadd.bf16 %v1168, 1065369472
        %v1209 = vadd.bf16 %v1169, 1065369472
        %v1210 = vadd.bf16 %v1170, 1065369472
        %v1211 = vadd.bf16 %v1171, 1065369472
        %v1212 = vadd.bf16 %v1172, 1065369472
        %v1213 = vadd.bf16 %v1173, 1065369472
        %v1214 = vadd.bf16 %v1174, 1065369472
        %v1215 = vadd.bf16 %v1175, 1065369472
        %v1216 = vadd.bf16 %v1176, 1065369472
        %v1217 = vadd.bf16 %v1177, 1065369472
        %v1218 = vadd.bf16 %v1178, 1065369472
        %v1219 = vadd.bf16 %v1179, 1065369472
        %v1220 = vadd.bf16 %v1180, 1065369472
        %v1221 = vadd.bf16 %v1181, 1065369472
        %v1222 = vadd.bf16 %v1182, 1065369472
        %v1223 = vadd.bf16 %v1183, 1065369472
        %v1224 = vadd.bf16 %v1184, 1065369472
        %v1225 = vadd.bf16 %v1185, 1065369472
        %v1226 = vadd.bf16 %v1186, 1065369472
        %v1227 = vadd.bf16 %v1187, 1065369472
        %v1228 = vadd.bf16 %v1188, 1065369472
        %v1229 = vadd.bf16 %v1189, 1065369472
        %v1230 = vadd.bf16 %v1190, 1065369472
        %v1231 = vadd.bf16 %v1191, 1065369472
        %v1232 = vadd.bf16 %v1192, 1065369472
        %v1233 = vadd.bf16 %v1193, 1065369472
        %v1234 = vadd.bf16 %v1194, 1065369472
        %v1235 = vadd.bf16 %v1195, 1065369472
        %v1236 = vadd.bf16 %v1196, 1065369472
        %v1237 = vadd.bf16 %v1197, 1065369472
        %v1238 = vadd.bf16 %v1198, 1065369472
        %v1239 = vadd.bf16 %v1199, 1065369472
        %v1240 = vadd.bf16 %v1200, 1065369472
        %v1241 = vadd.bf16 %v1201, 1065369472
        %v1242 = vadd.bf16 %v1202, 1065369472
        %v1243 = vadd.bf16 %v1203, 1065369472
        %v1244 = vadd.bf16 %v1204, 1065369472
        %v1245 = vadd.bf16 %v1205, 1065369472
        %v1246 = vadd.bf16 %v1206, 1065369472
        %v1247 = vadd.bf16 %v1207, 1065369472
        %v1248 = vmul.bf16 %v928, %v1208
        %v1249 = vmul.bf16 %v929, %v1209
        %v1250 = vmul.bf16 %v930, %v1210
        %v1251 = vmul.bf16 %v931, %v1211
        %v1252 = vmul.bf16 %v932, %v1212
        %v1253 = vmul.bf16 %v933, %v1213
        %v1254 = vmul.bf16 %v934, %v1214
        %v1255 = vmul.bf16 %v935, %v1215
        %v1256 = vmul.bf16 %v936, %v1216
        %v1257 = vmul.bf16 %v937, %v1217
        %v1258 = vmul.bf16 %v938, %v1218
        %v1259 = vmul.bf16 %v939, %v1219
        %v1260 = vmul.bf16 %v940, %v1220
        %v1261 = vmul.bf16 %v941, %v1221
        %v1262 = vmul.bf16 %v942, %v1222
        %v1263 = vmul.bf16 %v943, %v1223
        %v1264 = vmul.bf16 %v944, %v1224
        %v1265 = vmul.bf16 %v945, %v1225
        %v1266 = vmul.bf16 %v946, %v1226
        %v1267 = vmul.bf16 %v947, %v1227
        %v1268 = vmul.bf16 %v948, %v1228
        %v1269 = vmul.bf16 %v949, %v1229
        %v1270 = vmul.bf16 %v950, %v1230
        %v1271 = vmul.bf16 %v951, %v1231
        %v1272 = vmul.bf16 %v952, %v1232
        %v1273 = vmul.bf16 %v953, %v1233
        %v1274 = vmul.bf16 %v954, %v1234
        %v1275 = vmul.bf16 %v955, %v1235
        %v1276 = vmul.bf16 %v956, %v1236
        %v1277 = vmul.bf16 %v957, %v1237
        %v1278 = vmul.bf16 %v958, %v1238
        %v1279 = vmul.bf16 %v959, %v1239
        %v1280 = vmul.bf16 %v960, %v1240
        %v1281 = vmul.bf16 %v961, %v1241
        %v1282 = vmul.bf16 %v962, %v1242
        %v1283 = vmul.bf16 %v963, %v1243
        %v1284 = vmul.bf16 %v964, %v1244
        %v1285 = vmul.bf16 %v965, %v1245
        %v1286 = vmul.bf16 %v966, %v1246
        %v1287 = vmul.bf16 %v967, %v1247
        %v1288 = vld [vmem:[#allocation8] sm:$0xf]
        %v1289 = vld [vmem:[#allocation8 + $0x4] sm:$0xf]
        %v1290 = vld [vmem:[#allocation8 + $0x8] sm:$0xf]
        %v1291 = vld [vmem:[#allocation8 + $0xc] sm:$0xf]
        %v1292 = vld [vmem:[#allocation8 + $0x10] sm:$0xf]
        %v1293 = vld [vmem:[#allocation8 + $0x14] sm:$0xf]
        %v1294 = vld [vmem:[#allocation8 + $0x18] sm:$0xf]
        %v1295 = vld [vmem:[#allocation8 + $0x1c] sm:$0xf]
        %v1296 = vld [vmem:[#allocation8 + $0x20] sm:$0xf]
        %v1297 = vld [vmem:[#allocation8 + $0x24] sm:$0xf]
        %v1298 = vld [vmem:[#allocation8 + $0x28] sm:$0xf]
        %v1299 = vld [vmem:[#allocation8 + $0x2c] sm:$0xf]
        %v1300 = vld [vmem:[#allocation8 + $0x30] sm:$0xf]
        %v1301 = vld [vmem:[#allocation8 + $0x34] sm:$0xf]
        %v1302 = vld [vmem:[#allocation8 + $0x38] sm:$0xf]
        %v1303 = vld [vmem:[#allocation8 + $0x3c] sm:$0xf]
        %v1304 = vld [vmem:[#allocation8 + $0x40] sm:$0xf]
        %v1305 = vld [vmem:[#allocation8 + $0x44] sm:$0xf]
        %v1306 = vld [vmem:[#allocation8 + $0x48] sm:$0xf]
        %v1307 = vld [vmem:[#allocation8 + $0x4c] sm:$0xf]
        %v1308 = vld [vmem:[#allocation8 + $0x50] sm:$0xf]
        %v1309 = vld [vmem:[#allocation8 + $0x54] sm:$0xf]
        %v1310 = vld [vmem:[#allocation8 + $0x58] sm:$0xf]
        %v1311 = vld [vmem:[#allocation8 + $0x5c] sm:$0xf]
        %v1312 = vld [vmem:[#allocation8 + $0x60] sm:$0xf]
        %v1313 = vld [vmem:[#allocation8 + $0x64] sm:$0xf]
        %v1314 = vld [vmem:[#allocation8 + $0x68] sm:$0xf]
        %v1315 = vld [vmem:[#allocation8 + $0x6c] sm:$0xf]
        %v1316 = vld [vmem:[#allocation8 + $0x70] sm:$0xf]
        %v1317 = vld [vmem:[#allocation8 + $0x74] sm:$0xf]
        %v1318 = vld [vmem:[#allocation8 + $0x78] sm:$0xf]
        %v1319 = vld [vmem:[#allocation8 + $0x7c] sm:$0xf]
        %v1320 = vld [vmem:[#allocation8 + $0x80] sm:$0xf]
        %v1321 = vld [vmem:[#allocation8 + $0x84] sm:$0xf]
        %v1322 = vld [vmem:[#allocation8 + $0x88] sm:$0xf]
        %v1323 = vld [vmem:[#allocation8 + $0x8c] sm:$0xf]
        %v1324 = vld [vmem:[#allocation8 + $0x90] sm:$0xf]
        %v1325 = vld [vmem:[#allocation8 + $0x94] sm:$0xf]
        %v1326 = vld [vmem:[#allocation8 + $0x98] sm:$0xf]
        %v1327 = vld [vmem:[#allocation8 + $0x9c] sm:$0xf]
        %v1328 = vld [vmem:[#allocation8 + $0xa0] sm:$0xf]
        %v1329 = vld [vmem:[#allocation8 + $0xa4] sm:$0xf]
        %v1330 = vld [vmem:[#allocation8 + $0xa8] sm:$0xf]
        %v1331 = vld [vmem:[#allocation8 + $0xac] sm:$0xf]
        %v1332 = vld [vmem:[#allocation8 + $0xb0] sm:$0xf]
        %v1333 = vld [vmem:[#allocation8 + $0xb4] sm:$0xf]
        %v1334 = vld [vmem:[#allocation8 + $0xb8] sm:$0xf]
        %v1335 = vld [vmem:[#allocation8 + $0xbc] sm:$0xf]
        %v1336 = vld [vmem:[#allocation8 + $0xc0] sm:$0xf]
        %v1337 = vld [vmem:[#allocation8 + $0xc4] sm:$0xf]
        %v1338 = vld [vmem:[#allocation8 + $0xc8] sm:$0xf]
        %v1339 = vld [vmem:[#allocation8 + $0xcc] sm:$0xf]
        %v1340 = vld [vmem:[#allocation8 + $0xd0] sm:$0xf]
        %v1341 = vld [vmem:[#allocation8 + $0xd4] sm:$0xf]
        %v1342 = vld [vmem:[#allocation8 + $0xd8] sm:$0xf]
        %v1343 = vld [vmem:[#allocation8 + $0xdc] sm:$0xf]
        %v1344 = vld [vmem:[#allocation8 + $0xe0] sm:$0xf]
        %v1345 = vld [vmem:[#allocation8 + $0xe4] sm:$0xf]
        %v1346 = vld [vmem:[#allocation8 + $0xe8] sm:$0xf]
        %v1347 = vld [vmem:[#allocation8 + $0xec] sm:$0xf]
        %v1348 = vld [vmem:[#allocation8 + $0xf0] sm:$0xf]
        %v1349 = vld [vmem:[#allocation8 + $0xf4] sm:$0xf]
        %v1350 = vld [vmem:[#allocation8 + $0xf8] sm:$0xf]
        %v1351 = vld [vmem:[#allocation8 + $0xfc] sm:$0xf]
        %v1352 = vld [vmem:[%s4] sm:$0x1]
        %v1354 = vlaneseq
        %v1355 = vshrl.u32 %v1354, 7
        %v1356 = vsub.s32 0, %v1355
        %v1357 = vrot.slane %v1352, %v1356
        %v1423 = vunpack.c.l.b16 %v1288
        %v1424 = vunpack.c.l.b16 %v1289
        %v1425 = vunpack.c.l.b16 %v1290
        %v1426 = vunpack.c.l.b16 %v1291
        %v1427 = vunpack.c.l.b16 %v1292
        %v1428 = vunpack.c.l.b16 %v1293
        %v1429 = vunpack.c.l.b16 %v1294
        %v1430 = vunpack.c.l.b16 %v1295
        %v1431 = vunpack.c.l.b16 %v1296
        %v1432 = vunpack.c.l.b16 %v1297
        %v1433 = vunpack.c.l.b16 %v1298
        %v1434 = vunpack.c.l.b16 %v1299
        %v1435 = vunpack.c.l.b16 %v1300
        %v1436 = vunpack.c.l.b16 %v1301
        %v1437 = vunpack.c.l.b16 %v1302
        %v1438 = vunpack.c.l.b16 %v1303
        %v1439 = vunpack.c.l.b16 %v1304
        %v1440 = vunpack.c.l.b16 %v1305
        %v1441 = vunpack.c.l.b16 %v1306
        %v1442 = vunpack.c.l.b16 %v1307
        %v1443 = vunpack.c.l.b16 %v1308
        %v1444 = vunpack.c.l.b16 %v1309
        %v1445 = vunpack.c.l.b16 %v1310
        %v1446 = vunpack.c.l.b16 %v1311
        %v1447 = vunpack.c.l.b16 %v1312
        %v1448 = vunpack.c.l.b16 %v1313
        %v1449 = vunpack.c.l.b16 %v1314
        %v1450 = vunpack.c.l.b16 %v1315
        %v1451 = vunpack.c.l.b16 %v1316
        %v1452 = vunpack.c.l.b16 %v1317
        %v1453 = vunpack.c.l.b16 %v1318
        %v1454 = vunpack.c.l.b16 %v1319
        %v1455 = vunpack.c.l.b16 %v1320
        %v1456 = vunpack.c.l.b16 %v1321
        %v1457 = vunpack.c.l.b16 %v1322
        %v1458 = vunpack.c.l.b16 %v1323
        %v1459 = vunpack.c.l.b16 %v1324
        %v1460 = vunpack.c.l.b16 %v1325
        %v1461 = vunpack.c.l.b16 %v1326
        %v1462 = vunpack.c.l.b16 %v1327
        %v1463 = vunpack.c.l.b16 %v1328
        %v1464 = vunpack.c.l.b16 %v1329
        %v1465 = vunpack.c.l.b16 %v1330
        %v1466 = vunpack.c.l.b16 %v1331
        %v1467 = vunpack.c.l.b16 %v1332
        %v1468 = vunpack.c.l.b16 %v1333
        %v1469 = vunpack.c.l.b16 %v1334
        %v1470 = vunpack.c.l.b16 %v1335
        %v1471 = vunpack.c.l.b16 %v1336
        %v1472 = vunpack.c.l.b16 %v1337
        %v1473 = vunpack.c.l.b16 %v1338
        %v1474 = vunpack.c.l.b16 %v1339
        %v1475 = vunpack.c.l.b16 %v1340
        %v1476 = vunpack.c.l.b16 %v1341
        %v1477 = vunpack.c.l.b16 %v1342
        %v1478 = vunpack.c.l.b16 %v1343
        %v1479 = vunpack.c.l.b16 %v1344
        %v1480 = vunpack.c.l.b16 %v1345
        %v1481 = vunpack.c.l.b16 %v1346
        %v1482 = vunpack.c.l.b16 %v1347
        %v1483 = vunpack.c.l.b16 %v1348
        %v1484 = vunpack.c.l.b16 %v1349
        %v1485 = vunpack.c.l.b16 %v1350
        %v1486 = vunpack.c.l.b16 %v1351
        %v1487 = vpack.c.b16 %v1424, %v1423
        %v1488 = vpack.c.b16 %v1426, %v1425
        %v1489 = vpack.c.b16 %v1428, %v1427
        %v1490 = vpack.c.b16 %v1430, %v1429
        %v1491 = vpack.c.b16 %v1432, %v1431
        %v1492 = vpack.c.b16 %v1434, %v1433
        %v1493 = vpack.c.b16 %v1436, %v1435
        %v1494 = vpack.c.b16 %v1438, %v1437
        %v1495 = vpack.c.b16 %v1440, %v1439
        %v1496 = vpack.c.b16 %v1442, %v1441
        %v1497 = vpack.c.b16 %v1444, %v1443
        %v1498 = vpack.c.b16 %v1446, %v1445
        %v1499 = vpack.c.b16 %v1448, %v1447
        %v1500 = vpack.c.b16 %v1450, %v1449
        %v1501 = vpack.c.b16 %v1452, %v1451
        %v1502 = vpack.c.b16 %v1454, %v1453
        %v1503 = vpack.c.b16 %v1456, %v1455
        %v1504 = vpack.c.b16 %v1458, %v1457
        %v1505 = vpack.c.b16 %v1460, %v1459
        %v1506 = vpack.c.b16 %v1462, %v1461
        %v1507 = vpack.c.b16 %v1464, %v1463
        %v1508 = vpack.c.b16 %v1466, %v1465
        %v1509 = vpack.c.b16 %v1468, %v1467
        %v1510 = vpack.c.b16 %v1470, %v1469
        %v1511 = vpack.c.b16 %v1472, %v1471
        %v1512 = vpack.c.b16 %v1474, %v1473
        %v1513 = vpack.c.b16 %v1476, %v1475
        %v1514 = vpack.c.b16 %v1478, %v1477
        %v1515 = vpack.c.b16 %v1480, %v1479
        %v1516 = vpack.c.b16 %v1482, %v1481
        %v1517 = vpack.c.b16 %v1484, %v1483
        %v1518 = vpack.c.b16 %v1486, %v1485
        %1551 = vmatprep.subr.bf16.mxu0 0
        %1552 = vmatpush1.bf16.msra.mxu0 %v1494
        %1553 = vmatprep.subr.bf16.mxu0 0
        %1554 = vmatpush1.bf16.msra.mxu0 %v1493
        %1555 = vmatprep.subr.bf16.mxu0 0
        %1556 = vmatpush1.bf16.msra.mxu0 %v1492
        %1557 = vmatprep.subr.bf16.mxu0 0
        %1558 = vmatpush1.bf16.msra.mxu0 %v1491
        %1559 = vmatprep.subr.bf16.mxu0 0
        %1560 = vmatpush1.bf16.msra.mxu0 %v1490
        %1561 = vmatprep.subr.bf16.mxu0 0
        %1562 = vmatpush1.bf16.msra.mxu0 %v1489
        %1563 = vmatprep.subr.bf16.mxu0 0
        %1564 = vmatpush1.bf16.msra.mxu0 %v1488
        %1565 = vmatprep.subr.bf16.mxu0 0
        %1566 = vmatpush1.bf16.msra.mxu0 %v1487
        %1567 = vmatprep.subr.bf16.mxu0 0
        %1568 = vmatpush2.bf16.msra.mxu0 %v1502
        %1569 = vmatprep.subr.bf16.mxu0 0
        %1570 = vmatpush2.bf16.msra.mxu0 %v1501
        %1571 = vmatprep.subr.bf16.mxu0 0
        %1572 = vmatpush2.bf16.msra.mxu0 %v1500
        %1573 = vmatprep.subr.bf16.mxu0 0
        %1574 = vmatpush2.bf16.msra.mxu0 %v1499
        %1575 = vmatprep.subr.bf16.mxu0 0
        %1576 = vmatpush2.bf16.msra.mxu0 %v1498
        %1577 = vmatprep.subr.bf16.mxu0 0
        %1578 = vmatpush2.bf16.msra.mxu0 %v1497
        %1579 = vmatprep.subr.bf16.mxu0 0
        %1580 = vmatpush2.bf16.msra.mxu0 %v1496
        %1581 = vmatprep.subr.bf16.mxu0 0
        %1582 = vmatpush2.bf16.msra.mxu0 %v1495
        %1583 = vmatprep.mubr.bf16.mxu0 %v1249
        %1584 = vmatmul.mubr.bf16.gmra.mxu0 %v1248
        %v1585 = vpop.f32.mrf.mxu0
        %v1586 = vadd.f32 %v1357, %v1585
        %v1587 = vpop.f32.mrf.mxu0
        %v1588 = vpop.f32.mrf.mxu0
        %v1589 = vadd.f32 %v1357, %v1588
        %v1590 = vpop.f32.mrf.mxu0
        %1591 = vmatprep.mubr.bf16.mxu0 %v1253
        %1592 = vmatmul.mubr.bf16.gmra.mxu0 %v1252
        %v1593 = vpop.f32.mrf.mxu0
        %v1594 = vadd.f32 %v1357, %v1593
        %v1595 = vpop.f32.mrf.mxu0
        %v1596 = vpop.f32.mrf.mxu0
        %v1597 = vadd.f32 %v1357, %v1596
        %v1598 = vpop.f32.mrf.mxu0
        %1599 = vmatprep.mubr.bf16.mxu0 %v1257
        %1600 = vmatmul.mubr.bf16.gmra.mxu0 %v1256
        %v1601 = vpop.f32.mrf.mxu0
        %v1602 = vadd.f32 %v1357, %v1601
        %v1603 = vpop.f32.mrf.mxu0
        %v1604 = vpop.f32.mrf.mxu0
        %v1605 = vadd.f32 %v1357, %v1604
        %v1606 = vpop.f32.mrf.mxu0
        %1607 = vmatprep.mubr.bf16.mxu0 %v1261
        %1608 = vmatmul.mubr.bf16.gmra.mxu0 %v1260
        %v1609 = vpop.f32.mrf.mxu0
        %v1610 = vadd.f32 %v1357, %v1609
        %v1611 = vpop.f32.mrf.mxu0
        %v1612 = vpop.f32.mrf.mxu0
        %v1613 = vadd.f32 %v1357, %v1612
        %v1614 = vpop.f32.mrf.mxu0
        %1615 = vmatprep.mubr.bf16.mxu0 %v1265
        %1616 = vmatmul.mubr.bf16.gmra.mxu0 %v1264
        %v1617 = vpop.f32.mrf.mxu0
        %v1618 = vadd.f32 %v1357, %v1617
        %v1619 = vpop.f32.mrf.mxu0
        %v1620 = vpop.f32.mrf.mxu0
        %v1621 = vadd.f32 %v1357, %v1620
        %v1622 = vpop.f32.mrf.mxu0
        %1623 = vmatprep.mubr.bf16.mxu0 %v1269
        %1624 = vmatmul.mubr.bf16.gmra.mxu0 %v1268
        %v1625 = vpop.f32.mrf.mxu0
        %v1626 = vadd.f32 %v1357, %v1625
        %v1627 = vpop.f32.mrf.mxu0
        %v1628 = vpop.f32.mrf.mxu0
        %v1629 = vadd.f32 %v1357, %v1628
        %v1630 = vpop.f32.mrf.mxu0
        %1631 = vmatprep.mubr.bf16.mxu0 %v1273
        %1632 = vmatmul.mubr.bf16.gmra.mxu0 %v1272
        %v1633 = vpop.f32.mrf.mxu0
        %v1634 = vadd.f32 %v1357, %v1633
        %v1635 = vpop.f32.mrf.mxu0
        %v1636 = vpop.f32.mrf.mxu0
        %v1637 = vadd.f32 %v1357, %v1636
        %v1638 = vpop.f32.mrf.mxu0
        %1639 = vmatprep.mubr.bf16.mxu0 %v1277
        %1640 = vmatmul.mubr.bf16.gmra.mxu0 %v1276
        %v1641 = vpop.f32.mrf.mxu0
        %v1642 = vadd.f32 %v1357, %v1641
        %v1643 = vpop.f32.mrf.mxu0
        %v1644 = vpop.f32.mrf.mxu0
        %v1645 = vadd.f32 %v1357, %v1644
        %v1646 = vpop.f32.mrf.mxu0
        %1647 = vmatprep.mubr.bf16.mxu0 %v1281
        %1648 = vmatmul.mubr.bf16.gmra.mxu0 %v1280
        %v1649 = vpop.f32.mrf.mxu0
        %v1650 = vadd.f32 %v1357, %v1649
        %v1651 = vpop.f32.mrf.mxu0
        %v1652 = vpop.f32.mrf.mxu0
        %v1653 = vadd.f32 %v1357, %v1652
        %v1654 = vpop.f32.mrf.mxu0
        %1655 = vmatprep.mubr.bf16.mxu0 %v1285
        %1656 = vmatmul.mubr.bf16.gmra.mxu0 %v1284
        %v1657 = vpop.f32.mrf.mxu0
        %v1658 = vadd.f32 %v1357, %v1657
        %v1659 = vpop.f32.mrf.mxu0
        %v1660 = vpop.f32.mrf.mxu0
        %v1661 = vadd.f32 %v1357, %v1660
        %v1662 = vpop.f32.mrf.mxu0
        %1663 = vdwg.mxu0
        %1664 = vmatprep.subr.bf16.mxu0 0
        %1665 = vmatpush1.bf16.msra.mxu0 %v1510
        %1666 = vmatprep.subr.bf16.mxu0 0
        %1667 = vmatpush1.bf16.msra.mxu0 %v1509
        %1668 = vmatprep.subr.bf16.mxu0 0
        %1669 = vmatpush1.bf16.msra.mxu0 %v1508
        %1670 = vmatprep.subr.bf16.mxu0 0
        %1671 = vmatpush1.bf16.msra.mxu0 %v1507
        %1672 = vmatprep.subr.bf16.mxu0 0
        %1673 = vmatpush1.bf16.msra.mxu0 %v1506
        %1674 = vmatprep.subr.bf16.mxu0 0
        %1675 = vmatpush1.bf16.msra.mxu0 %v1505
        %1676 = vmatprep.subr.bf16.mxu0 0
        %1677 = vmatpush1.bf16.msra.mxu0 %v1504
        %1678 = vmatprep.subr.bf16.mxu0 0
        %1679 = vmatpush1.bf16.msra.mxu0 %v1503
        %1680 = vmatprep.subr.bf16.mxu0 0
        %1681 = vmatpush2.bf16.msra.mxu0 %v1518
        %1682 = vmatprep.subr.bf16.mxu0 0
        %1683 = vmatpush2.bf16.msra.mxu0 %v1517
        %1684 = vmatprep.subr.bf16.mxu0 0
        %1685 = vmatpush2.bf16.msra.mxu0 %v1516
        %1686 = vmatprep.subr.bf16.mxu0 0
        %1687 = vmatpush2.bf16.msra.mxu0 %v1515
        %1688 = vmatprep.subr.bf16.mxu0 0
        %1689 = vmatpush2.bf16.msra.mxu0 %v1514
        %1690 = vmatprep.subr.bf16.mxu0 0
        %1691 = vmatpush2.bf16.msra.mxu0 %v1513
        %1692 = vmatprep.subr.bf16.mxu0 0
        %1693 = vmatpush2.bf16.msra.mxu0 %v1512
        %1694 = vmatprep.subr.bf16.mxu0 0
        %1695 = vmatpush2.bf16.msra.mxu0 %v1511
        %1696 = vmatprep.mubr.bf16.mxu0 %v1251
        %1697 = vmatmul.mubr.bf16.gmra.mxu0 %v1250
        %v1698 = vpop.f32.mrf.mxu0
        %v1699 = vadd.f32 %v1586, %v1698
        %v1700 = vpop.f32.mrf.mxu0
        %v1701 = vpop.f32.mrf.mxu0
        %v1702 = vadd.f32 %v1589, %v1701
        %v1703 = vpop.f32.mrf.mxu0
        %1704 = vmatprep.mubr.bf16.mxu0 %v1255
        %1705 = vmatmul.mubr.bf16.gmra.mxu0 %v1254
        %v1706 = vpop.f32.mrf.mxu0
        %v1707 = vadd.f32 %v1594, %v1706
        %v1708 = vpop.f32.mrf.mxu0
        %v1709 = vpop.f32.mrf.mxu0
        %v1710 = vadd.f32 %v1597, %v1709
        %v1711 = vpop.f32.mrf.mxu0
        %1712 = vmatprep.mubr.bf16.mxu0 %v1259
        %1713 = vmatmul.mubr.bf16.gmra.mxu0 %v1258
        %v1714 = vpop.f32.mrf.mxu0
        %v1715 = vadd.f32 %v1602, %v1714
        %v1716 = vpop.f32.mrf.mxu0
        %v1717 = vpop.f32.mrf.mxu0
        %v1718 = vadd.f32 %v1605, %v1717
        %v1719 = vpop.f32.mrf.mxu0
        %1720 = vmatprep.mubr.bf16.mxu0 %v1263
        %1721 = vmatmul.mubr.bf16.gmra.mxu0 %v1262
        %v1722 = vpop.f32.mrf.mxu0
        %v1723 = vadd.f32 %v1610, %v1722
        %v1724 = vpop.f32.mrf.mxu0
        %v1725 = vpop.f32.mrf.mxu0
        %v1726 = vadd.f32 %v1613, %v1725
        %v1727 = vpop.f32.mrf.mxu0
        %1728 = vmatprep.mubr.bf16.mxu0 %v1267
        %1729 = vmatmul.mubr.bf16.gmra.mxu0 %v1266
        %v1730 = vpop.f32.mrf.mxu0
        %v1731 = vadd.f32 %v1618, %v1730
        %v1732 = vpop.f32.mrf.mxu0
        %v1733 = vpop.f32.mrf.mxu0
        %v1734 = vadd.f32 %v1621, %v1733
        %v1735 = vpop.f32.mrf.mxu0
        %1736 = vmatprep.mubr.bf16.mxu0 %v1271
        %1737 = vmatmul.mubr.bf16.gmra.mxu0 %v1270
        %v1738 = vpop.f32.mrf.mxu0
        %v1739 = vadd.f32 %v1626, %v1738
        %v1740 = vpop.f32.mrf.mxu0
        %v1741 = vpop.f32.mrf.mxu0
        %v1742 = vadd.f32 %v1629, %v1741
        %v1743 = vpop.f32.mrf.mxu0
        %1744 = vmatprep.mubr.bf16.mxu0 %v1275
        %1745 = vmatmul.mubr.bf16.gmra.mxu0 %v1274
        %v1746 = vpop.f32.mrf.mxu0
        %v1747 = vadd.f32 %v1634, %v1746
        %v1748 = vpop.f32.mrf.mxu0
        %v1749 = vpop.f32.mrf.mxu0
        %v1750 = vadd.f32 %v1637, %v1749
        %v1751 = vpop.f32.mrf.mxu0
        %1752 = vmatprep.mubr.bf16.mxu0 %v1279
        %1753 = vmatmul.mubr.bf16.gmra.mxu0 %v1278
        %v1754 = vpop.f32.mrf.mxu0
        %v1755 = vadd.f32 %v1642, %v1754
        %v1756 = vpop.f32.mrf.mxu0
        %v1757 = vpop.f32.mrf.mxu0
        %v1758 = vadd.f32 %v1645, %v1757
        %v1759 = vpop.f32.mrf.mxu0
        %1760 = vmatprep.mubr.bf16.mxu0 %v1283
        %1761 = vmatmul.mubr.bf16.gmra.mxu0 %v1282
        %v1762 = vpop.f32.mrf.mxu0
        %v1763 = vadd.f32 %v1650, %v1762
        %v1764 = vpop.f32.mrf.mxu0
        %v1765 = vpop.f32.mrf.mxu0
        %v1766 = vadd.f32 %v1653, %v1765
        %v1767 = vpop.f32.mrf.mxu0
        %1768 = vmatprep.mubr.bf16.mxu0 %v1287
        %1769 = vmatmul.mubr.bf16.gmra.mxu0 %v1286
        %v1770 = vpop.f32.mrf.mxu0
        %v1771 = vadd.f32 %v1658, %v1770
        %v1772 = vpop.f32.mrf.mxu0
        %v1773 = vpop.f32.mrf.mxu0
        %v1774 = vadd.f32 %v1661, %v1773
        %v1775 = vpop.f32.mrf.mxu0
        %1776 = vdwg.mxu0
        %1777 = vst [vmem:[%s290] sm:$0xff] %v1699
        %1778 = vst [vmem:[%s290 + $0x8] sm:$0xff] %v1702
        %1779 = vst [vmem:[%s290 + $0x10] sm:$0xff] %v1707
        %1780 = vst [vmem:[%s290 + $0x18] sm:$0xff] %v1710
        %1781 = vst [vmem:[%s290 + $0x20] sm:$0xff] %v1715
        %1782 = vst [vmem:[%s290 + $0x28] sm:$0xff] %v1718
        %1783 = vst [vmem:[%s290 + $0x30] sm:$0xff] %v1723
        %1784 = vst [vmem:[%s290 + $0x38] sm:$0xff] %v1726
        %1785 = vst [vmem:[%s290 + $0x40] sm:$0xff] %v1731
        %1786 = vst [vmem:[%s290 + $0x48] sm:$0xff] %v1734
        %1787 = vst [vmem:[%s290 + $0x50] sm:$0xff] %v1739
        %1788 = vst [vmem:[%s290 + $0x58] sm:$0xff] %v1742
        %1789 = vst [vmem:[%s290 + $0x60] sm:$0xff] %v1747
        %1790 = vst [vmem:[%s290 + $0x68] sm:$0xff] %v1750
        %1791 = vst [vmem:[%s290 + $0x70] sm:$0xff] %v1755
        %1792 = vst [vmem:[%s290 + $0x78] sm:$0xff] %v1758
        %1793 = vst [vmem:[%s290 + $0x80] sm:$0xff] %v1763
        %1794 = vst [vmem:[%s290 + $0x88] sm:$0xff] %v1766
        %1795 = vst [vmem:[%s290 + $0x90] sm:$0xff] %v1771
        %1796 = vst [vmem:[%s290 + $0x98] sm:$0xff] %v1774
        %s1797 = sand.u32 %s142, 1
        %s1798 = scalar_lea.sflag [#allocation4], %s1797
        %s1799 = sand.u32 %s142, 1
        %s1800 = smul.addr %s1799, 160
        %s1801 = scalar_lea.vmem [#allocation10], %s1800
        // Predicated region
        $region57: #{tpu_custom_call.1} parent=39 // pred_check
          %p1802 = pneg %p152
        $region58: #{tpu_custom_call.1} parent=39 // pred_check_branch
          %1804 = sbr.rel (%p1802) target = $region60
        $region59: #{tpu_custom_call.1} parent=39 // pred_region
          %s1805 = smul.u32 20, %s24
          %s1806 = ssub.s32 38, %s1805
          %p1807 = scmp.lt.s32.totalorder %s1806, 20
          %s1808 = scalar_select %p1807, %s1806, 20
          %s1809 = smul.u32 128, %s1808
          %s1811 = ssub.s32 2560, %s1809
          %1812 = vsyncadd %s1798, %s1811
          %p1813 = scmp.ne.s32.totalorder 0, %s1809
          %s1814 = smul.addr %s1805, 128
          %s1815 = scalar_lea.hbm %s5, %s1814
          %s1816 = smul.u32 8, %s1808
          %s1817 = sshll.u32 %s1801, 4
          %s1818 = int_to_ptr.vmem [resolvable:$true] %s1817
          %s1819 = sshll.u32 %s1816, 4
          %1823 = dma.vmem_to_hbm [thread:$0]  (%p1813), %s1818, %s1819, %s1815, %s1798, 128, 128, 8
        $region60: #{tpu_custom_call.1} parent=39 // pred_fallthru
          _
      $region40: #{tpu_custom_call.1} parent=5 // pred_fallthru
        _
      %p1824 = scmp.le.s32.totalorder 2, %s19
      // Predicated region
      $region61: #{tpu_custom_call.1} parent=5 // pred_check
        %p1825 = pneg %p1824
      $region62: #{tpu_custom_call.1} parent=5 // pred_check_branch
        %1827 = sbr.rel (%p1825) target = $region64
      $region63: #{tpu_custom_call.1} parent=5 // pred_region
        %s1828 = ssub.s32 %s19, 2
        // Predicated region
        $region65: #{tpu_custom_call.1} parent=63 // pred_check
          %p1829 = pneg %p158
        $region66: #{tpu_custom_call.1} parent=63 // pred_check_branch
          %1831 = sbr.rel (%p1829) target = $region68
        $region67: #{tpu_custom_call.1} parent=63 // pred_region
          %s1832 = sand.u32 %s143, 1
          %s1833 = scalar_lea.sflag [#allocation4], %s1832
          %s1834 = sand.u32 %s143, 1
          %s1835 = smul.addr %s1834, 160
          %s1836 = scalar_lea.vmem [#allocation10], %s1835
          %1837 = dma.done %s1833, 2560
        $region68: #{tpu_custom_call.1} parent=63 // pred_fallthru
          _
      $region64: #{tpu_custom_call.1} parent=5 // pred_fallthru
        _
    $region6: #{tpu_custom_call.1} parent=1 // loop_footer
      %s23 = sadd.s32 1, %s19
    $region7: #{tpu_custom_call.1} parent=1 // loop_footer_branch
      %18 = sbr.rel target = $region3
    $region8: #{tpu_custom_call.1} parent=1 // loop_exit
      _
    %1838 = vsyncpa [#allocation3], 1
    %s1839 = scalar_lea.sflag [#allocation3], 1
    %1840 = vsyncpa %s1839, 1
    %1841 = vsyncpa [#allocation6], 1
    %1842 = vsyncpa [#allocation9], 1
    %1843 = vsyncpa [#allocation4], 1
    %s1844 = scalar_lea.sflag [#allocation4], 1
    %1845 = vsyncpa %s1844, 1

// kernel: tpu_custom_call.1
$region0: #{tpu_custom_call.1}
  #allocation0 [shape = 'u32[]', space=smem, size = 0x4, offset = 0x4, fixed_abs, tag = 'smem constant byte address 0x4 - core index']
  #allocation1 [shape = 'u32[144,128]{1,0:T(1,128)}', space=vmem, size = 0x12000, scoped, tag = 'internal scratch']
  %s0 = inlined_call_operand.hbm [shape: f32[300,128], index: 0, kind: input, shape index: {}]
  %s1 = inlined_call_operand.hbm [shape: bf16[128,512], index: 1, kind: input, shape index: {}]
  %s2 = inlined_call_operand.hbm [shape: bf16[1,512], index: 2, kind: input, shape index: {}]
  %s3 = inlined_call_operand.hbm [shape: bf16[512,128], index: 3, kind: input, shape index: {}]
  %s4 = inlined_call_operand.vmem [shape: f32[1,128], index: 4, kind: input, shape index: {}]
  %s5 = inlined_call_operand.hbm [shape: f32[300,128], index: 5, kind: output, shape index: {}]
  %s6 = sld [smem:[#allocation0]]
  $region69: #{tpu_custom_call.1} parent=0
    _
  %s8 = ssub.s32 1, %s6
  %s9 = scalar_select 0, %s8, %s6
  $region1: #{tpu_custom_call.1} parent=0
    #allocation2 [shape = 'u8[163840]{0}', space=vmem, size = 0x28000, scoped, tag = 'input window, operand 0']
    #allocation3 [shape = 's32[2]{0}', space=sflag, size = 0x8, scoped, tag = 'scoped memory for tpu_custom_call.1']
    #allocation4 [shape = 's32[2]{0}', space=sflag, size = 0x8, scoped, tag = 'scoped memory for tpu_custom_call.1']
    #allocation5 [shape = 'u8[131072]{0}', space=vmem, size = 0x20000, scoped, tag = 'input window, operand 1, single buffered']
    #allocation6 [shape = 's32[1]{0}', space=sflag, size = 0x4, scoped, tag = 'scoped memory for tpu_custom_call.1']
    #allocation7 [shape = 'u8[2048]{0}', space=vmem, size = 0x800, scoped, tag = 'input window, operand 2, single buffered']
    #allocation8 [shape = 'u8[131072]{0}', space=vmem, size = 0x20000, scoped, tag = 'input window, operand 3, single buffered']
    #allocation9 [shape = 's32[1]{0}', space=sflag, size = 0x4, scoped, tag = 'scoped memory for tpu_custom_call.1']
    #allocation10 [shape = 'u8[163840]{0}', space=vmem, size = 0x28000, scoped, tag = 'output window, operand 0']
    %10 = vsyncpa [#allocation3], 0
    %s11 = scalar_lea.sflag [#allocation3], 1
    %12 = vsyncpa %s11, 0
    %13 = vsyncpa [#allocation6], 0
    %14 = vsyncpa [#allocation9], 0
    %15 = vsyncpa [#allocation4], 0
    %s16 = scalar_lea.sflag [#allocation4], 1
    %17 = vsyncpa %s16, 0
    loop: start=0, step=1, limit=4
    $region2: #{tpu_custom_call.1} parent=1 // loop_pre_header
      _
    $region3: #{tpu_custom_call.1} parent=1 // loop_header
      %s19 = sphi 0, %s23
      %p20 = scmp.ge.s32.totalorder %s19, 4
      %s29 = sphi 0, %s31
      %s32 = sphi 0, %s29
      %s33 = sphi 0, %s32
      %s49 = sphi 0, %s33
      %s53 = sphi 0, %s53
      %s55 = sphi 0, %s53
      %s56 = sphi 0, %s55
      %s70 = sphi 0, %s56
      %s74 = sphi 0, %s74
      %s76 = sphi 0, %s74
      %s77 = sphi 0, %s76
      %s91 = sphi 0, %s77
      %s95 = sphi 0, %s95
      %s97 = sphi 0, %s95
      %s98 = sphi 0, %s97
      %s112 = sphi 0, %s98
      %s116 = sphi 0, %s116
      %s118 = sphi 0, %s116
      %s119 = sphi 0, %s118
      %s133 = sphi 0, %s119
      %s139 = sphi 0, %s141
      %s142 = sphi 0, %s139
      %s143 = sphi 0, %s142
      %s159 = sphi 0, %s143
    $region4: #{tpu_custom_call.1} parent=1 // loop_header_branch
      %22 = sbr.rel (%p20) target = $region8
    $region5: #{tpu_custom_call.1} parent=1 // loop_body
      %s24 = ssub.s32 %s19, 1
      %s25 = ssub.s32 %s19, 2
      %s26 = sadd.s32 %s19, 1
      %s27 = ssub.s32 %s19, %s26
      %p28 = scmp.eq.s32.totalorder %s27, 0
      %s30 = sadd.s32 %s29, 1
      %s31 = scalar_select %p28, %s29, %s30
      %p34 = pneg %p28
      %p35 = scmp.eq.s32.totalorder %s19, 1
      %p36 = por %p34, %p35
      %p37 = scmp.ne.s32.totalorder %s29, %s32
      %p38 = scmp.eq.s32.totalorder %s19, 0
      %p39 = por %p37, %p38
      %p40 = scmp.ne.s32.totalorder %s29, %s32
      %p41 = scmp.eq.s32.totalorder %s24, 1
      %p42 = por %p40, %p41
      %p43 = scmp.ne.s32.totalorder %s32, %s33
      %p44 = scmp.eq.s32.totalorder %s24, 0
      %p45 = por %p43, %p44
      %p46 = scmp.ne.s32.totalorder %s32, %s33
      %p47 = scmp.eq.s32.totalorder %s25, 1
      %p48 = por %p46, %p47
      %p50 = scmp.ne.s32.totalorder %s33, %s49
      %p51 = scmp.eq.s32.totalorder %s25, 0
      %p52 = por %p50, %p51
      %s54 = sadd.s32 %s53, 1
      %p57 = scmp.eq.s32.totalorder %s19, 1
      %p58 = scmp.ne.s32.totalorder %s53, %s55
      %p59 = scmp.eq.s32.totalorder %s19, 0
      %p60 = por %p58, %p59
      %p61 = scmp.ne.s32.totalorder %s53, %s55
      %p62 = scmp.eq.s32.totalorder %s24, 1
      %p63 = por %p61, %p62
      %p64 = scmp.ne.s32.totalorder %s55, %s56
      %p65 = scmp.eq.s32.totalorder %s24, 0
      %p66 = por %p64, %p65
      %p67 = scmp.ne.s32.totalorder %s55, %s56
      %p68 = scmp.eq.s32.totalorder %s25, 1
      %p69 = por %p67, %p68
      %p71 = scmp.ne.s32.totalorder %s56, %s70
      %p72 = scmp.eq.s32.totalorder %s25, 0
      %p73 = por %p71, %p72
      %s75 = sadd.s32 %s74, 1
      %p78 = scmp.eq.s32.totalorder %s19, 1
      %p79 = scmp.ne.s32.totalorder %s74, %s76
      %p80 = scmp.eq.s32.totalorder %s19, 0
      %p81 = por %p79, %p80
      %p82 = scmp.ne.s32.totalorder %s74, %s76
      %p83 = scmp.eq.s32.totalorder %s24, 1
      %p84 = por %p82, %p83
      %p85 = scmp.ne.s32.totalorder %s76, %s77
      %p86 = scmp.eq.s32.totalorder %s24, 0
      %p87 = por %p85, %p86
      %p88 = scmp.ne.s32.totalorder %s76, %s77
      %p89 = scmp.eq.s32.totalorder %s25, 1
      %p90 = por %p88, %p89
      %p92 = scmp.ne.s32.totalorder %s77, %s91
      %p93 = scmp.eq.s32.totalorder %s25, 0
      %p94 = por %p92, %p93
      %s96 = sadd.s32 %s95, 1
      %p99 = scmp.eq.s32.totalorder %s19, 1
      %p100 = scmp.ne.s32.totalorder %s95, %s97
      %p101 = scmp.eq.s32.totalorder %s19, 0
      %p102 = por %p100, %p101
      %p103 = scmp.ne.s32.totalorder %s95, %s97
      %p104 = scmp.eq.s32.totalorder %s24, 1
      %p105 = por %p103, %p104
      %p106 = scmp.ne.s32.totalorder %s97, %s98
      %p107 = scmp.eq.s32.totalorder %s24, 0
      %p108 = por %p106, %p107
      %p109 = scmp.ne.s32.totalorder %s97, %s98
      %p110 = scmp.eq.s32.totalorder %s25, 1
      %p111 = por %p109, %p110
      %p113 = scmp.ne.s32.totalorder %s98, %s112
      %p114 = scmp.eq.s32.totalorder %s25, 0
      %p115 = por %p113, %p114
      %s117 = sadd.s32 %s116, 1
      %p120 = scmp.eq.s32.totalorder %s19, 1
      %p121 = scmp.ne.s32.totalorder %s116, %s118
      %p122 = scmp.eq.s32.totalorder %s19, 0
      %p123 = por %p121, %p122
      %p124 = scmp.ne.s32.totalorder %s116, %s118
      %p125 = scmp.eq.s32.totalorder %s24, 1
      %p126 = por %p124, %p125
      %p127 = scmp.ne.s32.totalorder %s118, %s119
      %p128 = scmp.eq.s32.totalorder %s24, 0
      %p129 = por %p127, %p128
      %p130 = scmp.ne.s32.totalorder %s118, %s119
      %p131 = scmp.eq.s32.totalorder %s25, 1
      %p132 = por %p130, %p131
      %p134 = scmp.ne.s32.totalorder %s119, %s133
      %p135 = scmp.eq.s32.totalorder %s25, 0
      %p136 = por %p134, %p135
      %s137 = ssub.s32 %s19, %s26
      %p138 = scmp.eq.s32.totalorder %s137, 0
      %s140 = sadd.s32 %s139, 1
      %s141 = scalar_select %p138, %s139, %s140
      %p144 = pneg %p138
      %p145 = scmp.eq.s32.totalorder %s19, 1
      %p146 = por %p144, %p145
      %p147 = scmp.ne.s32.totalorder %s139, %s142
      %p148 = scmp.eq.s32.totalorder %s19, 0
      %p149 = por %p147, %p148
      %p150 = scmp.ne.s32.totalorder %s139, %s142
      %p151 = scmp.eq.s32.totalorder %s24, 1
      %p152 = por %p150, %p151
      %p153 = scmp.ne.s32.totalorder %s142, %s143
      %p154 = scmp.eq.s32.totalorder %s24, 0
      %p155 = por %p153, %p154
      %p156 = scmp.ne.s32.totalorder %s142, %s143
      %p157 = scmp.eq.s32.totalorder %s25, 1
      %p158 = por %p156, %p157
      %p160 = scmp.ne.s32.totalorder %s143, %s159
      %p161 = scmp.eq.s32.totalorder %s25, 0
      %p162 = por %p160, %p161
      %p163 = scmp.le.s32.totalorder 1, %s19
      %p164 = scmp.lt.s32.totalorder %s19, 3
      %p165 = pnand %p163, %p164
      %p166 = pneg %p165
      // Predicated region
      $region9: #{tpu_custom_call.1} parent=5 // pred_check
        _
      $region10: #{tpu_custom_call.1} parent=5 // pred_check_branch
        %168 = sbr.rel (%p165) target = $region12
      $region11: #{tpu_custom_call.1} parent=5 // pred_region
        %s169 = ssub.s32 %s19, 1
        // Predicated region
        $region13: #{tpu_custom_call.1} parent=11 // pred_check
          %p170 = pneg %p66
        $region14: #{tpu_custom_call.1} parent=11 // pred_check_branch
          %172 = sbr.rel (%p170) target = $region16
        $region15: #{tpu_custom_call.1} parent=11 // pred_region
          %s174 = ssub.s32 4096, 4096
          %175 = vsyncadd [#allocation6], %s174
          %s176 = sshll.u32 [#allocation5], 4
          %s177 = int_to_ptr.vmem [resolvable:$true] %s176
          %182 = dma.hbm_to_vmem [thread:$0]  %s1, 4096, %s177, [#allocation6], 256, 256, 16
        $region16: #{tpu_custom_call.1} parent=11 // pred_fallthru
          _
        // Predicated region
        $region17: #{tpu_custom_call.1} parent=11 // pred_check
          %p183 = pneg %p87
        $region18: #{tpu_custom_call.1} parent=11 // pred_check_branch
          %185 = sbr.rel (%p183) target = $region20
        $region19: #{tpu_custom_call.1} parent=11 // pred_region
          %s187 = ssub.s32 64, 64
          %188 = vsyncadd [#allocation6], %s187
          %s190 = sshll.u32 [#allocation7], 4
          %s191 = int_to_ptr.vmem [resolvable:$true] %s190
          %193 = dma.hbm_to_vmem [thread:$0]  %s2, 64, %s191, [#allocation6]
        $region20: #{tpu_custom_call.1} parent=11 // pred_fallthru
          _
        // Predicated region
        $region21: #{tpu_custom_call.1} parent=11 // pred_check
          %p194 = pneg %p108
        $region22: #{tpu_custom_call.1} parent=11 // pred_check_branch
          %196 = sbr.rel (%p194) target = $region24
        $region23: #{tpu_custom_call.1} parent=11 // pred_region
          %s198 = ssub.s32 4096, 4096
          %199 = vsyncadd [#allocation9], %s198
          %s200 = sshll.u32 [#allocation8], 4
          %s201 = int_to_ptr.vmem [resolvable:$true] %s200
          %206 = dma.hbm_to_vmem [thread:$0]  %s3, 4096, %s201, [#allocation9], 64, 64, 4
        $region24: #{tpu_custom_call.1} parent=11 // pred_fallthru
          _
        // Predicated region
        $region25: #{tpu_custom_call.1} parent=11 // pred_check
          %p207 = pneg %p129
        $region26: #{tpu_custom_call.1} parent=11 // pred_check_branch
          %209 = sbr.rel (%p207) target = $region28
        $region27: #{tpu_custom_call.1} parent=11 // pred_region
          _
        $region28: #{tpu_custom_call.1} parent=11 // pred_fallthru
          _
      $region12: #{tpu_custom_call.1} parent=5 // pred_fallthru
        _
      %p210 = scmp.lt.s32.totalorder %s19, 2
      // Predicated region
      $region29: #{tpu_custom_call.1} parent=5 // pred_check
        %p211 = pneg %p210
      $region30: #{tpu_custom_call.1} parent=5 // pred_check_branch
        %213 = sbr.rel (%p211) target = $region32
      $region31: #{tpu_custom_call.1} parent=5 // pred_region
        // Predicated region
        $region33: #{tpu_custom_call.1} parent=31 // pred_check
          %p214 = pneg %p39
        $region34: #{tpu_custom_call.1} parent=31 // pred_check_branch
          %216 = sbr.rel (%p214) target = $region36
        $region35: #{tpu_custom_call.1} parent=31 // pred_region
          %s217 = sand.u32 %s29, 1
          %s218 = scalar_lea.sflag [#allocation3], %s217
          %s219 = sand.u32 %s29, 1
          %s220 = smul.addr %s219, 160
          %s221 = scalar_lea.vmem [#allocation2], %s220
          %s222 = smul.u32 20, %s19
          %s223 = ssub.s32 38, %s222
          %p224 = scmp.lt.s32.totalorder %s223, 20
          %s225 = scalar_select %p224, %s223, 20
          %s226 = smul.u32 128, %s225
          %s228 = ssub.s32 2560, %s226
          %229 = vsyncadd %s218, %s228
          %p230 = scmp.ne.s32.totalorder 0, %s226
          %s231 = smul.addr %s222, 128
          %s232 = scalar_lea.hbm %s0, %s231
          %s233 = smul.u32 8, %s225
          %s234 = sshll.u32 %s221, 4
          %s235 = int_to_ptr.vmem [resolvable:$true] %s234
          %s236 = sshll.u32 %s233, 4
          %240 = dma.hbm_to_vmem [thread:$0]  (%p230), %s232, %s236, %s235, %s218, 128, 128, 8
        $region36: #{tpu_custom_call.1} parent=31 // pred_fallthru
          _
      $region32: #{tpu_custom_call.1} parent=5 // pred_fallthru
        _
      %p241 = scmp.le.s32.totalorder 1, %s19
      %p242 = scmp.lt.s32.totalorder %s19, 3
      %p243 = pnand %p241, %p242
      %p244 = pneg %p243
      // Predicated region
      $region37: #{tpu_custom_call.1} parent=5 // pred_check
        _
      $region38: #{tpu_custom_call.1} parent=5 // pred_check_branch
        %246 = sbr.rel (%p243) target = $region40
      $region39: #{tpu_custom_call.1} parent=5 // pred_region
        %s247 = ssub.s32 %s19, 1
        %s248 = sand.u32 %s32, 1
        %s249 = scalar_lea.sflag [#allocation3], %s248
        %s250 = sand.u32 %s32, 1
        %s251 = smul.addr %s250, 160
        %s252 = scalar_lea.vmem [#allocation2], %s251
        // Predicated region
        $region41: #{tpu_custom_call.1} parent=39 // pred_check
          %p253 = pneg %p45
        $region42: #{tpu_custom_call.1} parent=39 // pred_check_branch
          %255 = sbr.rel (%p253) target = $region44
        $region43: #{tpu_custom_call.1} parent=39 // pred_region
          %256 = dma.done %s249, 2560
        $region44: #{tpu_custom_call.1} parent=39 // pred_fallthru
          _
        // Predicated region
        $region45: #{tpu_custom_call.1} parent=39 // pred_check
          %p257 = pneg %p66
        $region46: #{tpu_custom_call.1} parent=39 // pred_check_branch
          %259 = sbr.rel (%p257) target = $region48
        $region47: #{tpu_custom_call.1} parent=39 // pred_region
          %260 = dma.done [#allocation6], 4096
        $region48: #{tpu_custom_call.1} parent=39 // pred_fallthru
          _
        // Predicated region
        $region49: #{tpu_custom_call.1} parent=39 // pred_check
          %p261 = pneg %p87
        $region50: #{tpu_custom_call.1} parent=39 // pred_check_branch
          %263 = sbr.rel (%p261) target = $region52
        $region51: #{tpu_custom_call.1} parent=39 // pred_region
          %264 = dma.done [#allocation6], 64
        $region52: #{tpu_custom_call.1} parent=39 // pred_fallthru
          _
        // Predicated region
        $region53: #{tpu_custom_call.1} parent=39 // pred_check
          %p265 = pneg %p108
        $region54: #{tpu_custom_call.1} parent=39 // pred_check_branch
          %267 = sbr.rel (%p265) target = $region56
        $region55: #{tpu_custom_call.1} parent=39 // pred_region
          %268 = dma.done [#allocation9], 4096
        $region56: #{tpu_custom_call.1} parent=39 // pred_fallthru
          _
        %s269 = sand.u32 %s32, 1
        %s270 = scalar_lea.sflag [#allocation3], %s269
        %s271 = sand.u32 %s32, 1
        %s272 = smul.addr %s271, 160
        %s273 = scalar_lea.vmem [#allocation2], %s272
        %p274 = pneg %p45
        %p275 = pneg %p42
        %p276 = pneg %p66
        %p277 = pneg %p63
        %p278 = pneg %p87
        %p279 = pneg %p84
        %p280 = pneg %p108
        %p281 = pneg %p105
        %p282 = pneg %p129
        %p283 = pneg %p126
        %p284 = pneg %p155
        %p285 = pneg %p152
        %s286 = sand.u32 %s142, 1
        %s287 = scalar_lea.sflag [#allocation4], %s286
        %s288 = sand.u32 %s142, 1
        %s289 = smul.addr %s288, 160
        %s290 = scalar_lea.vmem [#allocation10], %s289
        %s291 = smul.u32 20, %s24
        %s292 = ssub.s32 38, %s291
        %p293 = scmp.lt.s32.totalorder %s292, 20
        %s294 = scalar_select %p293, %s292, 20
        %s295 = smul.u32 128, %s294
        %s296 = smul.u32 20, %s24
        %s297 = ssub.s32 38, %s296
        %p298 = scmp.lt.s32.totalorder %s297, 20
        %s299 = scalar_select %p298, %s297, 20
        %s300 = smul.u32 128, %s299
        %v306 = vld [vmem:[%s252] sm:$0xff]
        %v307 = vld [vmem:[%s252 + $0x8] sm:$0xff]
        %v308 = vld [vmem:[%s252 + $0x10] sm:$0xff]
        %v309 = vld [vmem:[%s252 + $0x18] sm:$0xff]
        %v310 = vld [vmem:[%s252 + $0x20] sm:$0xff]
        %v311 = vld [vmem:[%s252 + $0x28] sm:$0xff]
        %v312 = vld [vmem:[%s252 + $0x30] sm:$0xff]
        %v313 = vld [vmem:[%s252 + $0x38] sm:$0xff]
        %v314 = vld [vmem:[%s252 + $0x40] sm:$0xff]
        %v315 = vld [vmem:[%s252 + $0x48] sm:$0xff]
        %v316 = vld [vmem:[%s252 + $0x50] sm:$0xff]
        %v317 = vld [vmem:[%s252 + $0x58] sm:$0xff]
        %v318 = vld [vmem:[%s252 + $0x60] sm:$0xff]
        %v319 = vld [vmem:[%s252 + $0x68] sm:$0xff]
        %v320 = vld [vmem:[%s252 + $0x70] sm:$0xff]
        %v321 = vld [vmem:[%s252 + $0x78] sm:$0xff]
        %v322 = vld [vmem:[%s252 + $0x80] sm:$0xff]
        %v323 = vld [vmem:[%s252 + $0x88] sm:$0xff]
        %v324 = vld [vmem:[%s252 + $0x90] sm:$0xff]
        %v325 = vld [vmem:[%s252 + $0x98] sm:$0xff]
        %v326 = vpack.c.bf16 %v307, %v306
        %v327 = vpack.c.bf16 %v309, %v308
        %v328 = vpack.c.bf16 %v311, %v310
        %v329 = vpack.c.bf16 %v313, %v312
        %v330 = vpack.c.bf16 %v315, %v314
        %v331 = vpack.c.bf16 %v317, %v316
        %v332 = vpack.c.bf16 %v319, %v318
        %v333 = vpack.c.bf16 %v321, %v320
        %v334 = vpack.c.bf16 %v323, %v322
        %v335 = vpack.c.bf16 %v325, %v324
        %v336 = vld [vmem:[#allocation5] sm:$0xff]
        %v337 = vld [vmem:[#allocation5 + $0x8] sm:$0xff]
        %v338 = vld [vmem:[#allocation5 + $0x10] sm:$0xff]
        %v339 = vld [vmem:[#allocation5 + $0x18] sm:$0xff]
        %v340 = vld [vmem:[#allocation5 + $0x20] sm:$0xff]
        %v341 = vld [vmem:[#allocation5 + $0x28] sm:$0xff]
        %v342 = vld [vmem:[#allocation5 + $0x30] sm:$0xff]
        %v343 = vld [vmem:[#allocation5 + $0x38] sm:$0xff]
        %v344 = vld [vmem:[#allocation5 + $0x40] sm:$0xff]
        %v345 = vld [vmem:[#allocation5 + $0x48] sm:$0xff]
        %v346 = vld [vmem:[#allocation5 + $0x50] sm:$0xff]
        %v347 = vld [vmem:[#allocation5 + $0x58] sm:$0xff]
        %v348 = vld [vmem:[#allocation5 + $0x60] sm:$0xff]
        %v349 = vld [vmem:[#allocation5 + $0x68] sm:$0xff]
        %v350 = vld [vmem:[#allocation5 + $0x70] sm:$0xff]
        %v351 = vld [vmem:[#allocation5 + $0x78] sm:$0xff]
        %v352 = vld [vmem:[#allocation5 + $0x80] sm:$0xff]
        %v353 = vld [vmem:[#allocation5 + $0x88] sm:$0xff]
        %v354 = vld [vmem:[#allocation5 + $0x90] sm:$0xff]
        %v355 = vld [vmem:[#allocation5 + $0x98] sm:$0xff]
        %v356 = vld [vmem:[#allocation5 + $0xa0] sm:$0xff]
        %v357 = vld [vmem:[#allocation5 + $0xa8] sm:$0xff]
        %v358 = vld [vmem:[#allocation5 + $0xb0] sm:$0xff]
        %v359 = vld [vmem:[#allocation5 + $0xb8] sm:$0xff]
        %v360 = vld [vmem:[#allocation5 + $0xc0] sm:$0xff]
        %v361 = vld [vmem:[#allocation5 + $0xc8] sm:$0xff]
        %v362 = vld [vmem:[#allocation5 + $0xd0] sm:$0xff]
        %v363 = vld [vmem:[#allocation5 + $0xd8] sm:$0xff]
        %v364 = vld [vmem:[#allocation5 + $0xe0] sm:$0xff]
        %v365 = vld [vmem:[#allocation5 + $0xe8] sm:$0xff]
        %v366 = vld [vmem:[#allocation5 + $0xf0] sm:$0xff]
        %v367 = vld [vmem:[#allocation5 + $0xf8] sm:$0xff]
        %v400 = vunpack.c.l.b16 %v336
        %v401 = vunpack.c.h.b16 %v336
        %v402 = vunpack.c.l.b16 %v337
        %v403 = vunpack.c.h.b16 %v337
        %v404 = vunpack.c.l.b16 %v338
        %v405 = vunpack.c.h.b16 %v338
        %v406 = vunpack.c.l.b16 %v339
        %v407 = vunpack.c.h.b16 %v339
        %v408 = vunpack.c.l.b16 %v340
        %v409 = vunpack.c.h.b16 %v340
        %v410 = vunpack.c.l.b16 %v341
        %v411 = vunpack.c.h.b16 %v341
        %v412 = vunpack.c.l.b16 %v342
        %v413 = vunpack.c.h.b16 %v342
        %v414 = vunpack.c.l.b16 %v343
        %v415 = vunpack.c.h.b16 %v343
        %v416 = vunpack.c.l.b16 %v344
        %v417 = vunpack.c.h.b16 %v344
        %v418 = vunpack.c.l.b16 %v345
        %v419 = vunpack.c.h.b16 %v345
        %v420 = vunpack.c.l.b16 %v346
        %v421 = vunpack.c.h.b16 %v346
        %v422 = vunpack.c.l.b16 %v347
        %v423 = vunpack.c.h.b16 %v347
        %v424 = vunpack.c.l.b16 %v348
        %v425 = vunpack.c.h.b16 %v348
        %v426 = vunpack.c.l.b16 %v349
        %v427 = vunpack.c.h.b16 %v349
        %v428 = vunpack.c.l.b16 %v350
        %v429 = vunpack.c.h.b16 %v350
        %v430 = vunpack.c.l.b16 %v351
        %v431 = vunpack.c.h.b16 %v351
        %v432 = vunpack.c.l.b16 %v352
        %v433 = vunpack.c.h.b16 %v352
        %v434 = vunpack.c.l.b16 %v353
        %v435 = vunpack.c.h.b16 %v353
        %v436 = vunpack.c.l.b16 %v354
        %v437 = vunpack.c.h.b16 %v354
        %v438 = vunpack.c.l.b16 %v355
        %v439 = vunpack.c.h.b16 %v355
        %v440 = vunpack.c.l.b16 %v356
        %v441 = vunpack.c.h.b16 %v356
        %v442 = vunpack.c.l.b16 %v357
        %v443 = vunpack.c.h.b16 %v357
        %v444 = vunpack.c.l.b16 %v358
        %v445 = vunpack.c.h.b16 %v358
        %v446 = vunpack.c.l.b16 %v359
        %v447 = vunpack.c.h.b16 %v359
        %v448 = vunpack.c.l.b16 %v360
        %v449 = vunpack.c.h.b16 %v360
        %v450 = vunpack.c.l.b16 %v361
        %v451 = vunpack.c.h.b16 %v361
        %v452 = vunpack.c.l.b16 %v362
        %v453 = vunpack.c.h.b16 %v362
        %v454 = vunpack.c.l.b16 %v363
        %v455 = vunpack.c.h.b16 %v363
        %v456 = vunpack.c.l.b16 %v364
        %v457 = vunpack.c.h.b16 %v364
        %v458 = vunpack.c.l.b16 %v365
        %v459 = vunpack.c.h.b16 %v365
        %v460 = vunpack.c.l.b16 %v366
        %v461 = vunpack.c.h.b16 %v366
        %v462 = vunpack.c.l.b16 %v367
        %v463 = vunpack.c.h.b16 %v367
        %v464 = vpack.c.b16 %v404, %v400
        %v465 = vpack.c.b16 %v405, %v401
        %v466 = vpack.c.b16 %v406, %v402
        %v467 = vpack.c.b16 %v407, %v403
        %v468 = vpack.c.b16 %v412, %v408
        %v469 = vpack.c.b16 %v413, %v409
        %v470 = vpack.c.b16 %v414, %v410
        %v471 = vpack.c.b16 %v415, %v411
        %v472 = vpack.c.b16 %v420, %v416
        %v473 = vpack.c.b16 %v421, %v417
        %v474 = vpack.c.b16 %v422, %v418
        %v475 = vpack.c.b16 %v423, %v419
        %v476 = vpack.c.b16 %v428, %v424
        %v477 = vpack.c.b16 %v429, %v425
        %v478 = vpack.c.b16 %v430, %v426
        %v479 = vpack.c.b16 %v431, %v427
        %v480 = vpack.c.b16 %v436, %v432
        %v481 = vpack.c.b16 %v437, %v433
        %v482 = vpack.c.b16 %v438, %v434
        %v483 = vpack.c.b16 %v439, %v435
        %v484 = vpack.c.b16 %v444, %v440
        %v485 = vpack.c.b16 %v445, %v441
        %v486 = vpack.c.b16 %v446, %v442
        %v487 = vpack.c.b16 %v447, %v443
        %v488 = vpack.c.b16 %v452, %v448
        %v489 = vpack.c.b16 %v453, %v449
        %v490 = vpack.c.b16 %v454, %v450
        %v491 = vpack.c.b16 %v455, %v451
        %v492 = vpack.c.b16 %v460, %v456
        %v493 = vpack.c.b16 %v461, %v457
        %v494 = vpack.c.b16 %v462, %v458
        %v495 = vpack.c.b16 %v463, %v459
        %528 = vmatprep.subr.bf16.mxu0 %v493
        %529 = vmatpush1.bf16.msra.mxu0 %v492
        %530 = vmatprep.subr.bf16.mxu0 %v489
        %531 = vmatpush1.bf16.msra.mxu0 %v488
        %532 = vmatprep.subr.bf16.mxu0 %v485
        %533 = vmatpush1.bf16.msra.mxu0 %v484
        %534 = vmatprep.subr.bf16.mxu0 %v481
        %535 = vmatpush1.bf16.msra.mxu0 %v480
        %536 = vmatprep.subr.bf16.mxu0 %v477
        %537 = vmatpush1.bf16.msra.mxu0 %v476
        %538 = vmatprep.subr.bf16.mxu0 %v473
        %539 = vmatpush1.bf16.msra.mxu0 %v472
        %540 = vmatprep.subr.bf16.mxu0 %v469
        %541 = vmatpush1.bf16.msra.mxu0 %v468
        %542 = vmatprep.subr.bf16.mxu0 %v465
        %543 = vmatpush1.bf16.msra.mxu0 %v464
        %544 = vmatprep.subr.bf16.mxu0 0
        %545 = vmatpush2.bf16.msra.mxu0 0
        %546 = vmatprep.subr.bf16.mxu0 0
        %547 = vmatpush2.bf16.msra.mxu0 0
        %548 = vmatprep.subr.bf16.mxu0 0
        %549 = vmatpush2.bf16.msra.mxu0 0
        %550 = vmatprep.subr.bf16.mxu0 0
        %551 = vmatpush2.bf16.msra.mxu0 0
        %552 = vmatprep.subr.bf16.mxu0 0
        %553 = vmatpush2.bf16.msra.mxu0 0
        %554 = vmatprep.subr.bf16.mxu0 0
        %555 = vmatpush2.bf16.msra.mxu0 0
        %556 = vmatprep.subr.bf16.mxu0 0
        %557 = vmatpush2.bf16.msra.mxu0 0
        %558 = vmatprep.subr.bf16.mxu0 0
        %559 = vmatpush2.bf16.msra.mxu0 0
        %560 = vmatprep.mubr.bf16.mxu0 0
        %561 = vmatmul.mubr.bf16.gmra.mxu0 %v326
        %v562 = vpop.f32.mrf.mxu0
        %v563 = vadd.f32 0.0, %v562
        %v564 = vpop.f32.mrf.mxu0
        %v565 = vadd.f32 0.0, %v564
        %v566 = vpop.f32.mrf.mxu0
        %v567 = vadd.f32 0.0, %v566
        %v568 = vpop.f32.mrf.mxu0
        %v569 = vadd.f32 0.0, %v568
        %570 = vmatprep.mubr.bf16.mxu0 0
        %571 = vmatmul.mubr.bf16.gmra.mxu0 %v327
        %v572 = vpop.f32.mrf.mxu0
        %v573 = vadd.f32 0.0, %v572
        %v574 = vpop.f32.mrf.mxu0
        %v575 = vadd.f32 0.0, %v574
        %v576 = vpop.f32.mrf.mxu0
        %v577 = vadd.f32 0.0, %v576
        %v578 = vpop.f32.mrf.mxu0
        %v579 = vadd.f32 0.0, %v578
        %580 = vmatprep.mubr.bf16.mxu0 0
        %581 = vmatmul.mubr.bf16.gmra.mxu0 %v328
        %v582 = vpop.f32.mrf.mxu0
        %v583 = vadd.f32 0.0, %v582
        %v584 = vpop.f32.mrf.mxu0
        %v585 = vadd.f32 0.0, %v584
        %v586 = vpop.f32.mrf.mxu0
        %v587 = vadd.f32 0.0, %v586
        %v588 = vpop.f32.mrf.mxu0
        %v589 = vadd.f32 0.0, %v588
        %590 = vmatprep.mubr.bf16.mxu0 0
        %591 = vmatmul.mubr.bf16.gmra.mxu0 %v329
        %v592 = vpop.f32.mrf.mxu0
        %v593 = vadd.f32 0.0, %v592
        %v594 = vpop.f32.mrf.mxu0
        %v595 = vadd.f32 0.0, %v594
        %v596 = vpop.f32.mrf.mxu0
        %v597 = vadd.f32 0.0, %v596
        %v598 = vpop.f32.mrf.mxu0
        %v599 = vadd.f32 0.0, %v598
        %600 = vmatprep.mubr.bf16.mxu0 0
        %601 = vmatmul.mubr.bf16.gmra.mxu0 %v330
        %v602 = vpop.f32.mrf.mxu0
        %v603 = vadd.f32 0.0, %v602
        %v604 = vpop.f32.mrf.mxu0
        %v605 = vadd.f32 0.0, %v604
        %v606 = vpop.f32.mrf.mxu0
        %v607 = vadd.f32 0.0, %v606
        %v608 = vpop.f32.mrf.mxu0
        %v609 = vadd.f32 0.0, %v608
        %610 = vmatprep.mubr.bf16.mxu0 0
        %611 = vmatmul.mubr.bf16.gmra.mxu0 %v331
        %v612 = vpop.f32.mrf.mxu0
        %v613 = vadd.f32 0.0, %v612
        %v614 = vpop.f32.mrf.mxu0
        %v615 = vadd.f32 0.0, %v614
        %v616 = vpop.f32.mrf.mxu0
        %v617 = vadd.f32 0.0, %v616
        %v618 = vpop.f32.mrf.mxu0
        %v619 = vadd.f32 0.0, %v618
        %620 = vmatprep.mubr.bf16.mxu0 0
        %621 = vmatmul.mubr.bf16.gmra.mxu0 %v332
        %v622 = vpop.f32.mrf.mxu0
        %v623 = vadd.f32 0.0, %v622
        %v624 = vpop.f32.mrf.mxu0
        %v625 = vadd.f32 0.0, %v624
        %v626 = vpop.f32.mrf.mxu0
        %v627 = vadd.f32 0.0, %v626
        %v628 = vpop.f32.mrf.mxu0
        %v629 = vadd.f32 0.0, %v628
        %630 = vmatprep.mubr.bf16.mxu0 0
        %631 = vmatmul.mubr.bf16.gmra.mxu0 %v333
        %v632 = vpop.f32.mrf.mxu0
        %v633 = vadd.f32 0.0, %v632
        %v634 = vpop.f32.mrf.mxu0
        %v635 = vadd.f32 0.0, %v634
        %v636 = vpop.f32.mrf.mxu0
        %v637 = vadd.f32 0.0, %v636
        %v638 = vpop.f32.mrf.mxu0
        %v639 = vadd.f32 0.0, %v638
        %640 = vmatprep.mubr.bf16.mxu0 0
        %641 = vmatmul.mubr.bf16.gmra.mxu0 %v334
        %v642 = vpop.f32.mrf.mxu0
        %v643 = vadd.f32 0.0, %v642
        %v644 = vpop.f32.mrf.mxu0
        %v645 = vadd.f32 0.0, %v644
        %v646 = vpop.f32.mrf.mxu0
        %v647 = vadd.f32 0.0, %v646
        %v648 = vpop.f32.mrf.mxu0
        %v649 = vadd.f32 0.0, %v648
        %650 = vmatprep.mubr.bf16.mxu0 0
        %651 = vmatmul.mubr.bf16.gmra.mxu0 %v335
        %v652 = vpop.f32.mrf.mxu0
        %v653 = vadd.f32 0.0, %v652
        %v654 = vpop.f32.mrf.mxu0
        %v655 = vadd.f32 0.0, %v654
        %v656 = vpop.f32.mrf.mxu0
        %v657 = vadd.f32 0.0, %v656
        %v658 = vpop.f32.mrf.mxu0
        %v659 = vadd.f32 0.0, %v658
        %660 = vdwg.mxu0
        %661 = vmatprep.subr.bf16.mxu0 %v495
        %662 = vmatpush1.bf16.msra.mxu0 %v494
        %663 = vmatprep.subr.bf16.mxu0 %v491
        %664 = vmatpush1.bf16.msra.mxu0 %v490
        %665 = vmatprep.subr.bf16.mxu0 %v487
        %666 = vmatpush1.bf16.msra.mxu0 %v486
        %667 = vmatprep.subr.bf16.mxu0 %v483
        %668 = vmatpush1.bf16.msra.mxu0 %v482
        %669 = vmatprep.subr.bf16.mxu0 %v479
        %670 = vmatpush1.bf16.msra.mxu0 %v478
        %671 = vmatprep.subr.bf16.mxu0 %v475
        %672 = vmatpush1.bf16.msra.mxu0 %v474
        %673 = vmatprep.subr.bf16.mxu0 %v471
        %674 = vmatpush1.bf16.msra.mxu0 %v470
        %675 = vmatprep.subr.bf16.mxu0 %v467
        %676 = vmatpush1.bf16.msra.mxu0 %v466
        %677 = vmatprep.subr.bf16.mxu0 0
        %678 = vmatpush2.bf16.msra.mxu0 0
        %679 = vmatprep.subr.bf16.mxu0 0
        %680 = vmatpush2.bf16.msra.mxu0 0
        %681 = vmatprep.subr.bf16.mxu0 0
        %682 = vmatpush2.bf16.msra.mxu0 0
        %683 = vmatprep.subr.bf16.mxu0 0
        %684 = vmatpush2.bf16.msra.mxu0 0
        %685 = vmatprep.subr.bf16.mxu0 0
        %686 = vmatpush2.bf16.msra.mxu0 0
        %687 = vmatprep.subr.bf16.mxu0 0
        %688 = vmatpush2.bf16.msra.mxu0 0
        %689 = vmatprep.subr.bf16.mxu0 0
        %690 = vmatpush2.bf16.msra.mxu0 0
        %691 = vmatprep.subr.bf16.mxu0 0
        %692 = vmatpush2.bf16.msra.mxu0 0
        %693 = vmatprep.mubr.bf16.mxu0 0
        %694 = vmatmul.mubr.bf16.gmra.mxu0 %v326
        %v695 = vpop.f32.mrf.mxu0
        %v696 = vadd.f32 0.0, %v695
        %v697 = vpop.f32.mrf.mxu0
        %v698 = vadd.f32 0.0, %v697
        %v699 = vpop.f32.mrf.mxu0
        %v700 = vadd.f32 0.0, %v699
        %v701 = vpop.f32.mrf.mxu0
        %v702 = vadd.f32 0.0, %v701
        %703 = vmatprep.mubr.bf16.mxu0 0
        %704 = vmatmul.mubr.bf16.gmra.mxu0 %v327
        %v705 = vpop.f32.mrf.mxu0
        %v706 = vadd.f32 0.0, %v705
        %v707 = vpop.f32.mrf.mxu0
        %v708 = vadd.f32 0.0, %v707
        %v709 = vpop.f32.mrf.mxu0
        %v710 = vadd.f32 0.0, %v709
        %v711 = vpop.f32.mrf.mxu0
        %v712 = vadd.f32 0.0, %v711
        %713 = vmatprep.mubr.bf16.mxu0 0
        %714 = vmatmul.mubr.bf16.gmra.mxu0 %v328
        %v715 = vpop.f32.mrf.mxu0
        %v716 = vadd.f32 0.0, %v715
        %v717 = vpop.f32.mrf.mxu0
        %v718 = vadd.f32 0.0, %v717
        %v719 = vpop.f32.mrf.mxu0
        %v720 = vadd.f32 0.0, %v719
        %v721 = vpop.f32.mrf.mxu0
        %v722 = vadd.f32 0.0, %v721
        %723 = vmatprep.mubr.bf16.mxu0 0
        %724 = vmatmul.mubr.bf16.gmra.mxu0 %v329
        %v725 = vpop.f32.mrf.mxu0
        %v726 = vadd.f32 0.0, %v725
        %v727 = vpop.f32.mrf.mxu0
        %v728 = vadd.f32 0.0, %v727
        %v729 = vpop.f32.mrf.mxu0
        %v730 = vadd.f32 0.0, %v729
        %v731 = vpop.f32.mrf.mxu0
        %v732 = vadd.f32 0.0, %v731
        %733 = vmatprep.mubr.bf16.mxu0 0
        %734 = vmatmul.mubr.bf16.gmra.mxu0 %v330
        %v735 = vpop.f32.mrf.mxu0
        %v736 = vadd.f32 0.0, %v735
        %v737 = vpop.f32.mrf.mxu0
        %v738 = vadd.f32 0.0, %v737
        %v739 = vpop.f32.mrf.mxu0
        %v740 = vadd.f32 0.0, %v739
        %v741 = vpop.f32.mrf.mxu0
        %v742 = vadd.f32 0.0, %v741
        %743 = vmatprep.mubr.bf16.mxu0 0
        %744 = vmatmul.mubr.bf16.gmra.mxu0 %v331
        %v745 = vpop.f32.mrf.mxu0
        %v746 = vadd.f32 0.0, %v745
        %v747 = vpop.f32.mrf.mxu0
        %v748 = vadd.f32 0.0, %v747
        %v749 = vpop.f32.mrf.mxu0
        %v750 = vadd.f32 0.0, %v749
        %v751 = vpop.f32.mrf.mxu0
        %v752 = vadd.f32 0.0, %v751
        %753 = vmatprep.mubr.bf16.mxu0 0
        %754 = vmatmul.mubr.bf16.gmra.mxu0 %v332
        %v755 = vpop.f32.mrf.mxu0
        %v756 = vadd.f32 0.0, %v755
        %v757 = vpop.f32.mrf.mxu0
        %v758 = vadd.f32 0.0, %v757
        %v759 = vpop.f32.mrf.mxu0
        %v760 = vadd.f32 0.0, %v759
        %v761 = vpop.f32.mrf.mxu0
        %v762 = vadd.f32 0.0, %v761
        %763 = vmatprep.mubr.bf16.mxu0 0
        %764 = vmatmul.mubr.bf16.gmra.mxu0 %v333
        %v765 = vpop.f32.mrf.mxu0
        %v766 = vadd.f32 0.0, %v765
        %v767 = vpop.f32.mrf.mxu0
        %v768 = vadd.f32 0.0, %v767
        %v769 = vpop.f32.mrf.mxu0
        %v770 = vadd.f32 0.0, %v769
        %v771 = vpop.f32.mrf.mxu0
        %v772 = vadd.f32 0.0, %v771
        %773 = vmatprep.mubr.bf16.mxu0 0
        %774 = vmatmul.mubr.bf16.gmra.mxu0 %v334
        %v775 = vpop.f32.mrf.mxu0
        %v776 = vadd.f32 0.0, %v775
        %v777 = vpop.f32.mrf.mxu0
        %v778 = vadd.f32 0.0, %v777
        %v779 = vpop.f32.mrf.mxu0
        %v780 = vadd.f32 0.0, %v779
        %v781 = vpop.f32.mrf.mxu0
        %v782 = vadd.f32 0.0, %v781
        %783 = vmatprep.mubr.bf16.mxu0 0
        %784 = vmatmul.mubr.bf16.gmra.mxu0 %v335
        %v785 = vpop.f32.mrf.mxu0
        %v786 = vadd.f32 0.0, %v785
        %v787 = vpop.f32.mrf.mxu0
        %v788 = vadd.f32 0.0, %v787
        %v789 = vpop.f32.mrf.mxu0
        %v790 = vadd.f32 0.0, %v789
        %v791 = vpop.f32.mrf.mxu0
        %v792 = vadd.f32 0.0, %v791
        %793 = vdwg.mxu0
        %v794 = vpack.c.bf16 %v567, %v563
        %v795 = vpack.c.bf16 %v569, %v565
        %v796 = vpack.c.bf16 %v700, %v696
        %v797 = vpack.c.bf16 %v702, %v698
        %v798 = vpack.c.bf16 %v577, %v573
        %v799 = vpack.c.bf16 %v579, %v575
        %v800 = vpack.c.bf16 %v710, %v706
        %v801 = vpack.c.bf16 %v712, %v708
        %v802 = vpack.c.bf16 %v587, %v583
        %v803 = vpack.c.bf16 %v589, %v585
        %v804 = vpack.c.bf16 %v720, %v716
        %v805 = vpack.c.bf16 %v722, %v718
        %v806 = vpack.c.bf16 %v597, %v593
        %v807 = vpack.c.bf16 %v599, %v595
        %v808 = vpack.c.bf16 %v730, %v726
        %v809 = vpack.c.bf16 %v732, %v728
        %v810 = vpack.c.bf16 %v607, %v603
        %v811 = vpack.c.bf16 %v609, %v605
        %v812 = vpack.c.bf16 %v740, %v736
        %v813 = vpack.c.bf16 %v742, %v738
        %v814 = vpack.c.bf16 %v617, %v613
        %v815 = vpack.c.bf16 %v619, %v615
        %v816 = vpack.c.bf16 %v750, %v746
        %v817 = vpack.c.bf16 %v752, %v748
        %v818 = vpack.c.bf16 %v627, %v623
        %v819 = vpack.c.bf16 %v629, %v625
        %v820 = vpack.c.bf16 %v760, %v756
        %v821 = vpack.c.bf16 %v762, %v758
        %v822 = vpack.c.bf16 %v637, %v633
        %v823 = vpack.c.bf16 %v639, %v635
        %v824 = vpack.c.bf16 %v770, %v766
        %v825 = vpack.c.bf16 %v772, %v768
        %v826 = vpack.c.bf16 %v647, %v643
        %v827 = vpack.c.bf16 %v649, %v645
        %v828 = vpack.c.bf16 %v780, %v776
        %v829 = vpack.c.bf16 %v782, %v778
        %v830 = vpack.c.bf16 %v657, %v653
        %v831 = vpack.c.bf16 %v659, %v655
        %v832 = vpack.c.bf16 %v790, %v786
        %v833 = vpack.c.bf16 %v792, %v788
        %v834 = vld [vmem:[#allocation7] sm:$0xf]
        %v837 = vunpack.c.l.s4 1966171168
        %v838 = vunpack.c.0.s8 %v837
        %v839 = vlaneseq
        %v840 = vshrl.u32 %v839, 7
        %v841 = vsub.s32 %v838, %v840
        %v842 = vrot.slane %v834, %v841
        %v843 = vcombine.high %v842, %v842
        %v845 = vunpack.c.l.s4 1966171168
        %v846 = vunpack.c.0.s8 %v845
        %v847 = vlaneseq
        %v848 = vshrl.u32 %v847, 7
        %v849 = vsub.s32 %v846, %v848
        %v850 = vrot.slane %v842, %v849
        %v852 = vunpack.c.l.s4 1966171168
        %v853 = vunpack.c.0.s8 %v852
        %v854 = vlaneseq
        %v855 = vshrl.u32 %v854, 7
        %v856 = vsub.s32 %v853, %v855
        %v857 = vrot.slane %v843, %v856
        %v858 = vcombine.high %v850, %v850
        %v859 = vcombine.high %v857, %v857
        %v861 = vpack.i.b16 %v850, %v850
        %v863 = vlaneseq
        %v864 = vshrl.u32 %v863, 7
        %v865 = vsub.s32 0, %v864
        %v866 = vrot.slane %v861, %v865
        %v868 = vpack.i.b16 %v857, %v857
        %v870 = vlaneseq
        %v871 = vshrl.u32 %v870, 7
        %v872 = vsub.s32 0, %v871
        %v873 = vrot.slane %v868, %v872
        %v875 = vpack.i.b16 %v858, %v858
        %v877 = vlaneseq
        %v878 = vshrl.u32 %v877, 7
        %v879 = vsub.s32 0, %v878
        %v880 = vrot.slane %v875, %v879
        %v882 = vpack.i.b16 %v859, %v859
        %v884 = vlaneseq
        %v885 = vshrl.u32 %v884, 7
        %v886 = vsub.s32 0, %v885
        %v887 = vrot.slane %v882, %v886
        %v888 = vadd.bf16 %v794, %v866
        %v889 = vadd.bf16 %v795, %v873
        %v890 = vadd.bf16 %v796, %v880
        %v891 = vadd.bf16 %v797, %v887
        %v892 = vadd.bf16 %v798, %v866
        %v893 = vadd.bf16 %v799, %v873
        %v894 = vadd.bf16 %v800, %v880
        %v895 = vadd.bf16 %v801, %v887
        %v896 = vadd.bf16 %v802, %v866
        %v897 = vadd.bf16 %v803, %v873
        %v898 = vadd.bf16 %v804, %v880
        %v899 = vadd.bf16 %v805, %v887
        %v900 = vadd.bf16 %v806, %v866
        %v901 = vadd.bf16 %v807, %v873
        %v902 = vadd.bf16 %v808, %v880
        %v903 = vadd.bf16 %v809, %v887
        %v904 = vadd.bf16 %v810, %v866
        %v905 = vadd.bf16 %v811, %v873
        %v906 = vadd.bf16 %v812, %v880
        %v907 = vadd.bf16 %v813, %v887
        %v908 = vadd.bf16 %v814, %v866
        %v909 = vadd.bf16 %v815, %v873
        %v910 = vadd.bf16 %v816, %v880
        %v911 = vadd.bf16 %v817, %v887
        %v912 = vadd.bf16 %v818, %v866
        %v913 = vadd.bf16 %v819, %v873
        %v914 = vadd.bf16 %v820, %v880
        %v915 = vadd.bf16 %v821, %v887
        %v916 = vadd.bf16 %v822, %v866
        %v917 = vadd.bf16 %v823, %v873
        %v918 = vadd.bf16 %v824, %v880
        %v919 = vadd.bf16 %v825, %v887
        %v920 = vadd.bf16 %v826, %v866
        %v921 = vadd.bf16 %v827, %v873
        %v922 = vadd.bf16 %v828, %v880
        %v923 = vadd.bf16 %v829, %v887
        %v924 = vadd.bf16 %v830, %v866
        %v925 = vadd.bf16 %v831, %v873
        %v926 = vadd.bf16 %v832, %v880
        %v927 = vadd.bf16 %v833, %v887
        %v928 = vmul.bf16 %v888, 1056980736
        %v929 = vmul.bf16 %v889, 1056980736
        %v930 = vmul.bf16 %v890, 1056980736
        %v931 = vmul.bf16 %v891, 1056980736
        %v932 = vmul.bf16 %v892, 1056980736
        %v933 = vmul.bf16 %v893, 1056980736
        %v934 = vmul.bf16 %v894, 1056980736
        %v935 = vmul.bf16 %v895, 1056980736
        %v936 = vmul.bf16 %v896, 1056980736
        %v937 = vmul.bf16 %v897, 1056980736
        %v938 = vmul.bf16 %v898, 1056980736
        %v939 = vmul.bf16 %v899, 1056980736
        %v940 = vmul.bf16 %v900, 1056980736
        %v941 = vmul.bf16 %v901, 1056980736
        %v942 = vmul.bf16 %v902, 1056980736
        %v943 = vmul.bf16 %v903, 1056980736
        %v944 = vmul.bf16 %v904, 1056980736
        %v945 = vmul.bf16 %v905, 1056980736
        %v946 = vmul.bf16 %v906, 1056980736
        %v947 = vmul.bf16 %v907, 1056980736
        %v948 = vmul.bf16 %v908, 1056980736
        %v949 = vmul.bf16 %v909, 1056980736
        %v950 = vmul.bf16 %v910, 1056980736
        %v951 = vmul.bf16 %v911, 1056980736
        %v952 = vmul.bf16 %v912, 1056980736
        %v953 = vmul.bf16 %v913, 1056980736
        %v954 = vmul.bf16 %v914, 1056980736
        %v955 = vmul.bf16 %v915, 1056980736
        %v956 = vmul.bf16 %v916, 1056980736
        %v957 = vmul.bf16 %v917, 1056980736
        %v958 = vmul.bf16 %v918, 1056980736
        %v959 = vmul.bf16 %v919, 1056980736
        %v960 = vmul.bf16 %v920, 1056980736
        %v961 = vmul.bf16 %v921, 1056980736
        %v962 = vmul.bf16 %v922, 1056980736
        %v963 = vmul.bf16 %v923, 1056980736
        %v964 = vmul.bf16 %v924, 1056980736
        %v965 = vmul.bf16 %v925, 1056980736
        %v966 = vmul.bf16 %v926, 1056980736
        %v967 = vmul.bf16 %v927, 1056980736
        %v968 = vmul.bf16 %v888, %v888
        %v969 = vmul.bf16 %v889, %v889
        %v970 = vmul.bf16 %v890, %v890
        %v971 = vmul.bf16 %v891, %v891
        %v972 = vmul.bf16 %v892, %v892
        %v973 = vmul.bf16 %v893, %v893
        %v974 = vmul.bf16 %v894, %v894
        %v975 = vmul.bf16 %v895, %v895
        %v976 = vmul.bf16 %v896, %v896
        %v977 = vmul.bf16 %v897, %v897
        %v978 = vmul.bf16 %v898, %v898
        %v979 = vmul.bf16 %v899, %v899
        %v980 = vmul.bf16 %v900, %v900
        %v981 = vmul.bf16 %v901, %v901
        %v982 = vmul.bf16 %v902, %v902
        %v983 = vmul.bf16 %v903, %v903
        %v984 = vmul.bf16 %v904, %v904
        %v985 = vmul.bf16 %v905, %v905
        %v986 = vmul.bf16 %v906, %v906
        %v987 = vmul.bf16 %v907, %v907
        %v988 = vmul.bf16 %v908, %v908
        %v989 = vmul.bf16 %v909, %v909
        %v990 = vmul.bf16 %v910, %v910
        %v991 = vmul.bf16 %v911, %v911
        %v992 = vmul.bf16 %v912, %v912
        %v993 = vmul.bf16 %v913, %v913
        %v994 = vmul.bf16 %v914, %v914
        %v995 = vmul.bf16 %v915, %v915
        %v996 = vmul.bf16 %v916, %v916
        %v997 = vmul.bf16 %v917, %v917
        %v998 = vmul.bf16 %v918, %v918
        %v999 = vmul.bf16 %v919, %v919
        %v1000 = vmul.bf16 %v920, %v920
        %v1001 = vmul.bf16 %v921, %v921
        %v1002 = vmul.bf16 %v922, %v922
        %v1003 = vmul.bf16 %v923, %v923
        %v1004 = vmul.bf16 %v924, %v924
        %v1005 = vmul.bf16 %v925, %v925
        %v1006 = vmul.bf16 %v926, %v926
        %v1007 = vmul.bf16 %v927, %v927
        %v1008 = vmul.bf16 %v968, %v888
        %v1009 = vmul.bf16 %v969, %v889
        %v1010 = vmul.bf16 %v970, %v890
        %v1011 = vmul.bf16 %v971, %v891
        %v1012 = vmul.bf16 %v972, %v892
        %v1013 = vmul.bf16 %v973, %v893
        %v1014 = vmul.bf16 %v974, %v894
        %v1015 = vmul.bf16 %v975, %v895
        %v1016 = vmul.bf16 %v976, %v896
        %v1017 = vmul.bf16 %v977, %v897
        %v1018 = vmul.bf16 %v978, %v898
        %v1019 = vmul.bf16 %v979, %v899
        %v1020 = vmul.bf16 %v980, %v900
        %v1021 = vmul.bf16 %v981, %v901
        %v1022 = vmul.bf16 %v982, %v902
        %v1023 = vmul.bf16 %v983, %v903
        %v1024 = vmul.bf16 %v984, %v904
        %v1025 = vmul.bf16 %v985, %v905
        %v1026 = vmul.bf16 %v986, %v906
        %v1027 = vmul.bf16 %v987, %v907
        %v1028 = vmul.bf16 %v988, %v908
        %v1029 = vmul.bf16 %v989, %v909
        %v1030 = vmul.bf16 %v990, %v910
        %v1031 = vmul.bf16 %v991, %v911
        %v1032 = vmul.bf16 %v992, %v912
        %v1033 = vmul.bf16 %v993, %v913
        %v1034 = vmul.bf16 %v994, %v914
        %v1035 = vmul.bf16 %v995, %v915
        %v1036 = vmul.bf16 %v996, %v916
        %v1037 = vmul.bf16 %v997, %v917
        %v1038 = vmul.bf16 %v998, %v918
        %v1039 = vmul.bf16 %v999, %v919
        %v1040 = vmul.bf16 %v1000, %v920
        %v1041 = vmul.bf16 %v1001, %v921
        %v1042 = vmul.bf16 %v1002, %v922
        %v1043 = vmul.bf16 %v1003, %v923
        %v1044 = vmul.bf16 %v1004, %v924
        %v1045 = vmul.bf16 %v1005, %v925
        %v1046 = vmul.bf16 %v1006, %v926
        %v1047 = vmul.bf16 %v1007, %v927
        %v1048 = vmul.bf16 %v1008, 1027030327
        %v1049 = vmul.bf16 %v1009, 1027030327
        %v1050 = vmul.bf16 %v1010, 1027030327
        %v1051 = vmul.bf16 %v1011, 1027030327
        %v1052 = vmul.bf16 %v1012, 1027030327
        %v1053 = vmul.bf16 %v1013, 1027030327
        %v1054 = vmul.bf16 %v1014, 1027030327
        %v1055 = vmul.bf16 %v1015, 1027030327
        %v1056 = vmul.bf16 %v1016, 1027030327
        %v1057 = vmul.bf16 %v1017, 1027030327
        %v1058 = vmul.bf16 %v1018, 1027030327
        %v1059 = vmul.bf16 %v1019, 1027030327
        %v1060 = vmul.bf16 %v1020, 1027030327
        %v1061 = vmul.bf16 %v1021, 1027030327
        %v1062 = vmul.bf16 %v1022, 1027030327
        %v1063 = vmul.bf16 %v1023, 1027030327
        %v1064 = vmul.bf16 %v1024, 1027030327
        %v1065 = vmul.bf16 %v1025, 1027030327
        %v1066 = vmul.bf16 %v1026, 1027030327
        %v1067 = vmul.bf16 %v1027, 1027030327
        %v1068 = vmul.bf16 %v1028, 1027030327
        %v1069 = vmul.bf16 %v1029, 1027030327
        %v1070 = vmul.bf16 %v1030, 1027030327
        %v1071 = vmul.bf16 %v1031, 1027030327
        %v1072 = vmul.bf16 %v1032, 1027030327
        %v1073 = vmul.bf16 %v1033, 1027030327
        %v1074 = vmul.bf16 %v1034, 1027030327
        %v1075 = vmul.bf16 %v1035, 1027030327
        %v1076 = vmul.bf16 %v1036, 1027030327
        %v1077 = vmul.bf16 %v1037, 1027030327
        %v1078 = vmul.bf16 %v1038, 1027030327
        %v1079 = vmul.bf16 %v1039, 1027030327
        %v1080 = vmul.bf16 %v1040, 1027030327
        %v1081 = vmul.bf16 %v1041, 1027030327
        %v1082 = vmul.bf16 %v1042, 1027030327
        %v1083 = vmul.bf16 %v1043, 1027030327
        %v1084 = vmul.bf16 %v1044, 1027030327
        %v1085 = vmul.bf16 %v1045, 1027030327
        %v1086 = vmul.bf16 %v1046, 1027030327
        %v1087 = vmul.bf16 %v1047, 1027030327
        %v1088 = vadd.bf16 %v888, %v1048
        %v1089 = vadd.bf16 %v889, %v1049
        %v1090 = vadd.bf16 %v890, %v1050
        %v1091 = vadd.bf16 %v891, %v1051
        %v1092 = vadd.bf16 %v892, %v1052
        %v1093 = vadd.bf16 %v893, %v1053
        %v1094 = vadd.bf16 %v894, %v1054
        %v1095 = vadd.bf16 %v895, %v1055
        %v1096 = vadd.bf16 %v896, %v1056
        %v1097 = vadd.bf16 %v897, %v1057
        %v1098 = vadd.bf16 %v898, %v1058
        %v1099 = vadd.bf16 %v899, %v1059
        %v1100 = vadd.bf16 %v900, %v1060
        %v1101 = vadd.bf16 %v901, %v1061
        %v1102 = vadd.bf16 %v902, %v1062
        %v1103 = vadd.bf16 %v903, %v1063
        %v1104 = vadd.bf16 %v904, %v1064
        %v1105 = vadd.bf16 %v905, %v1065
        %v1106 = vadd.bf16 %v906, %v1066
        %v1107 = vadd.bf16 %v907, %v1067
        %v1108 = vadd.bf16 %v908, %v1068
        %v1109 = vadd.bf16 %v909, %v1069
        %v1110 = vadd.bf16 %v910, %v1070
        %v1111 = vadd.bf16 %v911, %v1071
        %v1112 = vadd.bf16 %v912, %v1072
        %v1113 = vadd.bf16 %v913, %v1073
        %v1114 = vadd.bf16 %v914, %v1074
        %v1115 = vadd.bf16 %v915, %v1075
        %v1116 = vadd.bf16 %v916, %v1076
        %v1117 = vadd.bf16 %v917, %v1077
        %v1118 = vadd.bf16 %v918, %v1078
        %v1119 = vadd.bf16 %v919, %v1079
        %v1120 = vadd.bf16 %v920, %v1080
        %v1121 = vadd.bf16 %v921, %v1081
        %v1122 = vadd.bf16 %v922, %v1082
        %v1123 = vadd.bf16 %v923, %v1083
        %v1124 = vadd.bf16 %v924, %v1084
        %v1125 = vadd.bf16 %v925, %v1085
        %v1126 = vadd.bf16 %v926, %v1086
        %v1127 = vadd.bf16 %v927, %v1087
        %v1128 = vmul.bf16 %v1088, 1061961548
        %v1129 = vmul.bf16 %v1089, 1061961548
        %v1130 = vmul.bf16 %v1090, 1061961548
        %v1131 = vmul.bf16 %v1091, 1061961548
        %v1132 = vmul.bf16 %v1092, 1061961548
        %v1133 = vmul.bf16 %v1093, 1061961548
        %v1134 = vmul.bf16 %v1094, 1061961548
        %v1135 = vmul.bf16 %v1095, 1061961548
        %v1136 = vmul.bf16 %v1096, 1061961548
        %v1137 = vmul.bf16 %v1097, 1061961548
        %v1138 = vmul.bf16 %v1098, 1061961548
        %v1139 = vmul.bf16 %v1099, 1061961548
        %v1140 = vmul.bf16 %v1100, 1061961548
        %v1141 = vmul.bf16 %v1101, 1061961548
        %v1142 = vmul.bf16 %v1102, 1061961548
        %v1143 = vmul.bf16 %v1103, 1061961548
        %v1144 = vmul.bf16 %v1104, 1061961548
        %v1145 = vmul.bf16 %v1105, 1061961548
        %v1146 = vmul.bf16 %v1106, 1061961548
        %v1147 = vmul.bf16 %v1107, 1061961548
        %v1148 = vmul.bf16 %v1108, 1061961548
        %v1149 = vmul.bf16 %v1109, 1061961548
        %v1150 = vmul.bf16 %v1110, 1061961548
        %v1151 = vmul.bf16 %v1111, 1061961548
        %v1152 = vmul.bf16 %v1112, 1061961548
        %v1153 = vmul.bf16 %v1113, 1061961548
        %v1154 = vmul.bf16 %v1114, 1061961548
        %v1155 = vmul.bf16 %v1115, 1061961548
        %v1156 = vmul.bf16 %v1116, 1061961548
        %v1157 = vmul.bf16 %v1117, 1061961548
        %v1158 = vmul.bf16 %v1118, 1061961548
        %v1159 = vmul.bf16 %v1119, 1061961548
        %v1160 = vmul.bf16 %v1120, 1061961548
        %v1161 = vmul.bf16 %v1121, 1061961548
        %v1162 = vmul.bf16 %v1122, 1061961548
        %v1163 = vmul.bf16 %v1123, 1061961548
        %v1164 = vmul.bf16 %v1124, 1061961548
        %v1165 = vmul.bf16 %v1125, 1061961548
        %v1166 = vmul.bf16 %v1126, 1061961548
        %v1167 = vmul.bf16 %v1127, 1061961548
        %v1168 = vtanh.bf16.pop %v1128
        %v1169 = vtanh.bf16.pop %v1129
        %v1170 = vtanh.bf16.pop %v1130
        %v1171 = vtanh.bf16.pop %v1131
        %v1172 = vtanh.bf16.pop %v1132
        %v1173 = vtanh.bf16.pop %v1133
        %v1174 = vtanh.bf16.pop %v1134
        %v1175 = vtanh.bf16.pop %v1135
        %v1176 = vtanh.bf16.pop %v1136
        %v1177 = vtanh.bf16.pop %v1137
        %v1178 = vtanh.bf16.pop %v1138
        %v1179 = vtanh.bf16.pop %v1139
        %v1180 = vtanh.bf16.pop %v1140
        %v1181 = vtanh.bf16.pop %v1141
        %v1182 = vtanh.bf16.pop %v1142
        %v1183 = vtanh.bf16.pop %v1143
        %v1184 = vtanh.bf16.pop %v1144
        %v1185 = vtanh.bf16.pop %v1145
        %v1186 = vtanh.bf16.pop %v1146
        %v1187 = vtanh.bf16.pop %v1147
        %v1188 = vtanh.bf16.pop %v1148
        %v1189 = vtanh.bf16.pop %v1149
        %v1190 = vtanh.bf16.pop %v1150
        %v1191 = vtanh.bf16.pop %v1151
        %v1192 = vtanh.bf16.pop %v1152
        %v1193 = vtanh.bf16.pop %v1153
        %v1194 = vtanh.bf16.pop %v1154
        %v1195 = vtanh.bf16.pop %v1155
        %v1196 = vtanh.bf16.pop %v1156
        %v1197 = vtanh.bf16.pop %v1157
        %v1198 = vtanh.bf16.pop %v1158
        %v1199 = vtanh.bf16.pop %v1159
        %v1200 = vtanh.bf16.pop %v1160
        %v1201 = vtanh.bf16.pop %v1161
        %v1202 = vtanh.bf16.pop %v1162
        %v1203 = vtanh.bf16.pop %v1163
        %v1204 = vtanh.bf16.pop %v1164
        %v1205 = vtanh.bf16.pop %v1165
        %v1206 = vtanh.bf16.pop %v1166
        %v1207 = vtanh.bf16.pop %v1167
        %v1208 = vadd.bf16 %v1168, 1065369472
        %v1209 = vadd.bf16 %v1169, 1065369472
        %v1210 = vadd.bf16 %v1170, 1065369472
        %v1211 = vadd.bf16 %v1171, 1065369472
        %v1212 = vadd.bf16 %v1172, 1065369472
        %v1213 = vadd.bf16 %v1173, 1065369472
        %v1214 = vadd.bf16 %v1174, 1065369472
        %v1215 = vadd.bf16 %v1175, 1065369472
        %v1216 = vadd.bf16 %v1176, 1065369472
        %v1217 = vadd.bf16 %v1177, 1065369472
        %v1218 = vadd.bf16 %v1178, 1065369472
        %v1219 = vadd.bf16 %v1179, 1065369472
        %v1220 = vadd.bf16 %v1180, 1065369472
        %v1221 = vadd.bf16 %v1181, 1065369472
        %v1222 = vadd.bf16 %v1182, 1065369472
        %v1223 = vadd.bf16 %v1183, 1065369472
        %v1224 = vadd.bf16 %v1184, 1065369472
        %v1225 = vadd.bf16 %v1185, 1065369472
        %v1226 = vadd.bf16 %v1186, 1065369472
        %v1227 = vadd.bf16 %v1187, 1065369472
        %v1228 = vadd.bf16 %v1188, 1065369472
        %v1229 = vadd.bf16 %v1189, 1065369472
        %v1230 = vadd.bf16 %v1190, 1065369472
        %v1231 = vadd.bf16 %v1191, 1065369472
        %v1232 = vadd.bf16 %v1192, 1065369472
        %v1233 = vadd.bf16 %v1193, 1065369472
        %v1234 = vadd.bf16 %v1194, 1065369472
        %v1235 = vadd.bf16 %v1195, 1065369472
        %v1236 = vadd.bf16 %v1196, 1065369472
        %v1237 = vadd.bf16 %v1197, 1065369472
        %v1238 = vadd.bf16 %v1198, 1065369472
        %v1239 = vadd.bf16 %v1199, 1065369472
        %v1240 = vadd.bf16 %v1200, 1065369472
        %v1241 = vadd.bf16 %v1201, 1065369472
        %v1242 = vadd.bf16 %v1202, 1065369472
        %v1243 = vadd.bf16 %v1203, 1065369472
        %v1244 = vadd.bf16 %v1204, 1065369472
        %v1245 = vadd.bf16 %v1205, 1065369472
        %v1246 = vadd.bf16 %v1206, 1065369472
        %v1247 = vadd.bf16 %v1207, 1065369472
        %v1248 = vmul.bf16 %v928, %v1208
        %v1249 = vmul.bf16 %v929, %v1209
        %v1250 = vmul.bf16 %v930, %v1210
        %v1251 = vmul.bf16 %v931, %v1211
        %v1252 = vmul.bf16 %v932, %v1212
        %v1253 = vmul.bf16 %v933, %v1213
        %v1254 = vmul.bf16 %v934, %v1214
        %v1255 = vmul.bf16 %v935, %v1215
        %v1256 = vmul.bf16 %v936, %v1216
        %v1257 = vmul.bf16 %v937, %v1217
        %v1258 = vmul.bf16 %v938, %v1218
        %v1259 = vmul.bf16 %v939, %v1219
        %v1260 = vmul.bf16 %v940, %v1220
        %v1261 = vmul.bf16 %v941, %v1221
        %v1262 = vmul.bf16 %v942, %v1222
        %v1263 = vmul.bf16 %v943, %v1223
        %v1264 = vmul.bf16 %v944, %v1224
        %v1265 = vmul.bf16 %v945, %v1225
        %v1266 = vmul.bf16 %v946, %v1226
        %v1267 = vmul.bf16 %v947, %v1227
        %v1268 = vmul.bf16 %v948, %v1228
        %v1269 = vmul.bf16 %v949, %v1229
        %v1270 = vmul.bf16 %v950, %v1230
        %v1271 = vmul.bf16 %v951, %v1231
        %v1272 = vmul.bf16 %v952, %v1232
        %v1273 = vmul.bf16 %v953, %v1233
        %v1274 = vmul.bf16 %v954, %v1234
        %v1275 = vmul.bf16 %v955, %v1235
        %v1276 = vmul.bf16 %v956, %v1236
        %v1277 = vmul.bf16 %v957, %v1237
        %v1278 = vmul.bf16 %v958, %v1238
        %v1279 = vmul.bf16 %v959, %v1239
        %v1280 = vmul.bf16 %v960, %v1240
        %v1281 = vmul.bf16 %v961, %v1241
        %v1282 = vmul.bf16 %v962, %v1242
        %v1283 = vmul.bf16 %v963, %v1243
        %v1284 = vmul.bf16 %v964, %v1244
        %v1285 = vmul.bf16 %v965, %v1245
        %v1286 = vmul.bf16 %v966, %v1246
        %v1287 = vmul.bf16 %v967, %v1247
        %v1288 = vld [vmem:[#allocation8] sm:$0xf]
        %v1289 = vld [vmem:[#allocation8 + $0x4] sm:$0xf]
        %v1290 = vld [vmem:[#allocation8 + $0x8] sm:$0xf]
        %v1291 = vld [vmem:[#allocation8 + $0xc] sm:$0xf]
        %v1292 = vld [vmem:[#allocation8 + $0x10] sm:$0xf]
        %v1293 = vld [vmem:[#allocation8 + $0x14] sm:$0xf]
        %v1294 = vld [vmem:[#allocation8 + $0x18] sm:$0xf]
        %v1295 = vld [vmem:[#allocation8 + $0x1c] sm:$0xf]
        %v1296 = vld [vmem:[#allocation8 + $0x20] sm:$0xf]
        %v1297 = vld [vmem:[#allocation8 + $0x24] sm:$0xf]
        %v1298 = vld [vmem:[#allocation8 + $0x28] sm:$0xf]
        %v1299 = vld [vmem:[#allocation8 + $0x2c] sm:$0xf]
        %v1300 = vld [vmem:[#allocation8 + $0x30] sm:$0xf]
        %v1301 = vld [vmem:[#allocation8 + $0x34] sm:$0xf]
        %v1302 = vld [vmem:[#allocation8 + $0x38] sm:$0xf]
        %v1303 = vld [vmem:[#allocation8 + $0x3c] sm:$0xf]
        %v1304 = vld [vmem:[#allocation8 + $0x40] sm:$0xf]
        %v1305 = vld [vmem:[#allocation8 + $0x44] sm:$0xf]
        %v1306 = vld [vmem:[#allocation8 + $0x48] sm:$0xf]
        %v1307 = vld [vmem:[#allocation8 + $0x4c] sm:$0xf]
        %v1308 = vld [vmem:[#allocation8 + $0x50] sm:$0xf]
        %v1309 = vld [vmem:[#allocation8 + $0x54] sm:$0xf]
        %v1310 = vld [vmem:[#allocation8 + $0x58] sm:$0xf]
        %v1311 = vld [vmem:[#allocation8 + $0x5c] sm:$0xf]
        %v1312 = vld [vmem:[#allocation8 + $0x60] sm:$0xf]
        %v1313 = vld [vmem:[#allocation8 + $0x64] sm:$0xf]
        %v1314 = vld [vmem:[#allocation8 + $0x68] sm:$0xf]
        %v1315 = vld [vmem:[#allocation8 + $0x6c] sm:$0xf]
        %v1316 = vld [vmem:[#allocation8 + $0x70] sm:$0xf]
        %v1317 = vld [vmem:[#allocation8 + $0x74] sm:$0xf]
        %v1318 = vld [vmem:[#allocation8 + $0x78] sm:$0xf]
        %v1319 = vld [vmem:[#allocation8 + $0x7c] sm:$0xf]
        %v1320 = vld [vmem:[#allocation8 + $0x80] sm:$0xf]
        %v1321 = vld [vmem:[#allocation8 + $0x84] sm:$0xf]
        %v1322 = vld [vmem:[#allocation8 + $0x88] sm:$0xf]
        %v1323 = vld [vmem:[#allocation8 + $0x8c] sm:$0xf]
        %v1324 = vld [vmem:[#allocation8 + $0x90] sm:$0xf]
        %v1325 = vld [vmem:[#allocation8 + $0x94] sm:$0xf]
        %v1326 = vld [vmem:[#allocation8 + $0x98] sm:$0xf]
        %v1327 = vld [vmem:[#allocation8 + $0x9c] sm:$0xf]
        %v1328 = vld [vmem:[#allocation8 + $0xa0] sm:$0xf]
        %v1329 = vld [vmem:[#allocation8 + $0xa4] sm:$0xf]
        %v1330 = vld [vmem:[#allocation8 + $0xa8] sm:$0xf]
        %v1331 = vld [vmem:[#allocation8 + $0xac] sm:$0xf]
        %v1332 = vld [vmem:[#allocation8 + $0xb0] sm:$0xf]
        %v1333 = vld [vmem:[#allocation8 + $0xb4] sm:$0xf]
        %v1334 = vld [vmem:[#allocation8 + $0xb8] sm:$0xf]
        %v1335 = vld [vmem:[#allocation8 + $0xbc] sm:$0xf]
        %v1336 = vld [vmem:[#allocation8 + $0xc0] sm:$0xf]
        %v1337 = vld [vmem:[#allocation8 + $0xc4] sm:$0xf]
        %v1338 = vld [vmem:[#allocation8 + $0xc8] sm:$0xf]
        %v1339 = vld [vmem:[#allocation8 + $0xcc] sm:$0xf]
        %v1340 = vld [vmem:[#allocation8 + $0xd0] sm:$0xf]
        %v1341 = vld [vmem:[#allocation8 + $0xd4] sm:$0xf]
        %v1342 = vld [vmem:[#allocation8 + $0xd8] sm:$0xf]
        %v1343 = vld [vmem:[#allocation8 + $0xdc] sm:$0xf]
        %v1344 = vld [vmem:[#allocation8 + $0xe0] sm:$0xf]
        %v1345 = vld [vmem:[#allocation8 + $0xe4] sm:$0xf]
        %v1346 = vld [vmem:[#allocation8 + $0xe8] sm:$0xf]
        %v1347 = vld [vmem:[#allocation8 + $0xec] sm:$0xf]
        %v1348 = vld [vmem:[#allocation8 + $0xf0] sm:$0xf]
        %v1349 = vld [vmem:[#allocation8 + $0xf4] sm:$0xf]
        %v1350 = vld [vmem:[#allocation8 + $0xf8] sm:$0xf]
        %v1351 = vld [vmem:[#allocation8 + $0xfc] sm:$0xf]
        %v1352 = vld [vmem:[%s4] sm:$0x1]
        %v1354 = vlaneseq
        %v1355 = vshrl.u32 %v1354, 7
        %v1356 = vsub.s32 0, %v1355
        %v1357 = vrot.slane %v1352, %v1356
        %v1423 = vunpack.c.l.b16 %v1288
        %v1424 = vunpack.c.l.b16 %v1289
        %v1425 = vunpack.c.l.b16 %v1290
        %v1426 = vunpack.c.l.b16 %v1291
        %v1427 = vunpack.c.l.b16 %v1292
        %v1428 = vunpack.c.l.b16 %v1293
        %v1429 = vunpack.c.l.b16 %v1294
        %v1430 = vunpack.c.l.b16 %v1295
        %v1431 = vunpack.c.l.b16 %v1296
        %v1432 = vunpack.c.l.b16 %v1297
        %v1433 = vunpack.c.l.b16 %v1298
        %v1434 = vunpack.c.l.b16 %v1299
        %v1435 = vunpack.c.l.b16 %v1300
        %v1436 = vunpack.c.l.b16 %v1301
        %v1437 = vunpack.c.l.b16 %v1302
        %v1438 = vunpack.c.l.b16 %v1303
        %v1439 = vunpack.c.l.b16 %v1304
        %v1440 = vunpack.c.l.b16 %v1305
        %v1441 = vunpack.c.l.b16 %v1306
        %v1442 = vunpack.c.l.b16 %v1307
        %v1443 = vunpack.c.l.b16 %v1308
        %v1444 = vunpack.c.l.b16 %v1309
        %v1445 = vunpack.c.l.b16 %v1310
        %v1446 = vunpack.c.l.b16 %v1311
        %v1447 = vunpack.c.l.b16 %v1312
        %v1448 = vunpack.c.l.b16 %v1313
        %v1449 = vunpack.c.l.b16 %v1314
        %v1450 = vunpack.c.l.b16 %v1315
        %v1451 = vunpack.c.l.b16 %v1316
        %v1452 = vunpack.c.l.b16 %v1317
        %v1453 = vunpack.c.l.b16 %v1318
        %v1454 = vunpack.c.l.b16 %v1319
        %v1455 = vunpack.c.l.b16 %v1320
        %v1456 = vunpack.c.l.b16 %v1321
        %v1457 = vunpack.c.l.b16 %v1322
        %v1458 = vunpack.c.l.b16 %v1323
        %v1459 = vunpack.c.l.b16 %v1324
        %v1460 = vunpack.c.l.b16 %v1325
        %v1461 = vunpack.c.l.b16 %v1326
        %v1462 = vunpack.c.l.b16 %v1327
        %v1463 = vunpack.c.l.b16 %v1328
        %v1464 = vunpack.c.l.b16 %v1329
        %v1465 = vunpack.c.l.b16 %v1330
        %v1466 = vunpack.c.l.b16 %v1331
        %v1467 = vunpack.c.l.b16 %v1332
        %v1468 = vunpack.c.l.b16 %v1333
        %v1469 = vunpack.c.l.b16 %v1334
        %v1470 = vunpack.c.l.b16 %v1335
        %v1471 = vunpack.c.l.b16 %v1336
        %v1472 = vunpack.c.l.b16 %v1337
        %v1473 = vunpack.c.l.b16 %v1338
        %v1474 = vunpack.c.l.b16 %v1339
        %v1475 = vunpack.c.l.b16 %v1340
        %v1476 = vunpack.c.l.b16 %v1341
        %v1477 = vunpack.c.l.b16 %v1342
        %v1478 = vunpack.c.l.b16 %v1343
        %v1479 = vunpack.c.l.b16 %v1344
        %v1480 = vunpack.c.l.b16 %v1345
        %v1481 = vunpack.c.l.b16 %v1346
        %v1482 = vunpack.c.l.b16 %v1347
        %v1483 = vunpack.c.l.b16 %v1348
        %v1484 = vunpack.c.l.b16 %v1349
        %v1485 = vunpack.c.l.b16 %v1350
        %v1486 = vunpack.c.l.b16 %v1351
        %v1487 = vpack.c.b16 %v1424, %v1423
        %v1488 = vpack.c.b16 %v1426, %v1425
        %v1489 = vpack.c.b16 %v1428, %v1427
        %v1490 = vpack.c.b16 %v1430, %v1429
        %v1491 = vpack.c.b16 %v1432, %v1431
        %v1492 = vpack.c.b16 %v1434, %v1433
        %v1493 = vpack.c.b16 %v1436, %v1435
        %v1494 = vpack.c.b16 %v1438, %v1437
        %v1495 = vpack.c.b16 %v1440, %v1439
        %v1496 = vpack.c.b16 %v1442, %v1441
        %v1497 = vpack.c.b16 %v1444, %v1443
        %v1498 = vpack.c.b16 %v1446, %v1445
        %v1499 = vpack.c.b16 %v1448, %v1447
        %v1500 = vpack.c.b16 %v1450, %v1449
        %v1501 = vpack.c.b16 %v1452, %v1451
        %v1502 = vpack.c.b16 %v1454, %v1453
        %v1503 = vpack.c.b16 %v1456, %v1455
        %v1504 = vpack.c.b16 %v1458, %v1457
        %v1505 = vpack.c.b16 %v1460, %v1459
        %v1506 = vpack.c.b16 %v1462, %v1461
        %v1507 = vpack.c.b16 %v1464, %v1463
        %v1508 = vpack.c.b16 %v1466, %v1465
        %v1509 = vpack.c.b16 %v1468, %v1467
        %v1510 = vpack.c.b16 %v1470, %v1469
        %v1511 = vpack.c.b16 %v1472, %v1471
        %v1512 = vpack.c.b16 %v1474, %v1473
        %v1513 = vpack.c.b16 %v1476, %v1475
        %v1514 = vpack.c.b16 %v1478, %v1477
        %v1515 = vpack.c.b16 %v1480, %v1479
        %v1516 = vpack.c.b16 %v1482, %v1481
        %v1517 = vpack.c.b16 %v1484, %v1483
        %v1518 = vpack.c.b16 %v1486, %v1485
        %1551 = vmatprep.subr.bf16.mxu0 0
        %1552 = vmatpush1.bf16.msra.mxu0 %v1494
        %1553 = vmatprep.subr.bf16.mxu0 0
        %1554 = vmatpush1.bf16.msra.mxu0 %v1493
        %1555 = vmatprep.subr.bf16.mxu0 0
        %1556 = vmatpush1.bf16.msra.mxu0 %v1492
        %1557 = vmatprep.subr.bf16.mxu0 0
        %1558 = vmatpush1.bf16.msra.mxu0 %v1491
        %1559 = vmatprep.subr.bf16.mxu0 0
        %1560 = vmatpush1.bf16.msra.mxu0 %v1490
        %1561 = vmatprep.subr.bf16.mxu0 0
        %1562 = vmatpush1.bf16.msra.mxu0 %v1489
        %1563 = vmatprep.subr.bf16.mxu0 0
        %1564 = vmatpush1.bf16.msra.mxu0 %v1488
        %1565 = vmatprep.subr.bf16.mxu0 0
        %1566 = vmatpush1.bf16.msra.mxu0 %v1487
        %1567 = vmatprep.subr.bf16.mxu0 0
        %1568 = vmatpush2.bf16.msra.mxu0 %v1502
        %1569 = vmatprep.subr.bf16.mxu0 0
        %1570 = vmatpush2.bf16.msra.mxu0 %v1501
        %1571 = vmatprep.subr.bf16.mxu0 0
        %1572 = vmatpush2.bf16.msra.mxu0 %v1500
        %1573 = vmatprep.subr.bf16.mxu0 0
        %1574 = vmatpush2.bf16.msra.mxu0 %v1499
        %1575 = vmatprep.subr.bf16.mxu0 0
        %1576 = vmatpush2.bf16.msra.mxu0 %v1498
        %1577 = vmatprep.subr.bf16.mxu0 0
        %1578 = vmatpush2.bf16.msra.mxu0 %v1497
        %1579 = vmatprep.subr.bf16.mxu0 0
        %1580 = vmatpush2.bf16.msra.mxu0 %v1496
        %1581 = vmatprep.subr.bf16.mxu0 0
        %1582 = vmatpush2.bf16.msra.mxu0 %v1495
        %1583 = vmatprep.mubr.bf16.mxu0 %v1249
        %1584 = vmatmul.mubr.bf16.gmra.mxu0 %v1248
        %v1585 = vpop.f32.mrf.mxu0
        %v1586 = vadd.f32 %v1357, %v1585
        %v1587 = vpop.f32.mrf.mxu0
        %v1588 = vpop.f32.mrf.mxu0
        %v1589 = vadd.f32 %v1357, %v1588
        %v1590 = vpop.f32.mrf.mxu0
        %1591 = vmatprep.mubr.bf16.mxu0 %v1253
        %1592 = vmatmul.mubr.bf16.gmra.mxu0 %v1252
        %v1593 = vpop.f32.mrf.mxu0
        %v1594 = vadd.f32 %v1357, %v1593
        %v1595 = vpop.f32.mrf.mxu0
        %v1596 = vpop.f32.mrf.mxu0
        %v1597 = vadd.f32 %v1357, %v1596
        %v1598 = vpop.f32.mrf.mxu0
        %1599 = vmatprep.mubr.bf16.mxu0 %v1257
        %1600 = vmatmul.mubr.bf16.gmra.mxu0 %v1256
        %v1601 = vpop.f32.mrf.mxu0
        %v1602 = vadd.f32 %v1357, %v1601
        %v1603 = vpop.f32.mrf.mxu0
        %v1604 = vpop.f32.mrf.mxu0
        %v1605 = vadd.f32 %v1357, %v1604
        %v1606 = vpop.f32.mrf.mxu0
        %1607 = vmatprep.mubr.bf16.mxu0 %v1261
        %1608 = vmatmul.mubr.bf16.gmra.mxu0 %v1260
        %v1609 = vpop.f32.mrf.mxu0
        %v1610 = vadd.f32 %v1357, %v1609
        %v1611 = vpop.f32.mrf.mxu0
        %v1612 = vpop.f32.mrf.mxu0
        %v1613 = vadd.f32 %v1357, %v1612
        %v1614 = vpop.f32.mrf.mxu0
        %1615 = vmatprep.mubr.bf16.mxu0 %v1265
        %1616 = vmatmul.mubr.bf16.gmra.mxu0 %v1264
        %v1617 = vpop.f32.mrf.mxu0
        %v1618 = vadd.f32 %v1357, %v1617
        %v1619 = vpop.f32.mrf.mxu0
        %v1620 = vpop.f32.mrf.mxu0
        %v1621 = vadd.f32 %v1357, %v1620
        %v1622 = vpop.f32.mrf.mxu0
        %1623 = vmatprep.mubr.bf16.mxu0 %v1269
        %1624 = vmatmul.mubr.bf16.gmra.mxu0 %v1268
        %v1625 = vpop.f32.mrf.mxu0
        %v1626 = vadd.f32 %v1357, %v1625
        %v1627 = vpop.f32.mrf.mxu0
        %v1628 = vpop.f32.mrf.mxu0
        %v1629 = vadd.f32 %v1357, %v1628
        %v1630 = vpop.f32.mrf.mxu0
        %1631 = vmatprep.mubr.bf16.mxu0 %v1273
        %1632 = vmatmul.mubr.bf16.gmra.mxu0 %v1272
        %v1633 = vpop.f32.mrf.mxu0
        %v1634 = vadd.f32 %v1357, %v1633
        %v1635 = vpop.f32.mrf.mxu0
        %v1636 = vpop.f32.mrf.mxu0
        %v1637 = vadd.f32 %v1357, %v1636
        %v1638 = vpop.f32.mrf.mxu0
        %1639 = vmatprep.mubr.bf16.mxu0 %v1277
        %1640 = vmatmul.mubr.bf16.gmra.mxu0 %v1276
        %v1641 = vpop.f32.mrf.mxu0
        %v1642 = vadd.f32 %v1357, %v1641
        %v1643 = vpop.f32.mrf.mxu0
        %v1644 = vpop.f32.mrf.mxu0
        %v1645 = vadd.f32 %v1357, %v1644
        %v1646 = vpop.f32.mrf.mxu0
        %1647 = vmatprep.mubr.bf16.mxu0 %v1281
        %1648 = vmatmul.mubr.bf16.gmra.mxu0 %v1280
        %v1649 = vpop.f32.mrf.mxu0
        %v1650 = vadd.f32 %v1357, %v1649
        %v1651 = vpop.f32.mrf.mxu0
        %v1652 = vpop.f32.mrf.mxu0
        %v1653 = vadd.f32 %v1357, %v1652
        %v1654 = vpop.f32.mrf.mxu0
        %1655 = vmatprep.mubr.bf16.mxu0 %v1285
        %1656 = vmatmul.mubr.bf16.gmra.mxu0 %v1284
        %v1657 = vpop.f32.mrf.mxu0
        %v1658 = vadd.f32 %v1357, %v1657
        %v1659 = vpop.f32.mrf.mxu0
        %v1660 = vpop.f32.mrf.mxu0
        %v1661 = vadd.f32 %v1357, %v1660
        %v1662 = vpop.f32.mrf.mxu0
        %1663 = vdwg.mxu0
        %1664 = vmatprep.subr.bf16.mxu0 0
        %1665 = vmatpush1.bf16.msra.mxu0 %v1510
        %1666 = vmatprep.subr.bf16.mxu0 0
        %1667 = vmatpush1.bf16.msra.mxu0 %v1509
        %1668 = vmatprep.subr.bf16.mxu0 0
        %1669 = vmatpush1.bf16.msra.mxu0 %v1508
        %1670 = vmatprep.subr.bf16.mxu0 0
        %1671 = vmatpush1.bf16.msra.mxu0 %v1507
        %1672 = vmatprep.subr.bf16.mxu0 0
        %1673 = vmatpush1.bf16.msra.mxu0 %v1506
        %1674 = vmatprep.subr.bf16.mxu0 0
        %1675 = vmatpush1.bf16.msra.mxu0 %v1505
        %1676 = vmatprep.subr.bf16.mxu0 0
        %1677 = vmatpush1.bf16.msra.mxu0 %v1504
        %1678 = vmatprep.subr.bf16.mxu0 0
        %1679 = vmatpush1.bf16.msra.mxu0 %v1503
        %1680 = vmatprep.subr.bf16.mxu0 0
        %1681 = vmatpush2.bf16.msra.mxu0 %v1518
        %1682 = vmatprep.subr.bf16.mxu0 0
        %1683 = vmatpush2.bf16.msra.mxu0 %v1517
        %1684 = vmatprep.subr.bf16.mxu0 0
        %1685 = vmatpush2.bf16.msra.mxu0 %v1516
        %1686 = vmatprep.subr.bf16.mxu0 0
        %1687 = vmatpush2.bf16.msra.mxu0 %v1515
        %1688 = vmatprep.subr.bf16.mxu0 0
        %1689 = vmatpush2.bf16.msra.mxu0 %v1514
        %1690 = vmatprep.subr.bf16.mxu0 0
        %1691 = vmatpush2.bf16.msra.mxu0 %v1513
        %1692 = vmatprep.subr.bf16.mxu0 0
        %1693 = vmatpush2.bf16.msra.mxu0 %v1512
        %1694 = vmatprep.subr.bf16.mxu0 0
        %1695 = vmatpush2.bf16.msra.mxu0 %v1511
        %1696 = vmatprep.mubr.bf16.mxu0 %v1251
        %1697 = vmatmul.mubr.bf16.gmra.mxu0 %v1250
        %v1698 = vpop.f32.mrf.mxu0
        %v1699 = vadd.f32 %v1586, %v1698
        %v1700 = vpop.f32.mrf.mxu0
        %v1701 = vpop.f32.mrf.mxu0
        %v1702 = vadd.f32 %v1589, %v1701
        %v1703 = vpop.f32.mrf.mxu0
        %1704 = vmatprep.mubr.bf16.mxu0 %v1255
        %1705 = vmatmul.mubr.bf16.gmra.mxu0 %v1254
        %v1706 = vpop.f32.mrf.mxu0
        %v1707 = vadd.f32 %v1594, %v1706
        %v1708 = vpop.f32.mrf.mxu0
        %v1709 = vpop.f32.mrf.mxu0
        %v1710 = vadd.f32 %v1597, %v1709
        %v1711 = vpop.f32.mrf.mxu0
        %1712 = vmatprep.mubr.bf16.mxu0 %v1259
        %1713 = vmatmul.mubr.bf16.gmra.mxu0 %v1258
        %v1714 = vpop.f32.mrf.mxu0
        %v1715 = vadd.f32 %v1602, %v1714
        %v1716 = vpop.f32.mrf.mxu0
        %v1717 = vpop.f32.mrf.mxu0
        %v1718 = vadd.f32 %v1605, %v1717
        %v1719 = vpop.f32.mrf.mxu0
        %1720 = vmatprep.mubr.bf16.mxu0 %v1263
        %1721 = vmatmul.mubr.bf16.gmra.mxu0 %v1262
        %v1722 = vpop.f32.mrf.mxu0
        %v1723 = vadd.f32 %v1610, %v1722
        %v1724 = vpop.f32.mrf.mxu0
        %v1725 = vpop.f32.mrf.mxu0
        %v1726 = vadd.f32 %v1613, %v1725
        %v1727 = vpop.f32.mrf.mxu0
        %1728 = vmatprep.mubr.bf16.mxu0 %v1267
        %1729 = vmatmul.mubr.bf16.gmra.mxu0 %v1266
        %v1730 = vpop.f32.mrf.mxu0
        %v1731 = vadd.f32 %v1618, %v1730
        %v1732 = vpop.f32.mrf.mxu0
        %v1733 = vpop.f32.mrf.mxu0
        %v1734 = vadd.f32 %v1621, %v1733
        %v1735 = vpop.f32.mrf.mxu0
        %1736 = vmatprep.mubr.bf16.mxu0 %v1271
        %1737 = vmatmul.mubr.bf16.gmra.mxu0 %v1270
        %v1738 = vpop.f32.mrf.mxu0
        %v1739 = vadd.f32 %v1626, %v1738
        %v1740 = vpop.f32.mrf.mxu0
        %v1741 = vpop.f32.mrf.mxu0
        %v1742 = vadd.f32 %v1629, %v1741
        %v1743 = vpop.f32.mrf.mxu0
        %1744 = vmatprep.mubr.bf16.mxu0 %v1275
        %1745 = vmatmul.mubr.bf16.gmra.mxu0 %v1274
        %v1746 = vpop.f32.mrf.mxu0
        %v1747 = vadd.f32 %v1634, %v1746
        %v1748 = vpop.f32.mrf.mxu0
        %v1749 = vpop.f32.mrf.mxu0
        %v1750 = vadd.f32 %v1637, %v1749
        %v1751 = vpop.f32.mrf.mxu0
        %1752 = vmatprep.mubr.bf16.mxu0 %v1279
        %1753 = vmatmul.mubr.bf16.gmra.mxu0 %v1278
        %v1754 = vpop.f32.mrf.mxu0
        %v1755 = vadd.f32 %v1642, %v1754
        %v1756 = vpop.f32.mrf.mxu0
        %v1757 = vpop.f32.mrf.mxu0
        %v1758 = vadd.f32 %v1645, %v1757
        %v1759 = vpop.f32.mrf.mxu0
        %1760 = vmatprep.mubr.bf16.mxu0 %v1283
        %1761 = vmatmul.mubr.bf16.gmra.mxu0 %v1282
        %v1762 = vpop.f32.mrf.mxu0
        %v1763 = vadd.f32 %v1650, %v1762
        %v1764 = vpop.f32.mrf.mxu0
        %v1765 = vpop.f32.mrf.mxu0
        %v1766 = vadd.f32 %v1653, %v1765
        %v1767 = vpop.f32.mrf.mxu0
        %1768 = vmatprep.mubr.bf16.mxu0 %v1287
        %1769 = vmatmul.mubr.bf16.gmra.mxu0 %v1286
        %v1770 = vpop.f32.mrf.mxu0
        %v1771 = vadd.f32 %v1658, %v1770
        %v1772 = vpop.f32.mrf.mxu0
        %v1773 = vpop.f32.mrf.mxu0
        %v1774 = vadd.f32 %v1661, %v1773
        %v1775 = vpop.f32.mrf.mxu0
        %1776 = vdwg.mxu0
        %1777 = vst [vmem:[%s290] sm:$0xff] %v1699
        %1778 = vst [vmem:[%s290 + $0x8] sm:$0xff] %v1702
        %1779 = vst [vmem:[%s290 + $0x10] sm:$0xff] %v1707
        %1780 = vst [vmem:[%s290 + $0x18] sm:$0xff] %v1710
        %1781 = vst [vmem:[%s290 + $0x20] sm:$0xff] %v1715
        %1782 = vst [vmem:[%s290 + $0x28] sm:$0xff] %v1718
        %1783 = vst [vmem:[%s290 + $0x30] sm:$0xff] %v1723
        %1784 = vst [vmem:[%s290 + $0x38] sm:$0xff] %v1726
        %1785 = vst [vmem:[%s290 + $0x40] sm:$0xff] %v1731
        %1786 = vst [vmem:[%s290 + $0x48] sm:$0xff] %v1734
        %1787 = vst [vmem:[%s290 + $0x50] sm:$0xff] %v1739
        %1788 = vst [vmem:[%s290 + $0x58] sm:$0xff] %v1742
        %1789 = vst [vmem:[%s290 + $0x60] sm:$0xff] %v1747
        %1790 = vst [vmem:[%s290 + $0x68] sm:$0xff] %v1750
        %1791 = vst [vmem:[%s290 + $0x70] sm:$0xff] %v1755
        %1792 = vst [vmem:[%s290 + $0x78] sm:$0xff] %v1758
        %1793 = vst [vmem:[%s290 + $0x80] sm:$0xff] %v1763
        %1794 = vst [vmem:[%s290 + $0x88] sm:$0xff] %v1766
        %1795 = vst [vmem:[%s290 + $0x90] sm:$0xff] %v1771
        %1796 = vst [vmem:[%s290 + $0x98] sm:$0xff] %v1774
        %s1797 = sand.u32 %s142, 1
        %s1798 = scalar_lea.sflag [#allocation4], %s1797
        %s1799 = sand.u32 %s142, 1
        %s1800 = smul.addr %s1799, 160
        %s1801 = scalar_lea.vmem [#allocation10], %s1800
        // Predicated region
        $region57: #{tpu_custom_call.1} parent=39 // pred_check
          %p1802 = pneg %p152
        $region58: #{tpu_custom_call.1} parent=39 // pred_check_branch
          %1804 = sbr.rel (%p1802) target = $region60
        $region59: #{tpu_custom_call.1} parent=39 // pred_region
          %s1805 = smul.u32 20, %s24
          %s1806 = ssub.s32 38, %s1805
          %p1807 = scmp.lt.s32.totalorder %s1806, 20
          %s1808 = scalar_select %p1807, %s1806, 20
          %s1809 = smul.u32 128, %s1808
          %s1811 = ssub.s32 2560, %s1809
          %1812 = vsyncadd %s1798, %s1811
          %p1813 = scmp.ne.s32.totalorder 0, %s1809
          %s1814 = smul.addr %s1805, 128
          %s1815 = scalar_lea.hbm %s5, %s1814
          %s1816 = smul.u32 8, %s1808
          %s1817 = sshll.u32 %s1801, 4
          %s1818 = int_to_ptr.vmem [resolvable:$true] %s1817
          %s1819 = sshll.u32 %s1816, 4
          %1823 = dma.vmem_to_hbm [thread:$0]  (%p1813), %s1818, %s1819, %s1815, %s1798, 128, 128, 8
        $region60: #{tpu_custom_call.1} parent=39 // pred_fallthru
          _
      $region40: #{tpu_custom_call.1} parent=5 // pred_fallthru
        _
      %p1824 = scmp.le.s32.totalorder 2, %s19
      // Predicated region
      $region61: #{tpu_custom_call.1} parent=5 // pred_check
        %p1825 = pneg %p1824
      $region62: #{tpu_custom_call.1} parent=5 // pred_check_branch
        %1827 = sbr.rel (%p1825) target = $region64
      $region63: #{tpu_custom_call.1} parent=5 // pred_region
        %s1828 = ssub.s32 %s19, 2
        // Predicated region
        $region65: #{tpu_custom_call.1} parent=63 // pred_check
          %p1829 = pneg %p158
        $region66: #{tpu_custom_call.1} parent=63 // pred_check_branch
          %1831 = sbr.rel (%p1829) target = $region68
        $region67: #{tpu_custom_call.1} parent=63 // pred_region
          %s1832 = sand.u32 %s143, 1
          %s1833 = scalar_lea.sflag [#allocation4], %s1832
          %s1834 = sand.u32 %s143, 1
          %s1835 = smul.addr %s1834, 160
          %s1836 = scalar_lea.vmem [#allocation10], %s1835
          %1837 = dma.done %s1833, 2560
        $region68: #{tpu_custom_call.1} parent=63 // pred_fallthru
          _
      $region64: #{tpu_custom_call.1} parent=5 // pred_fallthru
        _
    $region6: #{tpu_custom_call.1} parent=1 // loop_footer
      %s23 = sadd.s32 1, %s19
    $region7: #{tpu_custom_call.1} parent=1 // loop_footer_branch
      %18 = sbr.rel target = $region3
    $region8: #{tpu_custom_call.1} parent=1 // loop_exit
      _
    %1838 = vsyncpa [#allocation3], 1
    %s1839 = scalar_lea.sflag [#allocation3], 1
    %1840 = vsyncpa %s1839, 1
    %1841 = vsyncpa [#allocation6], 1
    %1842 = vsyncpa [#allocation9], 1
    %1843 = vsyncpa [#allocation4], 1
    %s1844 = scalar_lea.sflag [#allocation4], 1
    %1845 = vsyncpa %s1844, 1

</llo_original>
